<compile_context>
chip_gen: v5e
topology: v5e:2x2
jax: 0.10.0
libtpu: 0.0.40
codegen_flags: <defaults>
</compile_context>

<pallas_src>
import jax
import jax.numpy as jnp
from jax.experimental import pallas as pl
from jax.experimental.pallas import tpu as pltpu


# ------------------------------------------------------------ fused kernel --
def _decoder_fused_kernel(ids_ref,       # SMEM (S, B) int32
                          h0_ref,        # VMEM (L, B, Hp) f32
                          feat0_ref,     # VMEM (B, F)     f32
                          table_ref,     # VMEM (V, 1, Hp) f32
                          map_wt_ref,    # VMEM (F, Hp)    bf16
                          map_b_ref,     # VMEM (1, Hp)    f32
                          wih_t_ref,     # VMEM (L, Hp, 3Hp) bf16
                          whh_t_ref,     # VMEM (L, Hp, 3Hp) bf16
                          bih_ref,       # VMEM (L, 1, 3Hp)  f32
                          bhh_ref,       # VMEM (L, 1, 3Hp)  f32
                          out_wf_ref,    # VMEM (Hp, Vp)   bf16
                          out_wg_ref,    # VMEM (Hp, Vp)   bf16
                          out_b_ref,     # VMEM (1, Vp)    f32 (pad cols = -1e30)
                          logp_ref,      # out  (B, Vp)    f32
                          hid_ref):      # out  (L, B, Hp) f32  (also the carry)
    seq_len, batch = ids_ref.shape
    num_layers = wih_t_ref.shape[0]
    hp = h0_ref.shape[2]

    # Hidden-state carry lives in the VMEM-resident output ref for the whole call.
    hid_ref[...] = h0_ref[...]

    # Hoist the per-layer bias broadcasts out of the (unrolled) time loop.
    bih_l = [bih_ref[l] for l in range(num_layers)]
    bhh_l = [bhh_ref[l] for l in range(num_layers)]

    out0 = None
    # S and L are small & static -> fully unrolled in-kernel loops (equivalent to
    # lax.fori_loop(..., unroll=True)); switch to a fori_loop for large S.
    for t in range(seq_len):
        # Embedding lookup: direct VMEM row gather driven by SMEM ids + fused ReLU.
        rows = []
        for b in range(batch):
            idx = ids_ref[t, b]
            rows.append(jnp.maximum(table_ref[idx], 0.0))      # (1, Hp)
        x = jnp.concatenate(rows, axis=0)                      # (B, Hp) f32

        for l in range(num_layers):
            h = hid_ref[l]                                     # (B, Hp) f32
            # Two MXU pushes per cell. (A fused [x|h]@[Wih;Whh] layout does not
            # reduce MXU tile passes here because gh_n must stay separate for
            # the r-gated new-gate term.)
            gi = jnp.dot(x.astype(jnp.bfloat16), wih_t_ref[l],
                         preferred_element_type=jnp.float32) + bih_l[l]
            gh = jnp.dot(h.astype(jnp.bfloat16), whh_t_ref[l],
                         preferred_element_type=jnp.float32) + bhh_l[l]
            # Gate blocks are 128-aligned (per-gate padding) -> lane-dense slices.
            r = jax.nn.sigmoid(gi[:, :hp] + gh[:, :hp])
            z = jax.nn.sigmoid(gi[:, hp:2 * hp] + gh[:, hp:2 * hp])
            n = jnp.tanh(gi[:, 2 * hp:] + r * gh[:, 2 * hp:])
            h_new = (1.0 - z) * n + z * h                      # gate math in f32
            hid_ref[l] = h_new
            x = h_new

        if t == 0:
            out0 = x       # GRU output[0] = top-layer hidden after timestep 0

    # Feature map: only feature[0] feeds the output head (rest would be dead work).
    feat_m = (jnp.dot(feat0_ref[...].astype(jnp.bfloat16), map_wt_ref[...],
                      preferred_element_type=jnp.float32) + map_b_ref[...])

    # out(cat(feature, output)[0]) without materializing the concat:
    # weight split into feature half and GRU half -> two MXU pushes.
    logits = (jnp.dot(feat_m.astype(jnp.bfloat16), out_wf_ref[...],
                      preferred_element_type=jnp.float32)
              + jnp.dot(out0.astype(jnp.bfloat16), out_wg_ref[...],
                        preferred_element_type=jnp.float32)
              + out_b_ref[...])

    # Numerically stable LogSoftmax(dim=1); padded vocab columns carry -1e30 bias.
    m = jnp.max(logits, axis=1, keepdims=True)
    shifted = logits - m
    lse = jnp.log(jnp.sum(jnp.exp(shifted), axis=1, keepdims=True))
    logp_ref[...] = shifted - lse


# ----------------------------------------------------- one-time param prep --
def _round_up(n, m):
    return ((n + m - 1) // m) * m


def _pad2(x, rows, cols):
    return jnp.pad(x, ((0, rows - x.shape[0]), (0, cols - x.shape[1])))


def prepare_kernel_params(params):
    """Transpose to [in, out], pad H/V to lane-dense 128-multiples (per-gate),
    cast matmul weights to bf16. Done once, outside the forward."""
    emb = params["embedding"]                    # (V, H)
    V, H = emb.shape
    F = params["map_w"].shape[1]
    Hp = _round_up(H, 128)
    Vp = _round_up(V, 128)

    table3 = _pad2(emb, V, Hp).reshape(V, 1, Hp).astype(jnp.float32)

    map_wt = _pad2(params["map_w"].T, F, Hp).astype(jnp.bfloat16)           # (F, Hp)
    map_b = jnp.pad(params["map_b"], (0, Hp - H)).reshape(1, Hp).astype(jnp.float32)

    def pad_gate_w(wt):      # (H, 3H) -> (Hp, 3Hp); each gate block stays 128-aligned
        return jnp.concatenate(
            [_pad2(wt[:, g * H:(g + 1) * H], Hp, Hp) for g in range(3)], axis=1)

    def pad_gate_b(b):       # (3H,) -> (1, 3Hp)
        return jnp.concatenate(
            [jnp.pad(b[g * H:(g + 1) * H], (0, Hp - H)) for g in range(3)]
        ).reshape(1, 3 * Hp)

    wih_t, whh_t, bih, bhh = [], [], [], []
    for (w_ih, w_hh, b_ih, b_hh) in params["gru"]:
        wih_t.append(pad_gate_w(w_ih.T).astype(jnp.bfloat16))
        whh_t.append(pad_gate_w(w_hh.T).astype(jnp.bfloat16))
        bih.append(pad_gate_b(b_ih).astype(jnp.float32))
        bhh.append(pad_gate_b(b_hh).astype(jnp.float32))

    out_wt = params["out_w"].T                   # (2H, V): rows 0..H-1 = feature half
    out_wf = _pad2(out_wt[:H], Hp, Vp).astype(jnp.bfloat16)
    out_wg = _pad2(out_wt[H:], Hp, Vp).astype(jnp.bfloat16)
    out_b = jnp.concatenate(
        [params["out_b"].astype(jnp.float32),
         jnp.full((Vp - V,), -1e30, jnp.float32)]).reshape(1, Vp)

    return {
        "table3": table3,
        "map_wt": map_wt, "map_b": map_b,
        "wih_t": jnp.stack(wih_t), "whh_t": jnp.stack(whh_t),
        "bih": jnp.stack(bih), "bhh": jnp.stack(bhh),
        "out_wf": out_wf, "out_wg": out_wg, "out_b": out_b,
    }


# -------------------------------------------------------------- forward -----
@jax.jit
def decoder_forward(kparams, input_ids, hidden, feature):
    """input_ids (S, B) int32, hidden (L, B, H) f32, feature (S, B, F) f32."""
    S, B = input_ids.shape
    L, _, H = hidden.shape
    Hp = kparams["wih_t"].shape[1]
    Vp = kparams["out_b"].shape[1]
    V = kparams["table3"].shape[0]

    h0p = jnp.pad(hidden.astype(jnp.float32), ((0, 0), (0, 0), (0, Hp - H)))
    feat0 = feature[0].astype(jnp.float32)     # only timestep 0 feeds the head
    ids = input_ids.astype(jnp.int32)

    vmem = pl.BlockSpec(memory_space=pltpu.MemorySpace.VMEM)
    smem = pl.BlockSpec(memory_space=pltpu.MemorySpace.SMEM)

    # NOTE: for production vocab sizes the output head should be grid-tiled over
    # V (lane-dense ~512-col blocks, "parallel" semantics for v7x's 2 TCs); at
    # these sizes one VMEM-resident block is optimal.
    logp_pad, hid_pad = pl.pallas_call(
        _decoder_fused_kernel,
        out_shape=(jax.ShapeDtypeStruct((B, Vp), jnp.float32),
                   jax.ShapeDtypeStruct((L, B, Hp), jnp.float32)),
        in_specs=[smem] + [vmem] * 12,
        out_specs=(vmem, vmem),
        compiler_params=pltpu.CompilerParams(vmem_limit_bytes=32 * 1024 * 1024),
    )(ids, h0p, feat0,
      kparams["table3"], kparams["map_wt"], kparams["map_b"],
      kparams["wih_t"], kparams["whh_t"], kparams["bih"], kparams["bhh"],
      kparams["out_wf"], kparams["out_wg"], kparams["out_b"])

    return logp_pad[:, :V], hid_pad[:, :, :H]


# -------------------------------------------------------------- init --------
def init_params(key, feature_size, output_size, embed_size, num_layers):
    """Parameters in PyTorch layouts (Linear: [out, in]; GRU: [3H, in])."""
    def nrm(k, shape, scale=0.1):
        return scale * jax.random.normal(k, shape, dtype=jnp.float32)

    keys = jax.random.split(key, 4 + 4 * num_layers)
    params = {
        "embedding": nrm(keys[0], (output_size, embed_size)),
        "map_w": nrm(keys[1], (embed_size, feature_size)),
        "map_b": nrm(keys[2], (embed_size,)),
        "out_w": nrm(keys[3], (output_size, 2 * embed_size)),
        "out_b": jnp.zeros((output_size,), jnp.float32),
        "gru": [],
    }
    H = embed_size
    for l in range(num_layers):
        k0, k1, k2, k3 = keys[4 + 4 * l: 8 + 4 * l]
        params["gru"].append((
            nrm(k0, (3 * H, H)),   # weight_ih_l{l}  (input_size == embed_size)
            nrm(k1, (3 * H, H)),   # weight_hh_l{l}
            nrm(k2, (3 * H,)),     # bias_ih_l{l}
            nrm(k3, (3 * H,)),     # bias_hh_l{l}
        ))
    return params


if __name__ == "__main__":
    feature_size, output_size, embed_size, num_layers = 64, 32, 32, 2
    seq_len, batch = 4, 8

    key = jax.random.PRNGKey(0)
    kp, ki, kh, kf = jax.random.split(key, 4)

    params = init_params(kp, feature_size, output_size, embed_size, num_layers)
    kparams = prepare_kernel_params(params)   # one-time transpose/pad/cast

    input_ids = jax.random.randint(ki, (seq_len, batch), 0, output_size,
                                   dtype=jnp.int32)
    hidden = 0.1 * jax.random.normal(kh, (num_layers, batch, embed_size),
                                     dtype=jnp.float32)
    feature = jax.random.normal(kf, (seq_len, batch, feature_size),
                                dtype=jnp.float32)

    logprobs, new_hidden = decoder_forward(kparams, input_ids, hidden, feature)
    jax.block_until_ready((logprobs, new_hidden))

    assert logprobs.shape == (batch, output_size)
    assert new_hidden.shape == (num_layers, batch, embed_size)
    assert bool(jnp.all(jnp.isfinite(logprobs)))
    # LogSoftmax rows must normalize.
    assert bool(jnp.allclose(jnp.sum(jnp.exp(logprobs), axis=1), 1.0, atol=1e-3))
    print("KERNEL_OK")
</pallas_src>

<mosaic_0001>
module attributes {stable_mosaic.version = 11 : i64} {
  func.func @_decoder_fused_kernel(%arg0: memref<4x8xi32, #tpu.memory_space<smem>>, %arg1: memref<2x8x128xf32, #tpu.memory_space<vmem>>, %arg2: memref<8x64xf32, #tpu.memory_space<vmem>>, %arg3: memref<32x1x128xf32, #tpu.memory_space<vmem>>, %arg4: memref<64x128xbf16, #tpu.memory_space<vmem>>, %arg5: memref<1x128xf32, #tpu.memory_space<vmem>>, %arg6: memref<2x128x384xbf16, #tpu.memory_space<vmem>>, %arg7: memref<2x128x384xbf16, #tpu.memory_space<vmem>>, %arg8: memref<2x1x384xf32, #tpu.memory_space<vmem>>, %arg9: memref<2x1x384xf32, #tpu.memory_space<vmem>>, %arg10: memref<128x128xbf16, #tpu.memory_space<vmem>>, %arg11: memref<128x128xbf16, #tpu.memory_space<vmem>>, %arg12: memref<1x128xf32, #tpu.memory_space<vmem>>, %arg13: memref<8x128xf32, #tpu.memory_space<vmem>>, %arg14: memref<2x8x128xf32, #tpu.memory_space<vmem>>) attributes {dimension_semantics = [], scalar_prefetch = 0 : i64, scratch_operands = 0 : i64, tpu.core_type = #tpu.core_type<tc>} {
    %c0 = arith.constant 0 : index
    %c0_0 = arith.constant 0 : index
    %c0_1 = arith.constant 0 : index
    %0 = vector.load %arg1[%c0, %c0_0, %c0_1] : memref<2x8x128xf32, #tpu.memory_space<vmem>>, vector<2x8x128xf32>
    %c0_2 = arith.constant 0 : index
    %c0_3 = arith.constant 0 : index
    %c0_4 = arith.constant 0 : index
    %1 = vector.load %arg14[%c0_2, %c0_3, %c0_4] : memref<2x8x128xf32, #tpu.memory_space<vmem>>, vector<2x8x128xf32>
    tpu.vector_store %arg14[%c0_2, %c0_3, %c0_4], %0 {strides = array<i32>} : memref<2x8x128xf32, #tpu.memory_space<vmem>>, vector<2x8x128xf32>,
    %c0_5 = arith.constant 0 : index
    %c0_6 = arith.constant 0 : index
    %c0_7 = arith.constant 0 : index
    %2 = vector.load %arg8[%c0_5, %c0_6, %c0_7] : memref<2x1x384xf32, #tpu.memory_space<vmem>>, vector<1x1x384xf32>
    %3 = vector.shape_cast %2 : vector<1x1x384xf32> to vector<1x384xf32>
    %c1 = arith.constant 1 : index
    %c0_8 = arith.constant 0 : index
    %c0_9 = arith.constant 0 : index
    %4 = vector.load %arg8[%c1, %c0_8, %c0_9] : memref<2x1x384xf32, #tpu.memory_space<vmem>>, vector<1x1x384xf32>
    %5 = vector.shape_cast %4 : vector<1x1x384xf32> to vector<1x384xf32>
    %c0_10 = arith.constant 0 : index
    %c0_11 = arith.constant 0 : index
    %c0_12 = arith.constant 0 : index
    %6 = vector.load %arg9[%c0_10, %c0_11, %c0_12] : memref<2x1x384xf32, #tpu.memory_space<vmem>>, vector<1x1x384xf32>
    %7 = vector.shape_cast %6 : vector<1x1x384xf32> to vector<1x384xf32>
    %c1_13 = arith.constant 1 : index
    %c0_14 = arith.constant 0 : index
    %c0_15 = arith.constant 0 : index
    %8 = vector.load %arg9[%c1_13, %c0_14, %c0_15] : memref<2x1x384xf32, #tpu.memory_space<vmem>>, vector<1x1x384xf32>
    %9 = vector.shape_cast %8 : vector<1x1x384xf32> to vector<1x384xf32>
    %c0_16 = arith.constant 0 : index
    %c0_17 = arith.constant 0 : index
    %10 = memref.load %arg0[%c0_16, %c0_17] : memref<4x8xi32, #tpu.memory_space<smem>>
    %11 = arith.index_cast %10 : i32 to index
    %c0_18 = arith.constant 0 : index
    %c0_19 = arith.constant 0 : index
    %12 = vector.load %arg3[%11, %c0_18, %c0_19] : memref<32x1x128xf32, #tpu.memory_space<vmem>>, vector<1x1x128xf32>
    %13 = vector.shape_cast %12 : vector<1x1x128xf32> to vector<1x128xf32>
    %cst = arith.constant 0.000000e+00 : f32
    %14 = vector.broadcast %cst : f32 to vector<1x128xf32>
    %15 = arith.maximumf %13, %14 : vector<1x128xf32>
    %c0_20 = arith.constant 0 : index
    %c1_21 = arith.constant 1 : index
    %16 = memref.load %arg0[%c0_20, %c1_21] : memref<4x8xi32, #tpu.memory_space<smem>>
    %17 = arith.index_cast %16 : i32 to index
    %c0_22 = arith.constant 0 : index
    %c0_23 = arith.constant 0 : index
    %18 = vector.load %arg3[%17, %c0_22, %c0_23] : memref<32x1x128xf32, #tpu.memory_space<vmem>>, vector<1x1x128xf32>
    %19 = vector.shape_cast %18 : vector<1x1x128xf32> to vector<1x128xf32>
    %cst_24 = arith.constant 0.000000e+00 : f32
    %20 = vector.broadcast %cst_24 : f32 to vector<1x128xf32>
    %21 = arith.maximumf %19, %20 : vector<1x128xf32>
    %c0_25 = arith.constant 0 : index
    %c2 = arith.constant 2 : index
    %22 = memref.load %arg0[%c0_25, %c2] : memref<4x8xi32, #tpu.memory_space<smem>>
    %23 = arith.index_cast %22 : i32 to index
    %c0_26 = arith.constant 0 : index
    %c0_27 = arith.constant 0 : index
    %24 = vector.load %arg3[%23, %c0_26, %c0_27] : memref<32x1x128xf32, #tpu.memory_space<vmem>>, vector<1x1x128xf32>
    %25 = vector.shape_cast %24 : vector<1x1x128xf32> to vector<1x128xf32>
    %cst_28 = arith.constant 0.000000e+00 : f32
    %26 = vector.broadcast %cst_28 : f32 to vector<1x128xf32>
    %27 = arith.maximumf %25, %26 : vector<1x128xf32>
    %c0_29 = arith.constant 0 : index
    %c3 = arith.constant 3 : index
    %28 = memref.load %arg0[%c0_29, %c3] : memref<4x8xi32, #tpu.memory_space<smem>>
    %29 = arith.index_cast %28 : i32 to index
    %c0_30 = arith.constant 0 : index
    %c0_31 = arith.constant 0 : index
    %30 = vector.load %arg3[%29, %c0_30, %c0_31] : memref<32x1x128xf32, #tpu.memory_space<vmem>>, vector<1x1x128xf32>
    %31 = vector.shape_cast %30 : vector<1x1x128xf32> to vector<1x128xf32>
    %cst_32 = arith.constant 0.000000e+00 : f32
    %32 = vector.broadcast %cst_32 : f32 to vector<1x128xf32>
    %33 = arith.maximumf %31, %32 : vector<1x128xf32>
    %c0_33 = arith.constant 0 : index
    %c4 = arith.constant 4 : index
    %34 = memref.load %arg0[%c0_33, %c4] : memref<4x8xi32, #tpu.memory_space<smem>>
    %35 = arith.index_cast %34 : i32 to index
    %c0_34 = arith.constant 0 : index
    %c0_35 = arith.constant 0 : index
    %36 = vector.load %arg3[%35, %c0_34, %c0_35] : memref<32x1x128xf32, #tpu.memory_space<vmem>>, vector<1x1x128xf32>
    %37 = vector.shape_cast %36 : vector<1x1x128xf32> to vector<1x128xf32>
    %cst_36 = arith.constant 0.000000e+00 : f32
    %38 = vector.broadcast %cst_36 : f32 to vector<1x128xf32>
    %39 = arith.maximumf %37, %38 : vector<1x128xf32>
    %c0_37 = arith.constant 0 : index
    %c5 = arith.constant 5 : index
    %40 = memref.load %arg0[%c0_37, %c5] : memref<4x8xi32, #tpu.memory_space<smem>>
    %41 = arith.index_cast %40 : i32 to index
    %c0_38 = arith.constant 0 : index
    %c0_39 = arith.constant 0 : index
    %42 = vector.load %arg3[%41, %c0_38, %c0_39] : memref<32x1x128xf32, #tpu.memory_space<vmem>>, vector<1x1x128xf32>
    %43 = vector.shape_cast %42 : vector<1x1x128xf32> to vector<1x128xf32>
    %cst_40 = arith.constant 0.000000e+00 : f32
    %44 = vector.broadcast %cst_40 : f32 to vector<1x128xf32>
    %45 = arith.maximumf %43, %44 : vector<1x128xf32>
    %c0_41 = arith.constant 0 : index
    %c6 = arith.constant 6 : index
    %46 = memref.load %arg0[%c0_41, %c6] : memref<4x8xi32, #tpu.memory_space<smem>>
    %47 = arith.index_cast %46 : i32 to index
    %c0_42 = arith.constant 0 : index
    %c0_43 = arith.constant 0 : index
    %48 = vector.load %arg3[%47, %c0_42, %c0_43] : memref<32x1x128xf32, #tpu.memory_space<vmem>>, vector<1x1x128xf32>
    %49 = vector.shape_cast %48 : vector<1x1x128xf32> to vector<1x128xf32>
    %cst_44 = arith.constant 0.000000e+00 : f32
    %50 = vector.broadcast %cst_44 : f32 to vector<1x128xf32>
    %51 = arith.maximumf %49, %50 : vector<1x128xf32>
    %c0_45 = arith.constant 0 : index
    %c7 = arith.constant 7 : index
    %52 = memref.load %arg0[%c0_45, %c7] : memref<4x8xi32, #tpu.memory_space<smem>>
    %53 = arith.index_cast %52 : i32 to index
    %c0_46 = arith.constant 0 : index
    %c0_47 = arith.constant 0 : index
    %54 = vector.load %arg3[%53, %c0_46, %c0_47] : memref<32x1x128xf32, #tpu.memory_space<vmem>>, vector<1x1x128xf32>
    %55 = vector.shape_cast %54 : vector<1x1x128xf32> to vector<1x128xf32>
    %cst_48 = arith.constant 0.000000e+00 : f32
    %56 = vector.broadcast %cst_48 : f32 to vector<1x128xf32>
    %57 = arith.maximumf %55, %56 : vector<1x128xf32>
    %58 = tpu.concatenate %15, %21, %27, %33, %39, %45, %51, %57 in 0 : vector<1x128xf32>, vector<1x128xf32>, vector<1x128xf32>, vector<1x128xf32>, vector<1x128xf32>, vector<1x128xf32>, vector<1x128xf32>, vector<1x128xf32> -> vector<8x128xf32>
    %c0_49 = arith.constant 0 : index
    %c0_50 = arith.constant 0 : index
    %c0_51 = arith.constant 0 : index
    %59 = vector.load %arg14[%c0_49, %c0_50, %c0_51] : memref<2x8x128xf32, #tpu.memory_space<vmem>>, vector<1x8x128xf32>
    %60 = vector.shape_cast %59 : vector<1x8x128xf32> to vector<8x128xf32>
    %61 = arith.truncf %58 : vector<8x128xf32> to vector<8x128xbf16>
    %c0_52 = arith.constant 0 : index
    %c0_53 = arith.constant 0 : index
    %c0_54 = arith.constant 0 : index
    %62 = vector.load %arg6[%c0_52, %c0_53, %c0_54] : memref<2x128x384xbf16, #tpu.memory_space<vmem>>, vector<1x128x384xbf16>
    %63 = vector.shape_cast %62 : vector<1x128x384xbf16> to vector<128x384xbf16>
    %cst_55 = arith.constant dense<0.000000e+00> : vector<8x384xf32>
    %64 = tpu.matmul %61, %63, %cst_55 {dimension_numbers = #tpu.dot_dimension_numbers<[1], [0], [0], [1], [0, 0, 1, 1], [], []>} : vector<8x128xbf16>, vector<128x384xbf16>, vector<8x384xf32> -> vector<8x384xf32>
    %65 = vector.broadcast %3 : vector<1x384xf32> to vector<8x384xf32>
    %66 = arith.addf %64, %65 : vector<8x384xf32>
    %67 = arith.truncf %60 : vector<8x128xf32> to vector<8x128xbf16>
    %c0_56 = arith.constant 0 : index
    %c0_57 = arith.constant 0 : index
    %c0_58 = arith.constant 0 : index
    %68 = vector.load %arg7[%c0_56, %c0_57, %c0_58] : memref<2x128x384xbf16, #tpu.memory_space<vmem>>, vector<1x128x384xbf16>
    %69 = vector.shape_cast %68 : vector<1x128x384xbf16> to vector<128x384xbf16>
    %cst_59 = arith.constant dense<0.000000e+00> : vector<8x384xf32>
    %70 = tpu.matmul %67, %69, %cst_59 {dimension_numbers = #tpu.dot_dimension_numbers<[1], [0], [0], [1], [0, 0, 1, 1], [], []>} : vector<8x128xbf16>, vector<128x384xbf16>, vector<8x384xf32> -> vector<8x384xf32>
    %71 = vector.broadcast %7 : vector<1x384xf32> to vector<8x384xf32>
    %72 = arith.addf %70, %71 : vector<8x384xf32>
    %73 = vector.extract_strided_slice %66 {offsets = [0, 0], sizes = [8, 128], strides = [1, 1]} : vector<8x384xf32> to vector<8x128xf32>
    %74 = vector.extract_strided_slice %72 {offsets = [0, 0], sizes = [8, 128], strides = [1, 1]} : vector<8x384xf32> to vector<8x128xf32>
    %75 = arith.addf %73, %74 : vector<8x128xf32>
    %76 = arith.negf %75 : vector<8x128xf32>
    %77 = math.exp %76 : vector<8x128xf32>
    %cst_60 = arith.constant 1.000000e+00 : f32
    %78 = vector.broadcast %cst_60 : f32 to vector<8x128xf32>
    %79 = arith.addf %78, %77 : vector<8x128xf32>
    %80 = arith.divf %78, %79 : vector<8x128xf32>
    %81 = vector.extract_strided_slice %66 {offsets = [0, 128], sizes = [8, 128], strides = [1, 1]} : vector<8x384xf32> to vector<8x128xf32>
    %82 = vector.extract_strided_slice %72 {offsets = [0, 128], sizes = [8, 128], strides = [1, 1]} : vector<8x384xf32> to vector<8x128xf32>
    %83 = arith.addf %81, %82 : vector<8x128xf32>
    %84 = arith.negf %83 : vector<8x128xf32>
    %85 = math.exp %84 : vector<8x128xf32>
    %cst_61 = arith.constant 1.000000e+00 : f32
    %86 = vector.broadcast %cst_61 : f32 to vector<8x128xf32>
    %87 = arith.addf %86, %85 : vector<8x128xf32>
    %88 = arith.divf %86, %87 : vector<8x128xf32>
    %89 = vector.extract_strided_slice %66 {offsets = [0, 256], sizes = [8, 128], strides = [1, 1]} : vector<8x384xf32> to vector<8x128xf32>
    %90 = vector.extract_strided_slice %72 {offsets = [0, 256], sizes = [8, 128], strides = [1, 1]} : vector<8x384xf32> to vector<8x128xf32>
    %91 = arith.mulf %80, %90 : vector<8x128xf32>
    %92 = arith.addf %89, %91 : vector<8x128xf32>
    %93 = math.tanh %92 : vector<8x128xf32>
    %cst_62 = arith.constant 1.000000e+00 : f32
    %94 = vector.broadcast %cst_62 : f32 to vector<8x128xf32>
    %95 = arith.subf %94, %88 : vector<8x128xf32>
    %96 = arith.mulf %95, %93 : vector<8x128xf32>
    %97 = arith.mulf %88, %60 : vector<8x128xf32>
    %98 = arith.addf %96, %97 : vector<8x128xf32>
    %c0_63 = arith.constant 0 : index
    %c0_64 = arith.constant 0 : index
    %c0_65 = arith.constant 0 : index
    %99 = vector.load %arg14[%c0_63, %c0_64, %c0_65] : memref<2x8x128xf32, #tpu.memory_space<vmem>>, vector<1x8x128xf32>
    %100 = vector.shape_cast %99 : vector<1x8x128xf32> to vector<8x128xf32>
    %101 = vector.shape_cast %98 : vector<8x128xf32> to vector<1x8x128xf32>
    tpu.vector_store %arg14[%c0_63, %c0_64, %c0_65], %101 {strides = array<i32>} : memref<2x8x128xf32, #tpu.memory_space<vmem>>, vector<1x8x128xf32>,
    %c1_66 = arith.constant 1 : index
    %c0_67 = arith.constant 0 : index
    %c0_68 = arith.constant 0 : index
    %102 = vector.load %arg14[%c1_66, %c0_67, %c0_68] : memref<2x8x128xf32, #tpu.memory_space<vmem>>, vector<1x8x128xf32>
    %103 = vector.shape_cast %102 : vector<1x8x128xf32> to vector<8x128xf32>
    %104 = arith.truncf %98 : vector<8x128xf32> to vector<8x128xbf16>
    %c1_69 = arith.constant 1 : index
    %c0_70 = arith.constant 0 : index
    %c0_71 = arith.constant 0 : index
    %105 = vector.load %arg6[%c1_69, %c0_70, %c0_71] : memref<2x128x384xbf16, #tpu.memory_space<vmem>>, vector<1x128x384xbf16>
    %106 = vector.shape_cast %105 : vector<1x128x384xbf16> to vector<128x384xbf16>
    %cst_72 = arith.constant dense<0.000000e+00> : vector<8x384xf32>
    %107 = tpu.matmul %104, %106, %cst_72 {dimension_numbers = #tpu.dot_dimension_numbers<[1], [0], [0], [1], [0, 0, 1, 1], [], []>} : vector<8x128xbf16>, vector<128x384xbf16>, vector<8x384xf32> -> vector<8x384xf32>
    %108 = vector.broadcast %5 : vector<1x384xf32> to vector<8x384xf32>
    %109 = arith.addf %107, %108 : vector<8x384xf32>
    %110 = arith.truncf %103 : vector<8x128xf32> to vector<8x128xbf16>
    %c1_73 = arith.constant 1 : index
    %c0_74 = arith.constant 0 : index
    %c0_75 = arith.constant 0 : index
    %111 = vector.load %arg7[%c1_73, %c0_74, %c0_75] : memref<2x128x384xbf16, #tpu.memory_space<vmem>>, vector<1x128x384xbf16>
    %112 = vector.shape_cast %111 : vector<1x128x384xbf16> to vector<128x384xbf16>
    %cst_76 = arith.constant dense<0.000000e+00> : vector<8x384xf32>
    %113 = tpu.matmul %110, %112, %cst_76 {dimension_numbers = #tpu.dot_dimension_numbers<[1], [0], [0], [1], [0, 0, 1, 1], [], []>} : vector<8x128xbf16>, vector<128x384xbf16>, vector<8x384xf32> -> vector<8x384xf32>
    %114 = vector.broadcast %9 : vector<1x384xf32> to vector<8x384xf32>
    %115 = arith.addf %113, %114 : vector<8x384xf32>
    %116 = vector.extract_strided_slice %109 {offsets = [0, 0], sizes = [8, 128], strides = [1, 1]} : vector<8x384xf32> to vector<8x128xf32>
    %117 = vector.extract_strided_slice %115 {offsets = [0, 0], sizes = [8, 128], strides = [1, 1]} : vector<8x384xf32> to vector<8x128xf32>
    %118 = arith.addf %116, %117 : vector<8x128xf32>
    %119 = arith.negf %118 : vector<8x128xf32>
    %120 = math.exp %119 : vector<8x128xf32>
    %cst_77 = arith.constant 1.000000e+00 : f32
    %121 = vector.broadcast %cst_77 : f32 to vector<8x128xf32>
    %122 = arith.addf %121, %120 : vector<8x128xf32>
    %123 = arith.divf %121, %122 : vector<8x128xf32>
    %124 = vector.extract_strided_slice %109 {offsets = [0, 128], sizes = [8, 128], strides = [1, 1]} : vector<8x384xf32> to vector<8x128xf32>
    %125 = vector.extract_strided_slice %115 {offsets = [0, 128], sizes = [8, 128], strides = [1, 1]} : vector<8x384xf32> to vector<8x128xf32>
    %126 = arith.addf %124, %125 : vector<8x128xf32>
    %127 = arith.negf %126 : vector<8x128xf32>
    %128 = math.exp %127 : vector<8x128xf32>
    %cst_78 = arith.constant 1.000000e+00 : f32
    %129 = vector.broadcast %cst_78 : f32 to vector<8x128xf32>
    %130 = arith.addf %129, %128 : vector<8x128xf32>
    %131 = arith.divf %129, %130 : vector<8x128xf32>
    %132 = vector.extract_strided_slice %109 {offsets = [0, 256], sizes = [8, 128], strides = [1, 1]} : vector<8x384xf32> to vector<8x128xf32>
    %133 = vector.extract_strided_slice %115 {offsets = [0, 256], sizes = [8, 128], strides = [1, 1]} : vector<8x384xf32> to vector<8x128xf32>
    %134 = arith.mulf %123, %133 : vector<8x128xf32>
    %135 = arith.addf %132, %134 : vector<8x128xf32>
    %136 = math.tanh %135 : vector<8x128xf32>
    %cst_79 = arith.constant 1.000000e+00 : f32
    %137 = vector.broadcast %cst_79 : f32 to vector<8x128xf32>
    %138 = arith.subf %137, %131 : vector<8x128xf32>
    %139 = arith.mulf %138, %136 : vector<8x128xf32>
    %140 = arith.mulf %131, %103 : vector<8x128xf32>
    %141 = arith.addf %139, %140 : vector<8x128xf32>
    %c1_80 = arith.constant 1 : index
    %c0_81 = arith.constant 0 : index
    %c0_82 = arith.constant 0 : index
    %142 = vector.load %arg14[%c1_80, %c0_81, %c0_82] : memref<2x8x128xf32, #tpu.memory_space<vmem>>, vector<1x8x128xf32>
    %143 = vector.shape_cast %142 : vector<1x8x128xf32> to vector<8x128xf32>
    %144 = vector.shape_cast %141 : vector<8x128xf32> to vector<1x8x128xf32>
    tpu.vector_store %arg14[%c1_80, %c0_81, %c0_82], %144 {strides = array<i32>} : memref<2x8x128xf32, #tpu.memory_space<vmem>>, vector<1x8x128xf32>,
    %c1_83 = arith.constant 1 : index
    %c0_84 = arith.constant 0 : index
    %145 = memref.load %arg0[%c1_83, %c0_84] : memref<4x8xi32, #tpu.memory_space<smem>>
    %146 = arith.index_cast %145 : i32 to index
    %c0_85 = arith.constant 0 : index
    %c0_86 = arith.constant 0 : index
    %147 = vector.load %arg3[%146, %c0_85, %c0_86] : memref<32x1x128xf32, #tpu.memory_space<vmem>>, vector<1x1x128xf32>
    %148 = vector.shape_cast %147 : vector<1x1x128xf32> to vector<1x128xf32>
    %cst_87 = arith.constant 0.000000e+00 : f32
    %149 = vector.broadcast %cst_87 : f32 to vector<1x128xf32>
    %150 = arith.maximumf %148, %149 : vector<1x128xf32>
    %c1_88 = arith.constant 1 : index
    %c1_89 = arith.constant 1 : index
    %151 = memref.load %arg0[%c1_88, %c1_89] : memref<4x8xi32, #tpu.memory_space<smem>>
    %152 = arith.index_cast %151 : i32 to index
    %c0_90 = arith.constant 0 : index
    %c0_91 = arith.constant 0 : index
    %153 = vector.load %arg3[%152, %c0_90, %c0_91] : memref<32x1x128xf32, #tpu.memory_space<vmem>>, vector<1x1x128xf32>
    %154 = vector.shape_cast %153 : vector<1x1x128xf32> to vector<1x128xf32>
    %cst_92 = arith.constant 0.000000e+00 : f32
    %155 = vector.broadcast %cst_92 : f32 to vector<1x128xf32>
    %156 = arith.maximumf %154, %155 : vector<1x128xf32>
    %c1_93 = arith.constant 1 : index
    %c2_94 = arith.constant 2 : index
    %157 = memref.load %arg0[%c1_93, %c2_94] : memref<4x8xi32, #tpu.memory_space<smem>>
    %158 = arith.index_cast %157 : i32 to index
    %c0_95 = arith.constant 0 : index
    %c0_96 = arith.constant 0 : index
    %159 = vector.load %arg3[%158, %c0_95, %c0_96] : memref<32x1x128xf32, #tpu.memory_space<vmem>>, vector<1x1x128xf32>
    %160 = vector.shape_cast %159 : vector<1x1x128xf32> to vector<1x128xf32>
    %cst_97 = arith.constant 0.000000e+00 : f32
    %161 = vector.broadcast %cst_97 : f32 to vector<1x128xf32>
    %162 = arith.maximumf %160, %161 : vector<1x128xf32>
    %c1_98 = arith.constant 1 : index
    %c3_99 = arith.constant 3 : index
    %163 = memref.load %arg0[%c1_98, %c3_99] : memref<4x8xi32, #tpu.memory_space<smem>>
    %164 = arith.index_cast %163 : i32 to index
    %c0_100 = arith.constant 0 : index
    %c0_101 = arith.constant 0 : index
    %165 = vector.load %arg3[%164, %c0_100, %c0_101] : memref<32x1x128xf32, #tpu.memory_space<vmem>>, vector<1x1x128xf32>
    %166 = vector.shape_cast %165 : vector<1x1x128xf32> to vector<1x128xf32>
    %cst_102 = arith.constant 0.000000e+00 : f32
    %167 = vector.broadcast %cst_102 : f32 to vector<1x128xf32>
    %168 = arith.maximumf %166, %167 : vector<1x128xf32>
    %c1_103 = arith.constant 1 : index
    %c4_104 = arith.constant 4 : index
    %169 = memref.load %arg0[%c1_103, %c4_104] : memref<4x8xi32, #tpu.memory_space<smem>>
    %170 = arith.index_cast %169 : i32 to index
    %c0_105 = arith.constant 0 : index
    %c0_106 = arith.constant 0 : index
    %171 = vector.load %arg3[%170, %c0_105, %c0_106] : memref<32x1x128xf32, #tpu.memory_space<vmem>>, vector<1x1x128xf32>
    %172 = vector.shape_cast %171 : vector<1x1x128xf32> to vector<1x128xf32>
    %cst_107 = arith.constant 0.000000e+00 : f32
    %173 = vector.broadcast %cst_107 : f32 to vector<1x128xf32>
    %174 = arith.maximumf %172, %173 : vector<1x128xf32>
    %c1_108 = arith.constant 1 : index
    %c5_109 = arith.constant 5 : index
    %175 = memref.load %arg0[%c1_108, %c5_109] : memref<4x8xi32, #tpu.memory_space<smem>>
    %176 = arith.index_cast %175 : i32 to index
    %c0_110 = arith.constant 0 : index
    %c0_111 = arith.constant 0 : index
    %177 = vector.load %arg3[%176, %c0_110, %c0_111] : memref<32x1x128xf32, #tpu.memory_space<vmem>>, vector<1x1x128xf32>
    %178 = vector.shape_cast %177 : vector<1x1x128xf32> to vector<1x128xf32>
    %cst_112 = arith.constant 0.000000e+00 : f32
    %179 = vector.broadcast %cst_112 : f32 to vector<1x128xf32>
    %180 = arith.maximumf %178, %179 : vector<1x128xf32>
    %c1_113 = arith.constant 1 : index
    %c6_114 = arith.constant 6 : index
    %181 = memref.load %arg0[%c1_113, %c6_114] : memref<4x8xi32, #tpu.memory_space<smem>>
    %182 = arith.index_cast %181 : i32 to index
    %c0_115 = arith.constant 0 : index
    %c0_116 = arith.constant 0 : index
    %183 = vector.load %arg3[%182, %c0_115, %c0_116] : memref<32x1x128xf32, #tpu.memory_space<vmem>>, vector<1x1x128xf32>
    %184 = vector.shape_cast %183 : vector<1x1x128xf32> to vector<1x128xf32>
    %cst_117 = arith.constant 0.000000e+00 : f32
    %185 = vector.broadcast %cst_117 : f32 to vector<1x128xf32>
    %186 = arith.maximumf %184, %185 : vector<1x128xf32>
    %c1_118 = arith.constant 1 : index
    %c7_119 = arith.constant 7 : index
    %187 = memref.load %arg0[%c1_118, %c7_119] : memref<4x8xi32, #tpu.memory_space<smem>>
    %188 = arith.index_cast %187 : i32 to index
    %c0_120 = arith.constant 0 : index
    %c0_121 = arith.constant 0 : index
    %189 = vector.load %arg3[%188, %c0_120, %c0_121] : memref<32x1x128xf32, #tpu.memory_space<vmem>>, vector<1x1x128xf32>
    %190 = vector.shape_cast %189 : vector<1x1x128xf32> to vector<1x128xf32>
    %cst_122 = arith.constant 0.000000e+00 : f32
    %191 = vector.broadcast %cst_122 : f32 to vector<1x128xf32>
    %192 = arith.maximumf %190, %191 : vector<1x128xf32>
    %193 = tpu.concatenate %150, %156, %162, %168, %174, %180, %186, %192 in 0 : vector<1x128xf32>, vector<1x128xf32>, vector<1x128xf32>, vector<1x128xf32>, vector<1x128xf32>, vector<1x128xf32>, vector<1x128xf32>, vector<1x128xf32> -> vector<8x128xf32>
    %c0_123 = arith.constant 0 : index
    %c0_124 = arith.constant 0 : index
    %c0_125 = arith.constant 0 : index
    %194 = vector.load %arg14[%c0_123, %c0_124, %c0_125] : memref<2x8x128xf32, #tpu.memory_space<vmem>>, vector<1x8x128xf32>
    %195 = vector.shape_cast %194 : vector<1x8x128xf32> to vector<8x128xf32>
    %196 = arith.truncf %193 : vector<8x128xf32> to vector<8x128xbf16>
    %c0_126 = arith.constant 0 : index
    %c0_127 = arith.constant 0 : index
    %c0_128 = arith.constant 0 : index
    %197 = vector.load %arg6[%c0_126, %c0_127, %c0_128] : memref<2x128x384xbf16, #tpu.memory_space<vmem>>, vector<1x128x384xbf16>
    %198 = vector.shape_cast %197 : vector<1x128x384xbf16> to vector<128x384xbf16>
    %cst_129 = arith.constant dense<0.000000e+00> : vector<8x384xf32>
    %199 = tpu.matmul %196, %198, %cst_129 {dimension_numbers = #tpu.dot_dimension_numbers<[1], [0], [0], [1], [0, 0, 1, 1], [], []>} : vector<8x128xbf16>, vector<128x384xbf16>, vector<8x384xf32> -> vector<8x384xf32>
    %200 = vector.broadcast %3 : vector<1x384xf32> to vector<8x384xf32>
    %201 = arith.addf %199, %200 : vector<8x384xf32>
    %202 = arith.truncf %195 : vector<8x128xf32> to vector<8x128xbf16>
    %c0_130 = arith.constant 0 : index
    %c0_131 = arith.constant 0 : index
    %c0_132 = arith.constant 0 : index
    %203 = vector.load %arg7[%c0_130, %c0_131, %c0_132] : memref<2x128x384xbf16, #tpu.memory_space<vmem>>, vector<1x128x384xbf16>
    %204 = vector.shape_cast %203 : vector<1x128x384xbf16> to vector<128x384xbf16>
    %cst_133 = arith.constant dense<0.000000e+00> : vector<8x384xf32>
    %205 = tpu.matmul %202, %204, %cst_133 {dimension_numbers = #tpu.dot_dimension_numbers<[1], [0], [0], [1], [0, 0, 1, 1], [], []>} : vector<8x128xbf16>, vector<128x384xbf16>, vector<8x384xf32> -> vector<8x384xf32>
    %206 = vector.broadcast %7 : vector<1x384xf32> to vector<8x384xf32>
    %207 = arith.addf %205, %206 : vector<8x384xf32>
    %208 = vector.extract_strided_slice %201 {offsets = [0, 0], sizes = [8, 128], strides = [1, 1]} : vector<8x384xf32> to vector<8x128xf32>
    %209 = vector.extract_strided_slice %207 {offsets = [0, 0], sizes = [8, 128], strides = [1, 1]} : vector<8x384xf32> to vector<8x128xf32>
    %210 = arith.addf %208, %209 : vector<8x128xf32>
    %211 = arith.negf %210 : vector<8x128xf32>
    %212 = math.exp %211 : vector<8x128xf32>
    %cst_134 = arith.constant 1.000000e+00 : f32
    %213 = vector.broadcast %cst_134 : f32 to vector<8x128xf32>
    %214 = arith.addf %213, %212 : vector<8x128xf32>
    %215 = arith.divf %213, %214 : vector<8x128xf32>
    %216 = vector.extract_strided_slice %201 {offsets = [0, 128], sizes = [8, 128], strides = [1, 1]} : vector<8x384xf32> to vector<8x128xf32>
    %217 = vector.extract_strided_slice %207 {offsets = [0, 128], sizes = [8, 128], strides = [1, 1]} : vector<8x384xf32> to vector<8x128xf32>
    %218 = arith.addf %216, %217 : vector<8x128xf32>
    %219 = arith.negf %218 : vector<8x128xf32>
    %220 = math.exp %219 : vector<8x128xf32>
    %cst_135 = arith.constant 1.000000e+00 : f32
    %221 = vector.broadcast %cst_135 : f32 to vector<8x128xf32>
    %222 = arith.addf %221, %220 : vector<8x128xf32>
    %223 = arith.divf %221, %222 : vector<8x128xf32>
    %224 = vector.extract_strided_slice %201 {offsets = [0, 256], sizes = [8, 128], strides = [1, 1]} : vector<8x384xf32> to vector<8x128xf32>
    %225 = vector.extract_strided_slice %207 {offsets = [0, 256], sizes = [8, 128], strides = [1, 1]} : vector<8x384xf32> to vector<8x128xf32>
    %226 = arith.mulf %215, %225 : vector<8x128xf32>
    %227 = arith.addf %224, %226 : vector<8x128xf32>
    %228 = math.tanh %227 : vector<8x128xf32>
    %cst_136 = arith.constant 1.000000e+00 : f32
    %229 = vector.broadcast %cst_136 : f32 to vector<8x128xf32>
    %230 = arith.subf %229, %223 : vector<8x128xf32>
    %231 = arith.mulf %230, %228 : vector<8x128xf32>
    %232 = arith.mulf %223, %195 : vector<8x128xf32>
    %233 = arith.addf %231, %232 : vector<8x128xf32>
    %c0_137 = arith.constant 0 : index
    %c0_138 = arith.constant 0 : index
    %c0_139 = arith.constant 0 : index
    %234 = vector.load %arg14[%c0_137, %c0_138, %c0_139] : memref<2x8x128xf32, #tpu.memory_space<vmem>>, vector<1x8x128xf32>
    %235 = vector.shape_cast %234 : vector<1x8x128xf32> to vector<8x128xf32>
    %236 = vector.shape_cast %233 : vector<8x128xf32> to vector<1x8x128xf32>
    tpu.vector_store %arg14[%c0_137, %c0_138, %c0_139], %236 {strides = array<i32>} : memref<2x8x128xf32, #tpu.memory_space<vmem>>, vector<1x8x128xf32>,
    %c1_140 = arith.constant 1 : index
    %c0_141 = arith.constant 0 : index
    %c0_142 = arith.constant 0 : index
    %237 = vector.load %arg14[%c1_140, %c0_141, %c0_142] : memref<2x8x128xf32, #tpu.memory_space<vmem>>, vector<1x8x128xf32>
    %238 = vector.shape_cast %237 : vector<1x8x128xf32> to vector<8x128xf32>
    %239 = arith.truncf %233 : vector<8x128xf32> to vector<8x128xbf16>
    %c1_143 = arith.constant 1 : index
    %c0_144 = arith.constant 0 : index
    %c0_145 = arith.constant 0 : index
    %240 = vector.load %arg6[%c1_143, %c0_144, %c0_145] : memref<2x128x384xbf16, #tpu.memory_space<vmem>>, vector<1x128x384xbf16>
    %241 = vector.shape_cast %240 : vector<1x128x384xbf16> to vector<128x384xbf16>
    %cst_146 = arith.constant dense<0.000000e+00> : vector<8x384xf32>
    %242 = tpu.matmul %239, %241, %cst_146 {dimension_numbers = #tpu.dot_dimension_numbers<[1], [0], [0], [1], [0, 0, 1, 1], [], []>} : vector<8x128xbf16>, vector<128x384xbf16>, vector<8x384xf32> -> vector<8x384xf32>
    %243 = vector.broadcast %5 : vector<1x384xf32> to vector<8x384xf32>
    %244 = arith.addf %242, %243 : vector<8x384xf32>
    %245 = arith.truncf %238 : vector<8x128xf32> to vector<8x128xbf16>
    %c1_147 = arith.constant 1 : index
    %c0_148 = arith.constant 0 : index
    %c0_149 = arith.constant 0 : index
    %246 = vector.load %arg7[%c1_147, %c0_148, %c0_149] : memref<2x128x384xbf16, #tpu.memory_space<vmem>>, vector<1x128x384xbf16>
    %247 = vector.shape_cast %246 : vector<1x128x384xbf16> to vector<128x384xbf16>
    %cst_150 = arith.constant dense<0.000000e+00> : vector<8x384xf32>
    %248 = tpu.matmul %245, %247, %cst_150 {dimension_numbers = #tpu.dot_dimension_numbers<[1], [0], [0], [1], [0, 0, 1, 1], [], []>} : vector<8x128xbf16>, vector<128x384xbf16>, vector<8x384xf32> -> vector<8x384xf32>
    %249 = vector.broadcast %9 : vector<1x384xf32> to vector<8x384xf32>
    %250 = arith.addf %248, %249 : vector<8x384xf32>
    %251 = vector.extract_strided_slice %244 {offsets = [0, 0], sizes = [8, 128], strides = [1, 1]} : vector<8x384xf32> to vector<8x128xf32>
    %252 = vector.extract_strided_slice %250 {offsets = [0, 0], sizes = [8, 128], strides = [1, 1]} : vector<8x384xf32> to vector<8x128xf32>
    %253 = arith.addf %251, %252 : vector<8x128xf32>
    %254 = arith.negf %253 : vector<8x128xf32>
    %255 = math.exp %254 : vector<8x128xf32>
    %cst_151 = arith.constant 1.000000e+00 : f32
    %256 = vector.broadcast %cst_151 : f32 to vector<8x128xf32>
    %257 = arith.addf %256, %255 : vector<8x128xf32>
    %258 = arith.divf %256, %257 : vector<8x128xf32>
    %259 = vector.extract_strided_slice %244 {offsets = [0, 128], sizes = [8, 128], strides = [1, 1]} : vector<8x384xf32> to vector<8x128xf32>
    %260 = vector.extract_strided_slice %250 {offsets = [0, 128], sizes = [8, 128], strides = [1, 1]} : vector<8x384xf32> to vector<8x128xf32>
    %261 = arith.addf %259, %260 : vector<8x128xf32>
    %262 = arith.negf %261 : vector<8x128xf32>
    %263 = math.exp %262 : vector<8x128xf32>
    %cst_152 = arith.constant 1.000000e+00 : f32
    %264 = vector.broadcast %cst_152 : f32 to vector<8x128xf32>
    %265 = arith.addf %264, %263 : vector<8x128xf32>
    %266 = arith.divf %264, %265 : vector<8x128xf32>
    %267 = vector.extract_strided_slice %244 {offsets = [0, 256], sizes = [8, 128], strides = [1, 1]} : vector<8x384xf32> to vector<8x128xf32>
    %268 = vector.extract_strided_slice %250 {offsets = [0, 256], sizes = [8, 128], strides = [1, 1]} : vector<8x384xf32> to vector<8x128xf32>
    %269 = arith.mulf %258, %268 : vector<8x128xf32>
    %270 = arith.addf %267, %269 : vector<8x128xf32>
    %271 = math.tanh %270 : vector<8x128xf32>
    %cst_153 = arith.constant 1.000000e+00 : f32
    %272 = vector.broadcast %cst_153 : f32 to vector<8x128xf32>
    %273 = arith.subf %272, %266 : vector<8x128xf32>
    %274 = arith.mulf %273, %271 : vector<8x128xf32>
    %275 = arith.mulf %266, %238 : vector<8x128xf32>
    %276 = arith.addf %274, %275 : vector<8x128xf32>
    %c1_154 = arith.constant 1 : index
    %c0_155 = arith.constant 0 : index
    %c0_156 = arith.constant 0 : index
    %277 = vector.load %arg14[%c1_154, %c0_155, %c0_156] : memref<2x8x128xf32, #tpu.memory_space<vmem>>, vector<1x8x128xf32>
    %278 = vector.shape_cast %277 : vector<1x8x128xf32> to vector<8x128xf32>
    %279 = vector.shape_cast %276 : vector<8x128xf32> to vector<1x8x128xf32>
    tpu.vector_store %arg14[%c1_154, %c0_155, %c0_156], %279 {strides = array<i32>} : memref<2x8x128xf32, #tpu.memory_space<vmem>>, vector<1x8x128xf32>,
    %c2_157 = arith.constant 2 : index
    %c0_158 = arith.constant 0 : index
    %280 = memref.load %arg0[%c2_157, %c0_158] : memref<4x8xi32, #tpu.memory_space<smem>>
    %281 = arith.index_cast %280 : i32 to index
    %c0_159 = arith.constant 0 : index
    %c0_160 = arith.constant 0 : index
    %282 = vector.load %arg3[%281, %c0_159, %c0_160] : memref<32x1x128xf32, #tpu.memory_space<vmem>>, vector<1x1x128xf32>
    %283 = vector.shape_cast %282 : vector<1x1x128xf32> to vector<1x128xf32>
    %cst_161 = arith.constant 0.000000e+00 : f32
    %284 = vector.broadcast %cst_161 : f32 to vector<1x128xf32>
    %285 = arith.maximumf %283, %284 : vector<1x128xf32>
    %c2_162 = arith.constant 2 : index
    %c1_163 = arith.constant 1 : index
    %286 = memref.load %arg0[%c2_162, %c1_163] : memref<4x8xi32, #tpu.memory_space<smem>>
    %287 = arith.index_cast %286 : i32 to index
    %c0_164 = arith.constant 0 : index
    %c0_165 = arith.constant 0 : index
    %288 = vector.load %arg3[%287, %c0_164, %c0_165] : memref<32x1x128xf32, #tpu.memory_space<vmem>>, vector<1x1x128xf32>
    %289 = vector.shape_cast %288 : vector<1x1x128xf32> to vector<1x128xf32>
    %cst_166 = arith.constant 0.000000e+00 : f32
    %290 = vector.broadcast %cst_166 : f32 to vector<1x128xf32>
    %291 = arith.maximumf %289, %290 : vector<1x128xf32>
    %c2_167 = arith.constant 2 : index
    %c2_168 = arith.constant 2 : index
    %292 = memref.load %arg0[%c2_167, %c2_168] : memref<4x8xi32, #tpu.memory_space<smem>>
    %293 = arith.index_cast %292 : i32 to index
    %c0_169 = arith.constant 0 : index
    %c0_170 = arith.constant 0 : index
    %294 = vector.load %arg3[%293, %c0_169, %c0_170] : memref<32x1x128xf32, #tpu.memory_space<vmem>>, vector<1x1x128xf32>
    %295 = vector.shape_cast %294 : vector<1x1x128xf32> to vector<1x128xf32>
    %cst_171 = arith.constant 0.000000e+00 : f32
    %296 = vector.broadcast %cst_171 : f32 to vector<1x128xf32>
    %297 = arith.maximumf %295, %296 : vector<1x128xf32>
    %c2_172 = arith.constant 2 : index
    %c3_173 = arith.constant 3 : index
    %298 = memref.load %arg0[%c2_172, %c3_173] : memref<4x8xi32, #tpu.memory_space<smem>>
    %299 = arith.index_cast %298 : i32 to index
    %c0_174 = arith.constant 0 : index
    %c0_175 = arith.constant 0 : index
    %300 = vector.load %arg3[%299, %c0_174, %c0_175] : memref<32x1x128xf32, #tpu.memory_space<vmem>>, vector<1x1x128xf32>
    %301 = vector.shape_cast %300 : vector<1x1x128xf32> to vector<1x128xf32>
    %cst_176 = arith.constant 0.000000e+00 : f32
    %302 = vector.broadcast %cst_176 : f32 to vector<1x128xf32>
    %303 = arith.maximumf %301, %302 : vector<1x128xf32>
    %c2_177 = arith.constant 2 : index
    %c4_178 = arith.constant 4 : index
    %304 = memref.load %arg0[%c2_177, %c4_178] : memref<4x8xi32, #tpu.memory_space<smem>>
    %305 = arith.index_cast %304 : i32 to index
    %c0_179 = arith.constant 0 : index
    %c0_180 = arith.constant 0 : index
    %306 = vector.load %arg3[%305, %c0_179, %c0_180] : memref<32x1x128xf32, #tpu.memory_space<vmem>>, vector<1x1x128xf32>
    %307 = vector.shape_cast %306 : vector<1x1x128xf32> to vector<1x128xf32>
    %cst_181 = arith.constant 0.000000e+00 : f32
    %308 = vector.broadcast %cst_181 : f32 to vector<1x128xf32>
    %309 = arith.maximumf %307, %308 : vector<1x128xf32>
    %c2_182 = arith.constant 2 : index
    %c5_183 = arith.constant 5 : index
    %310 = memref.load %arg0[%c2_182, %c5_183] : memref<4x8xi32, #tpu.memory_space<smem>>
    %311 = arith.index_cast %310 : i32 to index
    %c0_184 = arith.constant 0 : index
    %c0_185 = arith.constant 0 : index
    %312 = vector.load %arg3[%311, %c0_184, %c0_185] : memref<32x1x128xf32, #tpu.memory_space<vmem>>, vector<1x1x128xf32>
    %313 = vector.shape_cast %312 : vector<1x1x128xf32> to vector<1x128xf32>
    %cst_186 = arith.constant 0.000000e+00 : f32
    %314 = vector.broadcast %cst_186 : f32 to vector<1x128xf32>
    %315 = arith.maximumf %313, %314 : vector<1x128xf32>
    %c2_187 = arith.constant 2 : index
    %c6_188 = arith.constant 6 : index
    %316 = memref.load %arg0[%c2_187, %c6_188] : memref<4x8xi32, #tpu.memory_space<smem>>
    %317 = arith.index_cast %316 : i32 to index
    %c0_189 = arith.constant 0 : index
    %c0_190 = arith.constant 0 : index
    %318 = vector.load %arg3[%317, %c0_189, %c0_190] : memref<32x1x128xf32, #tpu.memory_space<vmem>>, vector<1x1x128xf32>
    %319 = vector.shape_cast %318 : vector<1x1x128xf32> to vector<1x128xf32>
    %cst_191 = arith.constant 0.000000e+00 : f32
    %320 = vector.broadcast %cst_191 : f32 to vector<1x128xf32>
    %321 = arith.maximumf %319, %320 : vector<1x128xf32>
    %c2_192 = arith.constant 2 : index
    %c7_193 = arith.constant 7 : index
    %322 = memref.load %arg0[%c2_192, %c7_193] : memref<4x8xi32, #tpu.memory_space<smem>>
    %323 = arith.index_cast %322 : i32 to index
    %c0_194 = arith.constant 0 : index
    %c0_195 = arith.constant 0 : index
    %324 = vector.load %arg3[%323, %c0_194, %c0_195] : memref<32x1x128xf32, #tpu.memory_space<vmem>>, vector<1x1x128xf32>
    %325 = vector.shape_cast %324 : vector<1x1x128xf32> to vector<1x128xf32>
    %cst_196 = arith.constant 0.000000e+00 : f32
    %326 = vector.broadcast %cst_196 : f32 to vector<1x128xf32>
    %327 = arith.maximumf %325, %326 : vector<1x128xf32>
    %328 = tpu.concatenate %285, %291, %297, %303, %309, %315, %321, %327 in 0 : vector<1x128xf32>, vector<1x128xf32>, vector<1x128xf32>, vector<1x128xf32>, vector<1x128xf32>, vector<1x128xf32>, vector<1x128xf32>, vector<1x128xf32> -> vector<8x128xf32>
    %c0_197 = arith.constant 0 : index
    %c0_198 = arith.constant 0 : index
    %c0_199 = arith.constant 0 : index
    %329 = vector.load %arg14[%c0_197, %c0_198, %c0_199] : memref<2x8x128xf32, #tpu.memory_space<vmem>>, vector<1x8x128xf32>
    %330 = vector.shape_cast %329 : vector<1x8x128xf32> to vector<8x128xf32>
    %331 = arith.truncf %328 : vector<8x128xf32> to vector<8x128xbf16>
    %c0_200 = arith.constant 0 : index
    %c0_201 = arith.constant 0 : index
    %c0_202 = arith.constant 0 : index
    %332 = vector.load %arg6[%c0_200, %c0_201, %c0_202] : memref<2x128x384xbf16, #tpu.memory_space<vmem>>, vector<1x128x384xbf16>
    %333 = vector.shape_cast %332 : vector<1x128x384xbf16> to vector<128x384xbf16>
    %cst_203 = arith.constant dense<0.000000e+00> : vector<8x384xf32>
    %334 = tpu.matmul %331, %333, %cst_203 {dimension_numbers = #tpu.dot_dimension_numbers<[1], [0], [0], [1], [0, 0, 1, 1], [], []>} : vector<8x128xbf16>, vector<128x384xbf16>, vector<8x384xf32> -> vector<8x384xf32>
    %335 = vector.broadcast %3 : vector<1x384xf32> to vector<8x384xf32>
    %336 = arith.addf %334, %335 : vector<8x384xf32>
    %337 = arith.truncf %330 : vector<8x128xf32> to vector<8x128xbf16>
    %c0_204 = arith.constant 0 : index
    %c0_205 = arith.constant 0 : index
    %c0_206 = arith.constant 0 : index
    %338 = vector.load %arg7[%c0_204, %c0_205, %c0_206] : memref<2x128x384xbf16, #tpu.memory_space<vmem>>, vector<1x128x384xbf16>
    %339 = vector.shape_cast %338 : vector<1x128x384xbf16> to vector<128x384xbf16>
    %cst_207 = arith.constant dense<0.000000e+00> : vector<8x384xf32>
    %340 = tpu.matmul %337, %339, %cst_207 {dimension_numbers = #tpu.dot_dimension_numbers<[1], [0], [0], [1], [0, 0, 1, 1], [], []>} : vector<8x128xbf16>, vector<128x384xbf16>, vector<8x384xf32> -> vector<8x384xf32>
    %341 = vector.broadcast %7 : vector<1x384xf32> to vector<8x384xf32>
    %342 = arith.addf %340, %341 : vector<8x384xf32>
    %343 = vector.extract_strided_slice %336 {offsets = [0, 0], sizes = [8, 128], strides = [1, 1]} : vector<8x384xf32> to vector<8x128xf32>
    %344 = vector.extract_strided_slice %342 {offsets = [0, 0], sizes = [8, 128], strides = [1, 1]} : vector<8x384xf32> to vector<8x128xf32>
    %345 = arith.addf %343, %344 : vector<8x128xf32>
    %346 = arith.negf %345 : vector<8x128xf32>
    %347 = math.exp %346 : vector<8x128xf32>
    %cst_208 = arith.constant 1.000000e+00 : f32
    %348 = vector.broadcast %cst_208 : f32 to vector<8x128xf32>
    %349 = arith.addf %348, %347 : vector<8x128xf32>
    %350 = arith.divf %348, %349 : vector<8x128xf32>
    %351 = vector.extract_strided_slice %336 {offsets = [0, 128], sizes = [8, 128], strides = [1, 1]} : vector<8x384xf32> to vector<8x128xf32>
    %352 = vector.extract_strided_slice %342 {offsets = [0, 128], sizes = [8, 128], strides = [1, 1]} : vector<8x384xf32> to vector<8x128xf32>
    %353 = arith.addf %351, %352 : vector<8x128xf32>
    %354 = arith.negf %353 : vector<8x128xf32>
    %355 = math.exp %354 : vector<8x128xf32>
    %cst_209 = arith.constant 1.000000e+00 : f32
    %356 = vector.broadcast %cst_209 : f32 to vector<8x128xf32>
    %357 = arith.addf %356, %355 : vector<8x128xf32>
    %358 = arith.divf %356, %357 : vector<8x128xf32>
    %359 = vector.extract_strided_slice %336 {offsets = [0, 256], sizes = [8, 128], strides = [1, 1]} : vector<8x384xf32> to vector<8x128xf32>
    %360 = vector.extract_strided_slice %342 {offsets = [0, 256], sizes = [8, 128], strides = [1, 1]} : vector<8x384xf32> to vector<8x128xf32>
    %361 = arith.mulf %350, %360 : vector<8x128xf32>
    %362 = arith.addf %359, %361 : vector<8x128xf32>
    %363 = math.tanh %362 : vector<8x128xf32>
    %cst_210 = arith.constant 1.000000e+00 : f32
    %364 = vector.broadcast %cst_210 : f32 to vector<8x128xf32>
    %365 = arith.subf %364, %358 : vector<8x128xf32>
    %366 = arith.mulf %365, %363 : vector<8x128xf32>
    %367 = arith.mulf %358, %330 : vector<8x128xf32>
    %368 = arith.addf %366, %367 : vector<8x128xf32>
    %c0_211 = arith.constant 0 : index
    %c0_212 = arith.constant 0 : index
    %c0_213 = arith.constant 0 : index
    %369 = vector.load %arg14[%c0_211, %c0_212, %c0_213] : memref<2x8x128xf32, #tpu.memory_space<vmem>>, vector<1x8x128xf32>
    %370 = vector.shape_cast %369 : vector<1x8x128xf32> to vector<8x128xf32>
    %371 = vector.shape_cast %368 : vector<8x128xf32> to vector<1x8x128xf32>
    tpu.vector_store %arg14[%c0_211, %c0_212, %c0_213], %371 {strides = array<i32>} : memref<2x8x128xf32, #tpu.memory_space<vmem>>, vector<1x8x128xf32>,
    %c1_214 = arith.constant 1 : index
    %c0_215 = arith.constant 0 : index
    %c0_216 = arith.constant 0 : index
    %372 = vector.load %arg14[%c1_214, %c0_215, %c0_216] : memref<2x8x128xf32, #tpu.memory_space<vmem>>, vector<1x8x128xf32>
    %373 = vector.shape_cast %372 : vector<1x8x128xf32> to vector<8x128xf32>
    %374 = arith.truncf %368 : vector<8x128xf32> to vector<8x128xbf16>
    %c1_217 = arith.constant 1 : index
    %c0_218 = arith.constant 0 : index
    %c0_219 = arith.constant 0 : index
    %375 = vector.load %arg6[%c1_217, %c0_218, %c0_219] : memref<2x128x384xbf16, #tpu.memory_space<vmem>>, vector<1x128x384xbf16>
    %376 = vector.shape_cast %375 : vector<1x128x384xbf16> to vector<128x384xbf16>
    %cst_220 = arith.constant dense<0.000000e+00> : vector<8x384xf32>
    %377 = tpu.matmul %374, %376, %cst_220 {dimension_numbers = #tpu.dot_dimension_numbers<[1], [0], [0], [1], [0, 0, 1, 1], [], []>} : vector<8x128xbf16>, vector<128x384xbf16>, vector<8x384xf32> -> vector<8x384xf32>
    %378 = vector.broadcast %5 : vector<1x384xf32> to vector<8x384xf32>
    %379 = arith.addf %377, %378 : vector<8x384xf32>
    %380 = arith.truncf %373 : vector<8x128xf32> to vector<8x128xbf16>
    %c1_221 = arith.constant 1 : index
    %c0_222 = arith.constant 0 : index
    %c0_223 = arith.constant 0 : index
    %381 = vector.load %arg7[%c1_221, %c0_222, %c0_223] : memref<2x128x384xbf16, #tpu.memory_space<vmem>>, vector<1x128x384xbf16>
    %382 = vector.shape_cast %381 : vector<1x128x384xbf16> to vector<128x384xbf16>
    %cst_224 = arith.constant dense<0.000000e+00> : vector<8x384xf32>
    %383 = tpu.matmul %380, %382, %cst_224 {dimension_numbers = #tpu.dot_dimension_numbers<[1], [0], [0], [1], [0, 0, 1, 1], [], []>} : vector<8x128xbf16>, vector<128x384xbf16>, vector<8x384xf32> -> vector<8x384xf32>
    %384 = vector.broadcast %9 : vector<1x384xf32> to vector<8x384xf32>
    %385 = arith.addf %383, %384 : vector<8x384xf32>
    %386 = vector.extract_strided_slice %379 {offsets = [0, 0], sizes = [8, 128], strides = [1, 1]} : vector<8x384xf32> to vector<8x128xf32>
    %387 = vector.extract_strided_slice %385 {offsets = [0, 0], sizes = [8, 128], strides = [1, 1]} : vector<8x384xf32> to vector<8x128xf32>
    %388 = arith.addf %386, %387 : vector<8x128xf32>
    %389 = arith.negf %388 : vector<8x128xf32>
    %390 = math.exp %389 : vector<8x128xf32>
    %cst_225 = arith.constant 1.000000e+00 : f32
    %391 = vector.broadcast %cst_225 : f32 to vector<8x128xf32>
    %392 = arith.addf %391, %390 : vector<8x128xf32>
    %393 = arith.divf %391, %392 : vector<8x128xf32>
    %394 = vector.extract_strided_slice %379 {offsets = [0, 128], sizes = [8, 128], strides = [1, 1]} : vector<8x384xf32> to vector<8x128xf32>
    %395 = vector.extract_strided_slice %385 {offsets = [0, 128], sizes = [8, 128], strides = [1, 1]} : vector<8x384xf32> to vector<8x128xf32>
    %396 = arith.addf %394, %395 : vector<8x128xf32>
    %397 = arith.negf %396 : vector<8x128xf32>
    %398 = math.exp %397 : vector<8x128xf32>
    %cst_226 = arith.constant 1.000000e+00 : f32
    %399 = vector.broadcast %cst_226 : f32 to vector<8x128xf32>
    %400 = arith.addf %399, %398 : vector<8x128xf32>
    %401 = arith.divf %399, %400 : vector<8x128xf32>
    %402 = vector.extract_strided_slice %379 {offsets = [0, 256], sizes = [8, 128], strides = [1, 1]} : vector<8x384xf32> to vector<8x128xf32>
    %403 = vector.extract_strided_slice %385 {offsets = [0, 256], sizes = [8, 128], strides = [1, 1]} : vector<8x384xf32> to vector<8x128xf32>
    %404 = arith.mulf %393, %403 : vector<8x128xf32>
    %405 = arith.addf %402, %404 : vector<8x128xf32>
    %406 = math.tanh %405 : vector<8x128xf32>
    %cst_227 = arith.constant 1.000000e+00 : f32
    %407 = vector.broadcast %cst_227 : f32 to vector<8x128xf32>
    %408 = arith.subf %407, %401 : vector<8x128xf32>
    %409 = arith.mulf %408, %406 : vector<8x128xf32>
    %410 = arith.mulf %401, %373 : vector<8x128xf32>
    %411 = arith.addf %409, %410 : vector<8x128xf32>
    %c1_228 = arith.constant 1 : index
    %c0_229 = arith.constant 0 : index
    %c0_230 = arith.constant 0 : index
    %412 = vector.load %arg14[%c1_228, %c0_229, %c0_230] : memref<2x8x128xf32, #tpu.memory_space<vmem>>, vector<1x8x128xf32>
    %413 = vector.shape_cast %412 : vector<1x8x128xf32> to vector<8x128xf32>
    %414 = vector.shape_cast %411 : vector<8x128xf32> to vector<1x8x128xf32>
    tpu.vector_store %arg14[%c1_228, %c0_229, %c0_230], %414 {strides = array<i32>} : memref<2x8x128xf32, #tpu.memory_space<vmem>>, vector<1x8x128xf32>,
    %c3_231 = arith.constant 3 : index
    %c0_232 = arith.constant 0 : index
    %415 = memref.load %arg0[%c3_231, %c0_232] : memref<4x8xi32, #tpu.memory_space<smem>>
    %416 = arith.index_cast %415 : i32 to index
    %c0_233 = arith.constant 0 : index
    %c0_234 = arith.constant 0 : index
    %417 = vector.load %arg3[%416, %c0_233, %c0_234] : memref<32x1x128xf32, #tpu.memory_space<vmem>>, vector<1x1x128xf32>
    %418 = vector.shape_cast %417 : vector<1x1x128xf32> to vector<1x128xf32>
    %cst_235 = arith.constant 0.000000e+00 : f32
    %419 = vector.broadcast %cst_235 : f32 to vector<1x128xf32>
    %420 = arith.maximumf %418, %419 : vector<1x128xf32>
    %c3_236 = arith.constant 3 : index
    %c1_237 = arith.constant 1 : index
    %421 = memref.load %arg0[%c3_236, %c1_237] : memref<4x8xi32, #tpu.memory_space<smem>>
    %422 = arith.index_cast %421 : i32 to index
    %c0_238 = arith.constant 0 : index
    %c0_239 = arith.constant 0 : index
    %423 = vector.load %arg3[%422, %c0_238, %c0_239] : memref<32x1x128xf32, #tpu.memory_space<vmem>>, vector<1x1x128xf32>
    %424 = vector.shape_cast %423 : vector<1x1x128xf32> to vector<1x128xf32>
    %cst_240 = arith.constant 0.000000e+00 : f32
    %425 = vector.broadcast %cst_240 : f32 to vector<1x128xf32>
    %426 = arith.maximumf %424, %425 : vector<1x128xf32>
    %c3_241 = arith.constant 3 : index
    %c2_242 = arith.constant 2 : index
    %427 = memref.load %arg0[%c3_241, %c2_242] : memref<4x8xi32, #tpu.memory_space<smem>>
    %428 = arith.index_cast %427 : i32 to index
    %c0_243 = arith.constant 0 : index
    %c0_244 = arith.constant 0 : index
    %429 = vector.load %arg3[%428, %c0_243, %c0_244] : memref<32x1x128xf32, #tpu.memory_space<vmem>>, vector<1x1x128xf32>
    %430 = vector.shape_cast %429 : vector<1x1x128xf32> to vector<1x128xf32>
    %cst_245 = arith.constant 0.000000e+00 : f32
    %431 = vector.broadcast %cst_245 : f32 to vector<1x128xf32>
    %432 = arith.maximumf %430, %431 : vector<1x128xf32>
    %c3_246 = arith.constant 3 : index
    %c3_247 = arith.constant 3 : index
    %433 = memref.load %arg0[%c3_246, %c3_247] : memref<4x8xi32, #tpu.memory_space<smem>>
    %434 = arith.index_cast %433 : i32 to index
    %c0_248 = arith.constant 0 : index
    %c0_249 = arith.constant 0 : index
    %435 = vector.load %arg3[%434, %c0_248, %c0_249] : memref<32x1x128xf32, #tpu.memory_space<vmem>>, vector<1x1x128xf32>
    %436 = vector.shape_cast %435 : vector<1x1x128xf32> to vector<1x128xf32>
    %cst_250 = arith.constant 0.000000e+00 : f32
    %437 = vector.broadcast %cst_250 : f32 to vector<1x128xf32>
    %438 = arith.maximumf %436, %437 : vector<1x128xf32>
    %c3_251 = arith.constant 3 : index
    %c4_252 = arith.constant 4 : index
    %439 = memref.load %arg0[%c3_251, %c4_252] : memref<4x8xi32, #tpu.memory_space<smem>>
    %440 = arith.index_cast %439 : i32 to index
    %c0_253 = arith.constant 0 : index
    %c0_254 = arith.constant 0 : index
    %441 = vector.load %arg3[%440, %c0_253, %c0_254] : memref<32x1x128xf32, #tpu.memory_space<vmem>>, vector<1x1x128xf32>
    %442 = vector.shape_cast %441 : vector<1x1x128xf32> to vector<1x128xf32>
    %cst_255 = arith.constant 0.000000e+00 : f32
    %443 = vector.broadcast %cst_255 : f32 to vector<1x128xf32>
    %444 = arith.maximumf %442, %443 : vector<1x128xf32>
    %c3_256 = arith.constant 3 : index
    %c5_257 = arith.constant 5 : index
    %445 = memref.load %arg0[%c3_256, %c5_257] : memref<4x8xi32, #tpu.memory_space<smem>>
    %446 = arith.index_cast %445 : i32 to index
    %c0_258 = arith.constant 0 : index
    %c0_259 = arith.constant 0 : index
    %447 = vector.load %arg3[%446, %c0_258, %c0_259] : memref<32x1x128xf32, #tpu.memory_space<vmem>>, vector<1x1x128xf32>
    %448 = vector.shape_cast %447 : vector<1x1x128xf32> to vector<1x128xf32>
    %cst_260 = arith.constant 0.000000e+00 : f32
    %449 = vector.broadcast %cst_260 : f32 to vector<1x128xf32>
    %450 = arith.maximumf %448, %449 : vector<1x128xf32>
    %c3_261 = arith.constant 3 : index
    %c6_262 = arith.constant 6 : index
    %451 = memref.load %arg0[%c3_261, %c6_262] : memref<4x8xi32, #tpu.memory_space<smem>>
    %452 = arith.index_cast %451 : i32 to index
    %c0_263 = arith.constant 0 : index
    %c0_264 = arith.constant 0 : index
    %453 = vector.load %arg3[%452, %c0_263, %c0_264] : memref<32x1x128xf32, #tpu.memory_space<vmem>>, vector<1x1x128xf32>
    %454 = vector.shape_cast %453 : vector<1x1x128xf32> to vector<1x128xf32>
    %cst_265 = arith.constant 0.000000e+00 : f32
    %455 = vector.broadcast %cst_265 : f32 to vector<1x128xf32>
    %456 = arith.maximumf %454, %455 : vector<1x128xf32>
    %c3_266 = arith.constant 3 : index
    %c7_267 = arith.constant 7 : index
    %457 = memref.load %arg0[%c3_266, %c7_267] : memref<4x8xi32, #tpu.memory_space<smem>>
    %458 = arith.index_cast %457 : i32 to index
    %c0_268 = arith.constant 0 : index
    %c0_269 = arith.constant 0 : index
    %459 = vector.load %arg3[%458, %c0_268, %c0_269] : memref<32x1x128xf32, #tpu.memory_space<vmem>>, vector<1x1x128xf32>
    %460 = vector.shape_cast %459 : vector<1x1x128xf32> to vector<1x128xf32>
    %cst_270 = arith.constant 0.000000e+00 : f32
    %461 = vector.broadcast %cst_270 : f32 to vector<1x128xf32>
    %462 = arith.maximumf %460, %461 : vector<1x128xf32>
    %463 = tpu.concatenate %420, %426, %432, %438, %444, %450, %456, %462 in 0 : vector<1x128xf32>, vector<1x128xf32>, vector<1x128xf32>, vector<1x128xf32>, vector<1x128xf32>, vector<1x128xf32>, vector<1x128xf32>, vector<1x128xf32> -> vector<8x128xf32>
    %c0_271 = arith.constant 0 : index
    %c0_272 = arith.constant 0 : index
    %c0_273 = arith.constant 0 : index
    %464 = vector.load %arg14[%c0_271, %c0_272, %c0_273] : memref<2x8x128xf32, #tpu.memory_space<vmem>>, vector<1x8x128xf32>
    %465 = vector.shape_cast %464 : vector<1x8x128xf32> to vector<8x128xf32>
    %466 = arith.truncf %463 : vector<8x128xf32> to vector<8x128xbf16>
    %c0_274 = arith.constant 0 : index
    %c0_275 = arith.constant 0 : index
    %c0_276 = arith.constant 0 : index
    %467 = vector.load %arg6[%c0_274, %c0_275, %c0_276] : memref<2x128x384xbf16, #tpu.memory_space<vmem>>, vector<1x128x384xbf16>
    %468 = vector.shape_cast %467 : vector<1x128x384xbf16> to vector<128x384xbf16>
    %cst_277 = arith.constant dense<0.000000e+00> : vector<8x384xf32>
    %469 = tpu.matmul %466, %468, %cst_277 {dimension_numbers = #tpu.dot_dimension_numbers<[1], [0], [0], [1], [0, 0, 1, 1], [], []>} : vector<8x128xbf16>, vector<128x384xbf16>, vector<8x384xf32> -> vector<8x384xf32>
    %470 = vector.broadcast %3 : vector<1x384xf32> to vector<8x384xf32>
    %471 = arith.addf %469, %470 : vector<8x384xf32>
    %472 = arith.truncf %465 : vector<8x128xf32> to vector<8x128xbf16>
    %c0_278 = arith.constant 0 : index
    %c0_279 = arith.constant 0 : index
    %c0_280 = arith.constant 0 : index
    %473 = vector.load %arg7[%c0_278, %c0_279, %c0_280] : memref<2x128x384xbf16, #tpu.memory_space<vmem>>, vector<1x128x384xbf16>
    %474 = vector.shape_cast %473 : vector<1x128x384xbf16> to vector<128x384xbf16>
    %cst_281 = arith.constant dense<0.000000e+00> : vector<8x384xf32>
    %475 = tpu.matmul %472, %474, %cst_281 {dimension_numbers = #tpu.dot_dimension_numbers<[1], [0], [0], [1], [0, 0, 1, 1], [], []>} : vector<8x128xbf16>, vector<128x384xbf16>, vector<8x384xf32> -> vector<8x384xf32>
    %476 = vector.broadcast %7 : vector<1x384xf32> to vector<8x384xf32>
    %477 = arith.addf %475, %476 : vector<8x384xf32>
    %478 = vector.extract_strided_slice %471 {offsets = [0, 0], sizes = [8, 128], strides = [1, 1]} : vector<8x384xf32> to vector<8x128xf32>
    %479 = vector.extract_strided_slice %477 {offsets = [0, 0], sizes = [8, 128], strides = [1, 1]} : vector<8x384xf32> to vector<8x128xf32>
    %480 = arith.addf %478, %479 : vector<8x128xf32>
    %481 = arith.negf %480 : vector<8x128xf32>
    %482 = math.exp %481 : vector<8x128xf32>
    %cst_282 = arith.constant 1.000000e+00 : f32
    %483 = vector.broadcast %cst_282 : f32 to vector<8x128xf32>
    %484 = arith.addf %483, %482 : vector<8x128xf32>
    %485 = arith.divf %483, %484 : vector<8x128xf32>
    %486 = vector.extract_strided_slice %471 {offsets = [0, 128], sizes = [8, 128], strides = [1, 1]} : vector<8x384xf32> to vector<8x128xf32>
    %487 = vector.extract_strided_slice %477 {offsets = [0, 128], sizes = [8, 128], strides = [1, 1]} : vector<8x384xf32> to vector<8x128xf32>
    %488 = arith.addf %486, %487 : vector<8x128xf32>
    %489 = arith.negf %488 : vector<8x128xf32>
    %490 = math.exp %489 : vector<8x128xf32>
    %cst_283 = arith.constant 1.000000e+00 : f32
    %491 = vector.broadcast %cst_283 : f32 to vector<8x128xf32>
    %492 = arith.addf %491, %490 : vector<8x128xf32>
    %493 = arith.divf %491, %492 : vector<8x128xf32>
    %494 = vector.extract_strided_slice %471 {offsets = [0, 256], sizes = [8, 128], strides = [1, 1]} : vector<8x384xf32> to vector<8x128xf32>
    %495 = vector.extract_strided_slice %477 {offsets = [0, 256], sizes = [8, 128], strides = [1, 1]} : vector<8x384xf32> to vector<8x128xf32>
    %496 = arith.mulf %485, %495 : vector<8x128xf32>
    %497 = arith.addf %494, %496 : vector<8x128xf32>
    %498 = math.tanh %497 : vector<8x128xf32>
    %cst_284 = arith.constant 1.000000e+00 : f32
    %499 = vector.broadcast %cst_284 : f32 to vector<8x128xf32>
    %500 = arith.subf %499, %493 : vector<8x128xf32>
    %501 = arith.mulf %500, %498 : vector<8x128xf32>
    %502 = arith.mulf %493, %465 : vector<8x128xf32>
    %503 = arith.addf %501, %502 : vector<8x128xf32>
    %c0_285 = arith.constant 0 : index
    %c0_286 = arith.constant 0 : index
    %c0_287 = arith.constant 0 : index
    %504 = vector.load %arg14[%c0_285, %c0_286, %c0_287] : memref<2x8x128xf32, #tpu.memory_space<vmem>>, vector<1x8x128xf32>
    %505 = vector.shape_cast %504 : vector<1x8x128xf32> to vector<8x128xf32>
    %506 = vector.shape_cast %503 : vector<8x128xf32> to vector<1x8x128xf32>
    tpu.vector_store %arg14[%c0_285, %c0_286, %c0_287], %506 {strides = array<i32>} : memref<2x8x128xf32, #tpu.memory_space<vmem>>, vector<1x8x128xf32>,
    %c1_288 = arith.constant 1 : index
    %c0_289 = arith.constant 0 : index
    %c0_290 = arith.constant 0 : index
    %507 = vector.load %arg14[%c1_288, %c0_289, %c0_290] : memref<2x8x128xf32, #tpu.memory_space<vmem>>, vector<1x8x128xf32>
    %508 = vector.shape_cast %507 : vector<1x8x128xf32> to vector<8x128xf32>
    %509 = arith.truncf %503 : vector<8x128xf32> to vector<8x128xbf16>
    %c1_291 = arith.constant 1 : index
    %c0_292 = arith.constant 0 : index
    %c0_293 = arith.constant 0 : index
    %510 = vector.load %arg6[%c1_291, %c0_292, %c0_293] : memref<2x128x384xbf16, #tpu.memory_space<vmem>>, vector<1x128x384xbf16>
    %511 = vector.shape_cast %510 : vector<1x128x384xbf16> to vector<128x384xbf16>
    %cst_294 = arith.constant dense<0.000000e+00> : vector<8x384xf32>
    %512 = tpu.matmul %509, %511, %cst_294 {dimension_numbers = #tpu.dot_dimension_numbers<[1], [0], [0], [1], [0, 0, 1, 1], [], []>} : vector<8x128xbf16>, vector<128x384xbf16>, vector<8x384xf32> -> vector<8x384xf32>
    %513 = vector.broadcast %5 : vector<1x384xf32> to vector<8x384xf32>
    %514 = arith.addf %512, %513 : vector<8x384xf32>
    %515 = arith.truncf %508 : vector<8x128xf32> to vector<8x128xbf16>
    %c1_295 = arith.constant 1 : index
    %c0_296 = arith.constant 0 : index
    %c0_297 = arith.constant 0 : index
    %516 = vector.load %arg7[%c1_295, %c0_296, %c0_297] : memref<2x128x384xbf16, #tpu.memory_space<vmem>>, vector<1x128x384xbf16>
    %517 = vector.shape_cast %516 : vector<1x128x384xbf16> to vector<128x384xbf16>
    %cst_298 = arith.constant dense<0.000000e+00> : vector<8x384xf32>
    %518 = tpu.matmul %515, %517, %cst_298 {dimension_numbers = #tpu.dot_dimension_numbers<[1], [0], [0], [1], [0, 0, 1, 1], [], []>} : vector<8x128xbf16>, vector<128x384xbf16>, vector<8x384xf32> -> vector<8x384xf32>
    %519 = vector.broadcast %9 : vector<1x384xf32> to vector<8x384xf32>
    %520 = arith.addf %518, %519 : vector<8x384xf32>
    %521 = vector.extract_strided_slice %514 {offsets = [0, 0], sizes = [8, 128], strides = [1, 1]} : vector<8x384xf32> to vector<8x128xf32>
    %522 = vector.extract_strided_slice %520 {offsets = [0, 0], sizes = [8, 128], strides = [1, 1]} : vector<8x384xf32> to vector<8x128xf32>
    %523 = arith.addf %521, %522 : vector<8x128xf32>
    %524 = arith.negf %523 : vector<8x128xf32>
    %525 = math.exp %524 : vector<8x128xf32>
    %cst_299 = arith.constant 1.000000e+00 : f32
    %526 = vector.broadcast %cst_299 : f32 to vector<8x128xf32>
    %527 = arith.addf %526, %525 : vector<8x128xf32>
    %528 = arith.divf %526, %527 : vector<8x128xf32>
    %529 = vector.extract_strided_slice %514 {offsets = [0, 128], sizes = [8, 128], strides = [1, 1]} : vector<8x384xf32> to vector<8x128xf32>
    %530 = vector.extract_strided_slice %520 {offsets = [0, 128], sizes = [8, 128], strides = [1, 1]} : vector<8x384xf32> to vector<8x128xf32>
    %531 = arith.addf %529, %530 : vector<8x128xf32>
    %532 = arith.negf %531 : vector<8x128xf32>
    %533 = math.exp %532 : vector<8x128xf32>
    %cst_300 = arith.constant 1.000000e+00 : f32
    %534 = vector.broadcast %cst_300 : f32 to vector<8x128xf32>
    %535 = arith.addf %534, %533 : vector<8x128xf32>
    %536 = arith.divf %534, %535 : vector<8x128xf32>
    %537 = vector.extract_strided_slice %514 {offsets = [0, 256], sizes = [8, 128], strides = [1, 1]} : vector<8x384xf32> to vector<8x128xf32>
    %538 = vector.extract_strided_slice %520 {offsets = [0, 256], sizes = [8, 128], strides = [1, 1]} : vector<8x384xf32> to vector<8x128xf32>
    %539 = arith.mulf %528, %538 : vector<8x128xf32>
    %540 = arith.addf %537, %539 : vector<8x128xf32>
    %541 = math.tanh %540 : vector<8x128xf32>
    %cst_301 = arith.constant 1.000000e+00 : f32
    %542 = vector.broadcast %cst_301 : f32 to vector<8x128xf32>
    %543 = arith.subf %542, %536 : vector<8x128xf32>
    %544 = arith.mulf %543, %541 : vector<8x128xf32>
    %545 = arith.mulf %536, %508 : vector<8x128xf32>
    %546 = arith.addf %544, %545 : vector<8x128xf32>
    %c1_302 = arith.constant 1 : index
    %c0_303 = arith.constant 0 : index
    %c0_304 = arith.constant 0 : index
    %547 = vector.load %arg14[%c1_302, %c0_303, %c0_304] : memref<2x8x128xf32, #tpu.memory_space<vmem>>, vector<1x8x128xf32>
    %548 = vector.shape_cast %547 : vector<1x8x128xf32> to vector<8x128xf32>
    %549 = vector.shape_cast %546 : vector<8x128xf32> to vector<1x8x128xf32>
    tpu.vector_store %arg14[%c1_302, %c0_303, %c0_304], %549 {strides = array<i32>} : memref<2x8x128xf32, #tpu.memory_space<vmem>>, vector<1x8x128xf32>,
    %c0_305 = arith.constant 0 : index
    %c0_306 = arith.constant 0 : index
    %550 = vector.load %arg2[%c0_305, %c0_306] : memref<8x64xf32, #tpu.memory_space<vmem>>, vector<8x64xf32>
    %551 = arith.truncf %550 : vector<8x64xf32> to vector<8x64xbf16>
    %c0_307 = arith.constant 0 : index
    %c0_308 = arith.constant 0 : index
    %552 = vector.load %arg4[%c0_307, %c0_308] : memref<64x128xbf16, #tpu.memory_space<vmem>>, vector<64x128xbf16>
    %cst_309 = arith.constant dense<0.000000e+00> : vector<8x128xf32>
    %553 = tpu.matmul %551, %552, %cst_309 {dimension_numbers = #tpu.dot_dimension_numbers<[1], [0], [0], [1], [0, 0, 1, 1], [], []>} : vector<8x64xbf16>, vector<64x128xbf16>, vector<8x128xf32> -> vector<8x128xf32>
    %c0_310 = arith.constant 0 : index
    %c0_311 = arith.constant 0 : index
    %554 = vector.load %arg5[%c0_310, %c0_311] : memref<1x128xf32, #tpu.memory_space<vmem>>, vector<1x128xf32>
    %555 = vector.broadcast %554 : vector<1x128xf32> to vector<8x128xf32>
    %556 = arith.addf %553, %555 : vector<8x128xf32>
    %557 = arith.truncf %556 : vector<8x128xf32> to vector<8x128xbf16>
    %c0_312 = arith.constant 0 : index
    %c0_313 = arith.constant 0 : index
    %558 = vector.load %arg10[%c0_312, %c0_313] : memref<128x128xbf16, #tpu.memory_space<vmem>>, vector<128x128xbf16>
    %cst_314 = arith.constant dense<0.000000e+00> : vector<8x128xf32>
    %559 = tpu.matmul %557, %558, %cst_314 {dimension_numbers = #tpu.dot_dimension_numbers<[1], [0], [0], [1], [0, 0, 1, 1], [], []>} : vector<8x128xbf16>, vector<128x128xbf16>, vector<8x128xf32> -> vector<8x128xf32>
    %560 = arith.truncf %141 : vector<8x128xf32> to vector<8x128xbf16>
    %c0_315 = arith.constant 0 : index
    %c0_316 = arith.constant 0 : index
    %561 = vector.load %arg11[%c0_315, %c0_316] : memref<128x128xbf16, #tpu.memory_space<vmem>>, vector<128x128xbf16>
    %cst_317 = arith.constant dense<0.000000e+00> : vector<8x128xf32>
    %562 = tpu.matmul %560, %561, %cst_317 {dimension_numbers = #tpu.dot_dimension_numbers<[1], [0], [0], [1], [0, 0, 1, 1], [], []>} : vector<8x128xbf16>, vector<128x128xbf16>, vector<8x128xf32> -> vector<8x128xf32>
    %563 = arith.addf %559, %562 : vector<8x128xf32>
    %c0_318 = arith.constant 0 : index
    %c0_319 = arith.constant 0 : index
    %564 = vector.load %arg12[%c0_318, %c0_319] : memref<1x128xf32, #tpu.memory_space<vmem>>, vector<1x128xf32>
    %565 = vector.broadcast %564 : vector<1x128xf32> to vector<8x128xf32>
    %566 = arith.addf %563, %565 : vector<8x128xf32>
    %cst_320 = arith.constant dense<0xFF800000> : vector<8xf32>
    %567 = vector.multi_reduction <maximumf>, %566, %cst_320 [1] : vector<8x128xf32> to vector<8xf32>
    %568 = vector.shape_cast %567 : vector<8xf32> to vector<8x1xf32>
    %569 = vector.broadcast %568 : vector<8x1xf32> to vector<8x128xf32>
    %570 = arith.subf %566, %569 : vector<8x128xf32>
    %571 = math.exp %570 : vector<8x128xf32>
    %cst_321 = arith.constant dense<0.000000e+00> : vector<8xf32>
    %572 = vector.multi_reduction <add>, %571, %cst_321 [1] : vector<8x128xf32> to vector<8xf32>
    %573 = vector.shape_cast %572 : vector<8xf32> to vector<8x1xf32>
    %574 = math.log %573 : vector<8x1xf32>
    %575 = vector.broadcast %574 : vector<8x1xf32> to vector<8x128xf32>
    %576 = arith.subf %570, %575 : vector<8x128xf32>
    %c0_322 = arith.constant 0 : index
    %c0_323 = arith.constant 0 : index
    %577 = vector.load %arg13[%c0_322, %c0_323] : memref<8x128xf32, #tpu.memory_space<vmem>>, vector<8x128xf32>
    tpu.vector_store %arg13[%c0_322, %c0_323], %576 {strides = array<i32>} : memref<8x128xf32, #tpu.memory_space<vmem>>, vector<8x128xf32>,
    return
  }
}

</mosaic_0001>

<llo_original>
// kernel: decoder_forward.1
$region0: #{decoder_forward.1}
  #allocation0 [shape = 'u32[]', space=smem, size = 0x4, offset = 0x4, fixed_abs, tag = 'smem constant byte address 0x4 - core index']
  #allocation1 [shape = 'u32[72,128]{1,0:T(1,128)}', space=vmem, size = 0x9000, scoped, tag = 'internal scratch']
  %s0 = inlined_call_operand.vmem [shape: s32[4,8], index: 0, kind: input, shape index: {}]
  %s1 = inlined_call_operand.vmem [shape: f32[2,8,128], index: 1, kind: input, shape index: {}]
  %s2 = inlined_call_operand.vmem [shape: f32[8,64], index: 2, kind: input, shape index: {}]
  %s3 = inlined_call_operand.vmem [shape: f32[32,1,128], index: 3, kind: input, shape index: {}]
  %s4 = inlined_call_operand.hbm [shape: bf16[64,128], index: 4, kind: input, shape index: {}]
  %s5 = inlined_call_operand.vmem [shape: f32[1,128], index: 5, kind: input, shape index: {}]
  %s6 = inlined_call_operand.hbm [shape: bf16[2,128,384], index: 6, kind: input, shape index: {}]
  %s7 = inlined_call_operand.hbm [shape: bf16[2,128,384], index: 7, kind: input, shape index: {}]
  %s8 = inlined_call_operand.vmem [shape: f32[2,1,384], index: 8, kind: input, shape index: {}]
  %s9 = inlined_call_operand.hbm [shape: f32[2,1,384], index: 9, kind: input, shape index: {}]
  %s10 = inlined_call_operand.hbm [shape: bf16[128,128], index: 10, kind: input, shape index: {}]
  %s11 = inlined_call_operand.hbm [shape: bf16[128,128], index: 11, kind: input, shape index: {}]
  %s12 = inlined_call_operand.hbm [shape: f32[1,128], index: 12, kind: input, shape index: {}]
  %s13 = inlined_call_operand.hbm [shape: f32[8,128], index: 13, kind: output, shape index: {0}]
  %s14 = inlined_call_operand.hbm [shape: f32[2,8,128], index: 14, kind: output, shape index: {1}]
  %15 = xla_tuple %s13, %s14
  %s16 = sld [smem:[#allocation0]]
  $region102: #{decoder_forward.1} parent=0
    _
  %s18 = ssub.s32 1, %s16
  %s19 = scalar_select 0, %s18, %s16
  $region1: #{decoder_forward.1} parent=0
    #allocation2 [shape = 'u8[2048]{0}', space=smem, size = 0x800, scoped, tag = 'input window, operand 0, single buffered']
    #allocation3 [shape = 's32[1]{0}', space=sflag, size = 0x4, scoped, tag = 'scoped memory for decoder_forward.1']
    #allocation4 [shape = 's32[1]{0}', space=sflag, size = 0x4, scoped, tag = 'scoped memory for decoder_forward.1']
    #allocation5 [shape = 's32[1]{0}', space=sflag, size = 0x4, scoped, tag = 'scoped memory for decoder_forward.1']
    #allocation6 [shape = 'u8[16384]{0}', space=vmem, size = 0x4000, scoped, tag = 'input window, operand 4, single buffered']
    #allocation7 [shape = 'u8[196608]{0}', space=vmem, size = 0x30000, scoped, tag = 'input window, operand 6, single buffered']
    #allocation8 [shape = 's32[1]{0}', space=sflag, size = 0x4, scoped, tag = 'scoped memory for decoder_forward.1']
    #allocation9 [shape = 'u8[196608]{0}', space=vmem, size = 0x30000, scoped, tag = 'input window, operand 7, single buffered']
    #allocation10 [shape = 'u8[3072]{0}', space=vmem, size = 0xc00, scoped, tag = 'input window, operand 9, single buffered']
    #allocation11 [shape = 's32[1]{0}', space=sflag, size = 0x4, scoped, tag = 'scoped memory for decoder_forward.1']
    #allocation12 [shape = 'u8[32768]{0}', space=vmem, size = 0x8000, scoped, tag = 'input window, operand 10, single buffered']
    #allocation13 [shape = 'u8[32768]{0}', space=vmem, size = 0x8000, scoped, tag = 'input window, operand 11, single buffered']
    #allocation14 [shape = 's32[1]{0}', space=sflag, size = 0x4, scoped, tag = 'scoped memory for decoder_forward.1']
    #allocation15 [shape = 'u8[512]{0}', space=vmem, size = 0x400, scoped, tag = 'input window, operand 12, single buffered']
    #allocation16 [shape = 'u8[4096]{0}', space=vmem, size = 0x1000, scoped, tag = 'output window, operand 0, single buffered']
    #allocation17 [shape = 'u8[8192]{0}', space=vmem, size = 0x2000, scoped, tag = 'output window, operand 1, single buffered']
    #allocation18 [shape = 's32[1]{0}', space=sflag, size = 0x4, scoped, tag = 'scoped memory for decoder_forward.1']
    %20 = vsyncpa [#allocation5], 0
    %21 = vsyncpa [#allocation3], 0
    %22 = vsyncpa [#allocation8], 0
    %23 = vsyncpa [#allocation11], 0
    %24 = vsyncpa [#allocation14], 0
    %25 = vsyncpa [#allocation4], 0
    %26 = vsyncpa [#allocation18], 0
    // Predicated region
    $region2: #{decoder_forward.1} parent=1 // pred_check
      _
    $region3: #{decoder_forward.1} parent=1 // pred_check_branch
      %28 = sbr.rel (0) target = $region5
    $region4: #{decoder_forward.1} parent=1 // pred_region
      %30 = vsyncadd [#allocation5], 0
      %s32 = sshll.u32 %s0, 4
      %s33 = int_to_ptr.vmem [resolvable:$true] %s32
      %35 = dma.vmem_to_smem %s33, 64, [#allocation2], [#allocation5]
    $region5: #{decoder_forward.1} parent=1 // pred_fallthru
      _
    // Predicated region
    $region6: #{decoder_forward.1} parent=1 // pred_check
      _
    $region7: #{decoder_forward.1} parent=1 // pred_check_branch
      %37 = sbr.rel (0) target = $region9
    $region8: #{decoder_forward.1} parent=1 // pred_region
      _
    $region9: #{decoder_forward.1} parent=1 // pred_fallthru
      _
    // Predicated region
    $region10: #{decoder_forward.1} parent=1 // pred_check
      _
    $region11: #{decoder_forward.1} parent=1 // pred_check_branch
      %39 = sbr.rel (0) target = $region13
    $region12: #{decoder_forward.1} parent=1 // pred_region
      _
    $region13: #{decoder_forward.1} parent=1 // pred_fallthru
      _
    // Predicated region
    $region14: #{decoder_forward.1} parent=1 // pred_check
      _
    $region15: #{decoder_forward.1} parent=1 // pred_check_branch
      %41 = sbr.rel (0) target = $region17
    $region16: #{decoder_forward.1} parent=1 // pred_region
      _
    $region17: #{decoder_forward.1} parent=1 // pred_fallthru
      _
    // Predicated region
    $region18: #{decoder_forward.1} parent=1 // pred_check
      _
    $region19: #{decoder_forward.1} parent=1 // pred_check_branch
      %43 = sbr.rel (0) target = $region21
    $region20: #{decoder_forward.1} parent=1 // pred_region
      %45 = vsyncadd [#allocation3], 0
      %s46 = sshll.u32 %s4, 4
      %s47 = int_to_ptr.hbm [resolvable:$true] %s46
      %s48 = sshll.u32 [#allocation6], 4
      %s49 = int_to_ptr.vmem [resolvable:$true] %s48
      %54 = dma.hbm_to_vmem [thread:$0]  %s47, 512, %s49, [#allocation3], 64, 64, 4
    $region21: #{decoder_forward.1} parent=1 // pred_fallthru
      _
    // Predicated region
    $region22: #{decoder_forward.1} parent=1 // pred_check
      _
    $region23: #{decoder_forward.1} parent=1 // pred_check_branch
      %56 = sbr.rel (0) target = $region25
    $region24: #{decoder_forward.1} parent=1 // pred_region
      _
    $region25: #{decoder_forward.1} parent=1 // pred_fallthru
      _
    // Predicated region
    $region26: #{decoder_forward.1} parent=1 // pred_check
      _
    $region27: #{decoder_forward.1} parent=1 // pred_check_branch
      %58 = sbr.rel (0) target = $region29
    $region28: #{decoder_forward.1} parent=1 // pred_region
      %60 = vsyncadd [#allocation8], 0
      %s61 = sshll.u32 %s6, 4
      %s62 = int_to_ptr.hbm [resolvable:$true] %s61
      %s63 = sshll.u32 [#allocation7], 4
      %s64 = int_to_ptr.vmem [resolvable:$true] %s63
      %69 = dma.hbm_to_vmem [thread:$0]  %s62, 6144, %s64, [#allocation8], 192, 192, 12
    $region29: #{decoder_forward.1} parent=1 // pred_fallthru
      _
    // Predicated region
    $region30: #{decoder_forward.1} parent=1 // pred_check
      _
    $region31: #{decoder_forward.1} parent=1 // pred_check_branch
      %71 = sbr.rel (0) target = $region33
    $region32: #{decoder_forward.1} parent=1 // pred_region
      %73 = vsyncadd [#allocation8], 0
      %s74 = sshll.u32 %s7, 4
      %s75 = int_to_ptr.hbm [resolvable:$true] %s74
      %s76 = sshll.u32 [#allocation9], 4
      %s77 = int_to_ptr.vmem [resolvable:$true] %s76
      %82 = dma.hbm_to_vmem [thread:$0]  %s75, 6144, %s77, [#allocation8], 192, 192, 12
    $region33: #{decoder_forward.1} parent=1 // pred_fallthru
      _
    // Predicated region
    $region34: #{decoder_forward.1} parent=1 // pred_check
      _
    $region35: #{decoder_forward.1} parent=1 // pred_check_branch
      %84 = sbr.rel (0) target = $region37
    $region36: #{decoder_forward.1} parent=1 // pred_region
      _
    $region37: #{decoder_forward.1} parent=1 // pred_fallthru
      _
    // Predicated region
    $region38: #{decoder_forward.1} parent=1 // pred_check
      _
    $region39: #{decoder_forward.1} parent=1 // pred_check_branch
      %86 = sbr.rel (0) target = $region41
    $region40: #{decoder_forward.1} parent=1 // pred_region
      %88 = vsyncadd [#allocation11], 0
      %s89 = sshll.u32 %s9, 4
      %s90 = int_to_ptr.hbm [resolvable:$true] %s89
      %s91 = sshll.u32 [#allocation10], 4
      %s92 = int_to_ptr.vmem [resolvable:$true] %s91
      %97 = dma.hbm_to_vmem [thread:$0]  %s90, 96, %s92, [#allocation11], 48, 48, 3
    $region41: #{decoder_forward.1} parent=1 // pred_fallthru
      _
    // Predicated region
    $region42: #{decoder_forward.1} parent=1 // pred_check
      _
    $region43: #{decoder_forward.1} parent=1 // pred_check_branch
      %99 = sbr.rel (0) target = $region45
    $region44: #{decoder_forward.1} parent=1 // pred_region
      %101 = vsyncadd [#allocation11], 0
      %s102 = sshll.u32 %s10, 4
      %s103 = int_to_ptr.hbm [resolvable:$true] %s102
      %s104 = sshll.u32 [#allocation12], 4
      %s105 = int_to_ptr.vmem [resolvable:$true] %s104
      %110 = dma.hbm_to_vmem [thread:$0]  %s103, 1024, %s105, [#allocation11], 64, 64, 4
    $region45: #{decoder_forward.1} parent=1 // pred_fallthru
      _
    // Predicated region
    $region46: #{decoder_forward.1} parent=1 // pred_check
      _
    $region47: #{decoder_forward.1} parent=1 // pred_check_branch
      %112 = sbr.rel (0) target = $region49
    $region48: #{decoder_forward.1} parent=1 // pred_region
      %114 = vsyncadd [#allocation14], 0
      %s115 = sshll.u32 %s11, 4
      %s116 = int_to_ptr.hbm [resolvable:$true] %s115
      %s117 = sshll.u32 [#allocation13], 4
      %s118 = int_to_ptr.vmem [resolvable:$true] %s117
      %123 = dma.hbm_to_vmem [thread:$0]  %s116, 1024, %s118, [#allocation14], 64, 64, 4
    $region49: #{decoder_forward.1} parent=1 // pred_fallthru
      _
    // Predicated region
    $region50: #{decoder_forward.1} parent=1 // pred_check
      _
    $region51: #{decoder_forward.1} parent=1 // pred_check_branch
      %125 = sbr.rel (0) target = $region53
    $region52: #{decoder_forward.1} parent=1 // pred_region
      %127 = vsyncadd [#allocation14], 0
      %s129 = sshll.u32 %s12, 4
      %s130 = int_to_ptr.hbm [resolvable:$true] %s129
      %s131 = sshll.u32 [#allocation15], 4
      %s132 = int_to_ptr.vmem [resolvable:$true] %s131
      %134 = dma.hbm_to_vmem [thread:$0]  %s130, 16, %s132, [#allocation14]
    $region53: #{decoder_forward.1} parent=1 // pred_fallthru
      _
    // Predicated region
    $region54: #{decoder_forward.1} parent=1 // pred_check
      _
    $region55: #{decoder_forward.1} parent=1 // pred_check_branch
      %136 = sbr.rel (0) target = $region57
    $region56: #{decoder_forward.1} parent=1 // pred_region
      %138 = dma.done [#allocation5], 64
    $region57: #{decoder_forward.1} parent=1 // pred_fallthru
      _
    // Predicated region
    $region58: #{decoder_forward.1} parent=1 // pred_check
      _
    $region59: #{decoder_forward.1} parent=1 // pred_check_branch
      %140 = sbr.rel (0) target = $region61
    $region60: #{decoder_forward.1} parent=1 // pred_region
      %142 = dma.done [#allocation3], 512
    $region61: #{decoder_forward.1} parent=1 // pred_fallthru
      _
    // Predicated region
    $region62: #{decoder_forward.1} parent=1 // pred_check
      _
    $region63: #{decoder_forward.1} parent=1 // pred_check_branch
      %144 = sbr.rel (0) target = $region65
    $region64: #{decoder_forward.1} parent=1 // pred_region
      %146 = dma.done [#allocation8], 6144
    $region65: #{decoder_forward.1} parent=1 // pred_fallthru
      _
    // Predicated region
    $region66: #{decoder_forward.1} parent=1 // pred_check
      _
    $region67: #{decoder_forward.1} parent=1 // pred_check_branch
      %148 = sbr.rel (0) target = $region69
    $region68: #{decoder_forward.1} parent=1 // pred_region
      %150 = dma.done [#allocation8], 6144
    $region69: #{decoder_forward.1} parent=1 // pred_fallthru
      _
    // Predicated region
    $region70: #{decoder_forward.1} parent=1 // pred_check
      _
    $region71: #{decoder_forward.1} parent=1 // pred_check_branch
      %152 = sbr.rel (0) target = $region73
    $region72: #{decoder_forward.1} parent=1 // pred_region
      %154 = dma.done [#allocation11], 96
    $region73: #{decoder_forward.1} parent=1 // pred_fallthru
      _
    // Predicated region
    $region74: #{decoder_forward.1} parent=1 // pred_check
      _
    $region75: #{decoder_forward.1} parent=1 // pred_check_branch
      %156 = sbr.rel (0) target = $region77
    $region76: #{decoder_forward.1} parent=1 // pred_region
      %158 = dma.done [#allocation11], 1024
    $region77: #{decoder_forward.1} parent=1 // pred_fallthru
      _
    // Predicated region
    $region78: #{decoder_forward.1} parent=1 // pred_check
      _
    $region79: #{decoder_forward.1} parent=1 // pred_check_branch
      %160 = sbr.rel (0) target = $region81
    $region80: #{decoder_forward.1} parent=1 // pred_region
      %162 = dma.done [#allocation14], 1024
    $region81: #{decoder_forward.1} parent=1 // pred_fallthru
      _
    // Predicated region
    $region82: #{decoder_forward.1} parent=1 // pred_check
      _
    $region83: #{decoder_forward.1} parent=1 // pred_check_branch
      %164 = sbr.rel (0) target = $region85
    $region84: #{decoder_forward.1} parent=1 // pred_region
      %166 = dma.done [#allocation14], 16
    $region85: #{decoder_forward.1} parent=1 // pred_fallthru
      _
    %167 = sfence
    %v169 = vld [vmem:[%s1] sm:$0xff]
    %v170 = vld [vmem:[%s1 + $0x8] sm:$0xff]
    %171 = vst [vmem:[#allocation17] sm:$0xff] %v169
    %172 = vst [vmem:[#allocation17 + $0x8] sm:$0xff] %v170
    %v173 = vld [vmem:[%s8] sm:$0x7]
    %s174 = scalar_lea.vmem %s8, 3
    %v175 = vld [vmem:[%s174] sm:$0x7]
    %v176 = vld [vmem:[#allocation10] sm:$0x7]
    %s177 = scalar_lea.vmem [#allocation10], 3
    %v178 = vld [vmem:[%s177] sm:$0x7]
    %s179 = sld [smem:[#allocation2]]
    %s180 = scalar_lea.vmem %s3, %s179
    %v181 = vld [vmem:[%s180] sm:$0x1]
    %v182 = vmax.f32 %v181, 0.0
    %s183 = sld [smem:[#allocation2 + $0x1]]
    %s184 = scalar_lea.vmem %s3, %s183
    %v185 = vld [vmem:[%s184] sm:$0x1]
    %v186 = vmax.f32 %v185, 0.0
    %s187 = sld [smem:[#allocation2 + $0x2]]
    %s188 = scalar_lea.vmem %s3, %s187
    %v189 = vld [vmem:[%s188] sm:$0x1]
    %v190 = vmax.f32 %v189, 0.0
    %s191 = sld [smem:[#allocation2 + $0x3]]
    %s192 = scalar_lea.vmem %s3, %s191
    %v193 = vld [vmem:[%s192] sm:$0x1]
    %v194 = vmax.f32 %v193, 0.0
    %s195 = sld [smem:[#allocation2 + $0x4]]
    %s196 = scalar_lea.vmem %s3, %s195
    %v197 = vld [vmem:[%s196] sm:$0x1]
    %v198 = vmax.f32 %v197, 0.0
    %s199 = sld [smem:[#allocation2 + $0x5]]
    %s200 = scalar_lea.vmem %s3, %s199
    %v201 = vld [vmem:[%s200] sm:$0x1]
    %v202 = vmax.f32 %v201, 0.0
    %s203 = sld [smem:[#allocation2 + $0x6]]
    %s204 = scalar_lea.vmem %s3, %s203
    %v205 = vld [vmem:[%s204] sm:$0x1]
    %v206 = vmax.f32 %v205, 0.0
    %s207 = sld [smem:[#allocation2 + $0x7]]
    %s208 = scalar_lea.vmem %s3, %s207
    %v209 = vld [vmem:[%s208] sm:$0x1]
    %v210 = vmax.f32 %v209, 0.0
    %v212 = vperm.slane %v186, 0
    %v215 = vperm.slane %v190, 0
    %v218 = vperm.slane %v194, 0
    %v221 = vperm.slane %v198, 0
    %v224 = vperm.slane %v202, 0
    %v227 = vperm.slane %v206, 0
    %v230 = vperm.slane %v210, 0
    %vm232 = vcmask 1040384
    %v233 = vsel %vm232, %v182, %v212
    %vm234 = vcmask 1041408
    %v235 = vsel %vm234, %v233, %v215
    %vm236 = vcmask 1042432
    %v237 = vsel %vm236, %v235, %v218
    %vm238 = vcmask 1043456
    %v239 = vsel %vm238, %v237, %v221
    %vm240 = vcmask 1044480
    %v241 = vsel %vm240, %v239, %v224
    %vm242 = vcmask 1045504
    %v243 = vsel %vm242, %v241, %v227
    %vm244 = vcmask 1046528
    %v245 = vsel %vm244, %v243, %v230
    %v246 = vld [vmem:[#allocation17] sm:$0xff]
    %v247 = vpack.c.bf16 %v245, %v245
    %v248 = vld [vmem:[#allocation7] sm:$0xff]
    %v249 = vld [vmem:[#allocation7 + $0x8] sm:$0xf]
    %v250 = vld [vmem:[#allocation7 + $0xc] sm:$0xff]
    %v251 = vld [vmem:[#allocation7 + $0x14] sm:$0xf]
    %v252 = vld [vmem:[#allocation7 + $0x18] sm:$0xff]
    %v253 = vld [vmem:[#allocation7 + $0x20] sm:$0xf]
    %v254 = vld [vmem:[#allocation7 + $0x24] sm:$0xff]
    %v255 = vld [vmem:[#allocation7 + $0x2c] sm:$0xf]
    %v256 = vld [vmem:[#allocation7 + $0x30] sm:$0xff]
    %v257 = vld [vmem:[#allocation7 + $0x38] sm:$0xf]
    %v258 = vld [vmem:[#allocation7 + $0x3c] sm:$0xff]
    %v259 = vld [vmem:[#allocation7 + $0x44] sm:$0xf]
    %v260 = vld [vmem:[#allocation7 + $0x48] sm:$0xff]
    %v261 = vld [vmem:[#allocation7 + $0x50] sm:$0xf]
    %v262 = vld [vmem:[#allocation7 + $0x54] sm:$0xff]
    %v263 = vld [vmem:[#allocation7 + $0x5c] sm:$0xf]
    %v264 = vld [vmem:[#allocation7 + $0x60] sm:$0xff]
    %v265 = vld [vmem:[#allocation7 + $0x68] sm:$0xf]
    %v266 = vld [vmem:[#allocation7 + $0x6c] sm:$0xff]
    %v267 = vld [vmem:[#allocation7 + $0x74] sm:$0xf]
    %v268 = vld [vmem:[#allocation7 + $0x78] sm:$0xff]
    %v269 = vld [vmem:[#allocation7 + $0x80] sm:$0xf]
    %v270 = vld [vmem:[#allocation7 + $0x84] sm:$0xff]
    %v271 = vld [vmem:[#allocation7 + $0x8c] sm:$0xf]
    %v272 = vld [vmem:[#allocation7 + $0x90] sm:$0xff]
    %v273 = vld [vmem:[#allocation7 + $0x98] sm:$0xf]
    %v274 = vld [vmem:[#allocation7 + $0x9c] sm:$0xff]
    %v275 = vld [vmem:[#allocation7 + $0xa4] sm:$0xf]
    %v276 = vld [vmem:[#allocation7 + $0xa8] sm:$0xff]
    %v277 = vld [vmem:[#allocation7 + $0xb0] sm:$0xf]
    %v278 = vld [vmem:[#allocation7 + $0xb4] sm:$0xff]
    %v279 = vld [vmem:[#allocation7 + $0xbc] sm:$0xf]
    %v281 = vperm.slane %v173, 0
    %v282 = vperm.slane %v173, 1
    %v283 = vperm.slane %v173, 2
    %v319 = vunpack.c.l.b16 %v248
    %v320 = vunpack.c.h.b16 %v248
    %v321 = vunpack.c.l.b16 %v249
    %v322 = vunpack.c.l.b16 %v250
    %v323 = vunpack.c.h.b16 %v250
    %v324 = vunpack.c.l.b16 %v251
    %v325 = vunpack.c.l.b16 %v252
    %v326 = vunpack.c.h.b16 %v252
    %v327 = vunpack.c.l.b16 %v253
    %v328 = vunpack.c.l.b16 %v254
    %v329 = vunpack.c.h.b16 %v254
    %v330 = vunpack.c.l.b16 %v255
    %v331 = vunpack.c.l.b16 %v256
    %v332 = vunpack.c.h.b16 %v256
    %v333 = vunpack.c.l.b16 %v257
    %v334 = vunpack.c.l.b16 %v258
    %v335 = vunpack.c.h.b16 %v258
    %v336 = vunpack.c.l.b16 %v259
    %v337 = vunpack.c.l.b16 %v260
    %v338 = vunpack.c.h.b16 %v260
    %v339 = vunpack.c.l.b16 %v261
    %v340 = vunpack.c.l.b16 %v262
    %v341 = vunpack.c.h.b16 %v262
    %v342 = vunpack.c.l.b16 %v263
    %v343 = vunpack.c.l.b16 %v264
    %v344 = vunpack.c.h.b16 %v264
    %v345 = vunpack.c.l.b16 %v265
    %v346 = vunpack.c.l.b16 %v266
    %v347 = vunpack.c.h.b16 %v266
    %v348 = vunpack.c.l.b16 %v267
    %v349 = vunpack.c.l.b16 %v268
    %v350 = vunpack.c.h.b16 %v268
    %v351 = vunpack.c.l.b16 %v269
    %v352 = vunpack.c.l.b16 %v270
    %v353 = vunpack.c.h.b16 %v270
    %v354 = vunpack.c.l.b16 %v271
    %v355 = vunpack.c.l.b16 %v272
    %v356 = vunpack.c.h.b16 %v272
    %v357 = vunpack.c.l.b16 %v273
    %v358 = vunpack.c.l.b16 %v274
    %v359 = vunpack.c.h.b16 %v274
    %v360 = vunpack.c.l.b16 %v275
    %v361 = vunpack.c.l.b16 %v276
    %v362 = vunpack.c.h.b16 %v276
    %v363 = vunpack.c.l.b16 %v277
    %v364 = vunpack.c.l.b16 %v278
    %v365 = vunpack.c.h.b16 %v278
    %v366 = vunpack.c.l.b16 %v279
    %v367 = vpack.c.b16 %v322, %v319
    %v368 = vpack.c.b16 %v323, %v320
    %v369 = vpack.c.b16 %v324, %v321
    %v370 = vpack.c.b16 %v328, %v325
    %v371 = vpack.c.b16 %v329, %v326
    %v372 = vpack.c.b16 %v330, %v327
    %v373 = vpack.c.b16 %v334, %v331
    %v374 = vpack.c.b16 %v335, %v332
    %v375 = vpack.c.b16 %v336, %v333
    %v376 = vpack.c.b16 %v340, %v337
    %v377 = vpack.c.b16 %v341, %v338
    %v378 = vpack.c.b16 %v342, %v339
    %v379 = vpack.c.b16 %v346, %v343
    %v380 = vpack.c.b16 %v347, %v344
    %v381 = vpack.c.b16 %v348, %v345
    %v382 = vpack.c.b16 %v352, %v349
    %v383 = vpack.c.b16 %v353, %v350
    %v384 = vpack.c.b16 %v354, %v351
    %v385 = vpack.c.b16 %v358, %v355
    %v386 = vpack.c.b16 %v359, %v356
    %v387 = vpack.c.b16 %v360, %v357
    %v388 = vpack.c.b16 %v364, %v361
    %v389 = vpack.c.b16 %v365, %v362
    %v390 = vpack.c.b16 %v366, %v363
    %415 = vmatpush.bf16.msra.mxu0 %v388
    %416 = vmatpush.bf16.msra.mxu0 %v385
    %417 = vmatpush.bf16.msra.mxu0 %v382
    %418 = vmatpush.bf16.msra.mxu0 %v379
    %419 = vmatpush.bf16.msra.mxu0 %v376
    %420 = vmatpush.bf16.msra.mxu0 %v373
    %421 = vmatpush.bf16.msra.mxu0 %v370
    %422 = vmatpush.bf16.msra.mxu0 %v367
    %423 = vmatmul.bf16.gmra.mxu0 %v247
    %v424 = vpop.f32.mrf.mxu0
    %v425 = vadd.f32 %v281, %v424
    %v426 = vpop.f32.mrf.mxu0
    %427 = vdwg.mxu0
    %428 = vmatpush.bf16.msra.mxu0 %v389
    %429 = vmatpush.bf16.msra.mxu0 %v386
    %430 = vmatpush.bf16.msra.mxu0 %v383
    %431 = vmatpush.bf16.msra.mxu0 %v380
    %432 = vmatpush.bf16.msra.mxu0 %v377
    %433 = vmatpush.bf16.msra.mxu0 %v374
    %434 = vmatpush.bf16.msra.mxu0 %v371
    %435 = vmatpush.bf16.msra.mxu0 %v368
    %436 = vmatmul.bf16.gmra.mxu0 %v247
    %v437 = vpop.f32.mrf.mxu0
    %v438 = vadd.f32 %v282, %v437
    %v439 = vpop.f32.mrf.mxu0
    %440 = vdwg.mxu0
    %441 = vmatpush.bf16.msra.mxu0 %v390
    %442 = vmatpush.bf16.msra.mxu0 %v387
    %443 = vmatpush.bf16.msra.mxu0 %v384
    %444 = vmatpush.bf16.msra.mxu0 %v381
    %445 = vmatpush.bf16.msra.mxu0 %v378
    %446 = vmatpush.bf16.msra.mxu0 %v375
    %447 = vmatpush.bf16.msra.mxu0 %v372
    %448 = vmatpush.bf16.msra.mxu0 %v369
    %449 = vmatmul.bf16.gmra.mxu0 %v247
    %v450 = vpop.f32.mrf.mxu0
    %v451 = vadd.f32 %v283, %v450
    %v452 = vpop.f32.mrf.mxu0
    %453 = vdwg.mxu0
    %v454 = vpack.c.bf16 %v246, %v246
    %v455 = vld [vmem:[#allocation9] sm:$0xff]
    %v456 = vld [vmem:[#allocation9 + $0x8] sm:$0xf]
    %v457 = vld [vmem:[#allocation9 + $0xc] sm:$0xff]
    %v458 = vld [vmem:[#allocation9 + $0x14] sm:$0xf]
    %v459 = vld [vmem:[#allocation9 + $0x18] sm:$0xff]
    %v460 = vld [vmem:[#allocation9 + $0x20] sm:$0xf]
    %v461 = vld [vmem:[#allocation9 + $0x24] sm:$0xff]
    %v462 = vld [vmem:[#allocation9 + $0x2c] sm:$0xf]
    %v463 = vld [vmem:[#allocation9 + $0x30] sm:$0xff]
    %v464 = vld [vmem:[#allocation9 + $0x38] sm:$0xf]
    %v465 = vld [vmem:[#allocation9 + $0x3c] sm:$0xff]
    %v466 = vld [vmem:[#allocation9 + $0x44] sm:$0xf]
    %v467 = vld [vmem:[#allocation9 + $0x48] sm:$0xff]
    %v468 = vld [vmem:[#allocation9 + $0x50] sm:$0xf]
    %v469 = vld [vmem:[#allocation9 + $0x54] sm:$0xff]
    %v470 = vld [vmem:[#allocation9 + $0x5c] sm:$0xf]
    %v471 = vld [vmem:[#allocation9 + $0x60] sm:$0xff]
    %v472 = vld [vmem:[#allocation9 + $0x68] sm:$0xf]
    %v473 = vld [vmem:[#allocation9 + $0x6c] sm:$0xff]
    %v474 = vld [vmem:[#allocation9 + $0x74] sm:$0xf]
    %v475 = vld [vmem:[#allocation9 + $0x78] sm:$0xff]
    %v476 = vld [vmem:[#allocation9 + $0x80] sm:$0xf]
    %v477 = vld [vmem:[#allocation9 + $0x84] sm:$0xff]
    %v478 = vld [vmem:[#allocation9 + $0x8c] sm:$0xf]
    %v479 = vld [vmem:[#allocation9 + $0x90] sm:$0xff]
    %v480 = vld [vmem:[#allocation9 + $0x98] sm:$0xf]
    %v481 = vld [vmem:[#allocation9 + $0x9c] sm:$0xff]
    %v482 = vld [vmem:[#allocation9 + $0xa4] sm:$0xf]
    %v483 = vld [vmem:[#allocation9 + $0xa8] sm:$0xff]
    %v484 = vld [vmem:[#allocation9 + $0xb0] sm:$0xf]
    %v485 = vld [vmem:[#allocation9 + $0xb4] sm:$0xff]
    %v486 = vld [vmem:[#allocation9 + $0xbc] sm:$0xf]
    %v488 = vperm.slane %v176, 0
    %v489 = vperm.slane %v176, 1
    %v490 = vperm.slane %v176, 2
    %v526 = vunpack.c.l.b16 %v455
    %v527 = vunpack.c.h.b16 %v455
    %v528 = vunpack.c.l.b16 %v456
    %v529 = vunpack.c.l.b16 %v457
    %v530 = vunpack.c.h.b16 %v457
    %v531 = vunpack.c.l.b16 %v458
    %v532 = vunpack.c.l.b16 %v459
    %v533 = vunpack.c.h.b16 %v459
    %v534 = vunpack.c.l.b16 %v460
    %v535 = vunpack.c.l.b16 %v461
    %v536 = vunpack.c.h.b16 %v461
    %v537 = vunpack.c.l.b16 %v462
    %v538 = vunpack.c.l.b16 %v463
    %v539 = vunpack.c.h.b16 %v463
    %v540 = vunpack.c.l.b16 %v464
    %v541 = vunpack.c.l.b16 %v465
    %v542 = vunpack.c.h.b16 %v465
    %v543 = vunpack.c.l.b16 %v466
    %v544 = vunpack.c.l.b16 %v467
    %v545 = vunpack.c.h.b16 %v467
    %v546 = vunpack.c.l.b16 %v468
    %v547 = vunpack.c.l.b16 %v469
    %v548 = vunpack.c.h.b16 %v469
    %v549 = vunpack.c.l.b16 %v470
    %v550 = vunpack.c.l.b16 %v471
    %v551 = vunpack.c.h.b16 %v471
    %v552 = vunpack.c.l.b16 %v472
    %v553 = vunpack.c.l.b16 %v473
    %v554 = vunpack.c.h.b16 %v473
    %v555 = vunpack.c.l.b16 %v474
    %v556 = vunpack.c.l.b16 %v475
    %v557 = vunpack.c.h.b16 %v475
    %v558 = vunpack.c.l.b16 %v476
    %v559 = vunpack.c.l.b16 %v477
    %v560 = vunpack.c.h.b16 %v477
    %v561 = vunpack.c.l.b16 %v478
    %v562 = vunpack.c.l.b16 %v479
    %v563 = vunpack.c.h.b16 %v479
    %v564 = vunpack.c.l.b16 %v480
    %v565 = vunpack.c.l.b16 %v481
    %v566 = vunpack.c.h.b16 %v481
    %v567 = vunpack.c.l.b16 %v482
    %v568 = vunpack.c.l.b16 %v483
    %v569 = vunpack.c.h.b16 %v483
    %v570 = vunpack.c.l.b16 %v484
    %v571 = vunpack.c.l.b16 %v485
    %v572 = vunpack.c.h.b16 %v485
    %v573 = vunpack.c.l.b16 %v486
    %v574 = vpack.c.b16 %v529, %v526
    %v575 = vpack.c.b16 %v530, %v527
    %v576 = vpack.c.b16 %v531, %v528
    %v577 = vpack.c.b16 %v535, %v532
    %v578 = vpack.c.b16 %v536, %v533
    %v579 = vpack.c.b16 %v537, %v534
    %v580 = vpack.c.b16 %v541, %v538
    %v581 = vpack.c.b16 %v542, %v539
    %v582 = vpack.c.b16 %v543, %v540
    %v583 = vpack.c.b16 %v547, %v544
    %v584 = vpack.c.b16 %v548, %v545
    %v585 = vpack.c.b16 %v549, %v546
    %v586 = vpack.c.b16 %v553, %v550
    %v587 = vpack.c.b16 %v554, %v551
    %v588 = vpack.c.b16 %v555, %v552
    %v589 = vpack.c.b16 %v559, %v556
    %v590 = vpack.c.b16 %v560, %v557
    %v591 = vpack.c.b16 %v561, %v558
    %v592 = vpack.c.b16 %v565, %v562
    %v593 = vpack.c.b16 %v566, %v563
    %v594 = vpack.c.b16 %v567, %v564
    %v595 = vpack.c.b16 %v571, %v568
    %v596 = vpack.c.b16 %v572, %v569
    %v597 = vpack.c.b16 %v573, %v570
    %622 = vmatpush.bf16.msra.mxu0 %v595
    %623 = vmatpush.bf16.msra.mxu0 %v592
    %624 = vmatpush.bf16.msra.mxu0 %v589
    %625 = vmatpush.bf16.msra.mxu0 %v586
    %626 = vmatpush.bf16.msra.mxu0 %v583
    %627 = vmatpush.bf16.msra.mxu0 %v580
    %628 = vmatpush.bf16.msra.mxu0 %v577
    %629 = vmatpush.bf16.msra.mxu0 %v574
    %630 = vmatmul.bf16.gmra.mxu0 %v454
    %v631 = vpop.f32.mrf.mxu0
    %v632 = vadd.f32 %v488, %v631
    %v633 = vpop.f32.mrf.mxu0
    %634 = vdwg.mxu0
    %635 = vmatpush.bf16.msra.mxu0 %v596
    %636 = vmatpush.bf16.msra.mxu0 %v593
    %637 = vmatpush.bf16.msra.mxu0 %v590
    %638 = vmatpush.bf16.msra.mxu0 %v587
    %639 = vmatpush.bf16.msra.mxu0 %v584
    %640 = vmatpush.bf16.msra.mxu0 %v581
    %641 = vmatpush.bf16.msra.mxu0 %v578
    %642 = vmatpush.bf16.msra.mxu0 %v575
    %643 = vmatmul.bf16.gmra.mxu0 %v454
    %v644 = vpop.f32.mrf.mxu0
    %v645 = vadd.f32 %v489, %v644
    %v646 = vpop.f32.mrf.mxu0
    %647 = vdwg.mxu0
    %648 = vmatpush.bf16.msra.mxu0 %v597
    %649 = vmatpush.bf16.msra.mxu0 %v594
    %650 = vmatpush.bf16.msra.mxu0 %v591
    %651 = vmatpush.bf16.msra.mxu0 %v588
    %652 = vmatpush.bf16.msra.mxu0 %v585
    %653 = vmatpush.bf16.msra.mxu0 %v582
    %654 = vmatpush.bf16.msra.mxu0 %v579
    %655 = vmatpush.bf16.msra.mxu0 %v576
    %656 = vmatmul.bf16.gmra.mxu0 %v454
    %v657 = vpop.f32.mrf.mxu0
    %v658 = vadd.f32 %v490, %v657
    %v659 = vpop.f32.mrf.mxu0
    %660 = vdwg.mxu0
    %v661 = vadd.f32 %v425, %v632
    %v662 = vxor.u32 %v661, 2147483648
    %v663 = vmul.f32 %v662, 1.442695
    %v664 = vpow.pop %v663
    %v665 = vadd.f32 %v664, 1.0
    %v666 = vrcp.pop %v665
    %v667 = vmul.f32 %v665, %v666
    %v668 = vsub.f32 1.0, %v667
    %v669 = vmul.f32 %v666, %v668
    %v670 = vadd.f32 %v666, %v669
    %vm671 = vweird.f32 %v665
    %vm672 = vweird.f32 %v666
    %vm673 = vmor %vm671, %vm672
    %v674 = vsel %vm673, %v666, %v670
    %v675 = vand.u32 2147483647, %v665
    %vm676 = vcmp.eq.f32.partialorder %v675, 8.507059e+37
    %v677 = vand.u32 %v665, 2147483648
    %v678 = vor.u32 1.1754944e-38, %v677
    %v679 = vsel %vm676, %v678, %v674
    %v680 = vmul.f32 1.0, %v679
    %v681 = vadd.f32 %v438, %v645
    %v682 = vxor.u32 %v681, 2147483648
    %v683 = vmul.f32 %v682, 1.442695
    %v684 = vpow.pop %v683
    %v685 = vadd.f32 %v684, 1.0
    %v686 = vrcp.pop %v685
    %v687 = vmul.f32 %v685, %v686
    %v688 = vsub.f32 1.0, %v687
    %v689 = vmul.f32 %v686, %v688
    %v690 = vadd.f32 %v686, %v689
    %vm691 = vweird.f32 %v685
    %vm692 = vweird.f32 %v686
    %vm693 = vmor %vm691, %vm692
    %v694 = vsel %vm693, %v686, %v690
    %v695 = vand.u32 2147483647, %v685
    %vm696 = vcmp.eq.f32.partialorder %v695, 8.507059e+37
    %v697 = vand.u32 %v685, 2147483648
    %v698 = vor.u32 1.1754944e-38, %v697
    %v699 = vsel %vm696, %v698, %v694
    %v700 = vmul.f32 1.0, %v699
    %v701 = vmul.f32 %v680, %v658
    %v702 = vadd.f32 %v451, %v701
    %v703 = vtanh.pop %v702
    %v704 = vsub.f32 1.0, %v700
    %v705 = vmul.f32 %v704, %v703
    %v706 = vmul.f32 %v700, %v246
    %v707 = vadd.f32 %v705, %v706
    %708 = vst [vmem:[#allocation17] sm:$0xff] %v707
    %s709 = scalar_lea.vmem [#allocation17], 8
    %v710 = vld [vmem:[%s709] sm:$0xff]
    %v711 = vpack.c.bf16 %v707, %v707
    %s712 = scalar_lea.vmem [#allocation7], 192
    %v713 = vld [vmem:[%s712] sm:$0xff]
    %v714 = vld [vmem:[%s712 + $0x8] sm:$0xf]
    %v715 = vld [vmem:[%s712 + $0xc] sm:$0xff]
    %v716 = vld [vmem:[%s712 + $0x14] sm:$0xf]
    %v717 = vld [vmem:[%s712 + $0x18] sm:$0xff]
    %v718 = vld [vmem:[%s712 + $0x20] sm:$0xf]
    %v719 = vld [vmem:[%s712 + $0x24] sm:$0xff]
    %v720 = vld [vmem:[%s712 + $0x2c] sm:$0xf]
    %v721 = vld [vmem:[%s712 + $0x30] sm:$0xff]
    %v722 = vld [vmem:[%s712 + $0x38] sm:$0xf]
    %v723 = vld [vmem:[%s712 + $0x3c] sm:$0xff]
    %v724 = vld [vmem:[%s712 + $0x44] sm:$0xf]
    %v725 = vld [vmem:[%s712 + $0x48] sm:$0xff]
    %v726 = vld [vmem:[%s712 + $0x50] sm:$0xf]
    %v727 = vld [vmem:[%s712 + $0x54] sm:$0xff]
    %v728 = vld [vmem:[%s712 + $0x5c] sm:$0xf]
    %v729 = vld [vmem:[%s712 + $0x60] sm:$0xff]
    %v730 = vld [vmem:[%s712 + $0x68] sm:$0xf]
    %v731 = vld [vmem:[%s712 + $0x6c] sm:$0xff]
    %v732 = vld [vmem:[%s712 + $0x74] sm:$0xf]
    %v733 = vld [vmem:[%s712 + $0x78] sm:$0xff]
    %v734 = vld [vmem:[%s712 + $0x80] sm:$0xf]
    %v735 = vld [vmem:[%s712 + $0x84] sm:$0xff]
    %v736 = vld [vmem:[%s712 + $0x8c] sm:$0xf]
    %v737 = vld [vmem:[%s712 + $0x90] sm:$0xff]
    %v738 = vld [vmem:[%s712 + $0x98] sm:$0xf]
    %v739 = vld [vmem:[%s712 + $0x9c] sm:$0xff]
    %v740 = vld [vmem:[%s712 + $0xa4] sm:$0xf]
    %v741 = vld [vmem:[%s712 + $0xa8] sm:$0xff]
    %v742 = vld [vmem:[%s712 + $0xb0] sm:$0xf]
    %v743 = vld [vmem:[%s712 + $0xb4] sm:$0xff]
    %v744 = vld [vmem:[%s712 + $0xbc] sm:$0xf]
    %v746 = vperm.slane %v175, 0
    %v747 = vperm.slane %v175, 1
    %v748 = vperm.slane %v175, 2
    %v784 = vunpack.c.l.b16 %v713
    %v785 = vunpack.c.h.b16 %v713
    %v786 = vunpack.c.l.b16 %v714
    %v787 = vunpack.c.l.b16 %v715
    %v788 = vunpack.c.h.b16 %v715
    %v789 = vunpack.c.l.b16 %v716
    %v790 = vunpack.c.l.b16 %v717
    %v791 = vunpack.c.h.b16 %v717
    %v792 = vunpack.c.l.b16 %v718
    %v793 = vunpack.c.l.b16 %v719
    %v794 = vunpack.c.h.b16 %v719
    %v795 = vunpack.c.l.b16 %v720
    %v796 = vunpack.c.l.b16 %v721
    %v797 = vunpack.c.h.b16 %v721
    %v798 = vunpack.c.l.b16 %v722
    %v799 = vunpack.c.l.b16 %v723
    %v800 = vunpack.c.h.b16 %v723
    %v801 = vunpack.c.l.b16 %v724
    %v802 = vunpack.c.l.b16 %v725
    %v803 = vunpack.c.h.b16 %v725
    %v804 = vunpack.c.l.b16 %v726
    %v805 = vunpack.c.l.b16 %v727
    %v806 = vunpack.c.h.b16 %v727
    %v807 = vunpack.c.l.b16 %v728
    %v808 = vunpack.c.l.b16 %v729
    %v809 = vunpack.c.h.b16 %v729
    %v810 = vunpack.c.l.b16 %v730
    %v811 = vunpack.c.l.b16 %v731
    %v812 = vunpack.c.h.b16 %v731
    %v813 = vunpack.c.l.b16 %v732
    %v814 = vunpack.c.l.b16 %v733
    %v815 = vunpack.c.h.b16 %v733
    %v816 = vunpack.c.l.b16 %v734
    %v817 = vunpack.c.l.b16 %v735
    %v818 = vunpack.c.h.b16 %v735
    %v819 = vunpack.c.l.b16 %v736
    %v820 = vunpack.c.l.b16 %v737
    %v821 = vunpack.c.h.b16 %v737
    %v822 = vunpack.c.l.b16 %v738
    %v823 = vunpack.c.l.b16 %v739
    %v824 = vunpack.c.h.b16 %v739
    %v825 = vunpack.c.l.b16 %v740
    %v826 = vunpack.c.l.b16 %v741
    %v827 = vunpack.c.h.b16 %v741
    %v828 = vunpack.c.l.b16 %v742
    %v829 = vunpack.c.l.b16 %v743
    %v830 = vunpack.c.h.b16 %v743
    %v831 = vunpack.c.l.b16 %v744
    %v832 = vpack.c.b16 %v787, %v784
    %v833 = vpack.c.b16 %v788, %v785
    %v834 = vpack.c.b16 %v789, %v786
    %v835 = vpack.c.b16 %v793, %v790
    %v836 = vpack.c.b16 %v794, %v791
    %v837 = vpack.c.b16 %v795, %v792
    %v838 = vpack.c.b16 %v799, %v796
    %v839 = vpack.c.b16 %v800, %v797
    %v840 = vpack.c.b16 %v801, %v798
    %v841 = vpack.c.b16 %v805, %v802
    %v842 = vpack.c.b16 %v806, %v803
    %v843 = vpack.c.b16 %v807, %v804
    %v844 = vpack.c.b16 %v811, %v808
    %v845 = vpack.c.b16 %v812, %v809
    %v846 = vpack.c.b16 %v813, %v810
    %v847 = vpack.c.b16 %v817, %v814
    %v848 = vpack.c.b16 %v818, %v815
    %v849 = vpack.c.b16 %v819, %v816
    %v850 = vpack.c.b16 %v823, %v820
    %v851 = vpack.c.b16 %v824, %v821
    %v852 = vpack.c.b16 %v825, %v822
    %v853 = vpack.c.b16 %v829, %v826
    %v854 = vpack.c.b16 %v830, %v827
    %v855 = vpack.c.b16 %v831, %v828
    %880 = vmatpush.bf16.msra.mxu0 %v853
    %881 = vmatpush.bf16.msra.mxu0 %v850
    %882 = vmatpush.bf16.msra.mxu0 %v847
    %883 = vmatpush.bf16.msra.mxu0 %v844
    %884 = vmatpush.bf16.msra.mxu0 %v841
    %885 = vmatpush.bf16.msra.mxu0 %v838
    %886 = vmatpush.bf16.msra.mxu0 %v835
    %887 = vmatpush.bf16.msra.mxu0 %v832
    %888 = vmatmul.bf16.gmra.mxu0 %v711
    %v889 = vpop.f32.mrf.mxu0
    %v890 = vadd.f32 %v746, %v889
    %v891 = vpop.f32.mrf.mxu0
    %892 = vdwg.mxu0
    %893 = vmatpush.bf16.msra.mxu0 %v854
    %894 = vmatpush.bf16.msra.mxu0 %v851
    %895 = vmatpush.bf16.msra.mxu0 %v848
    %896 = vmatpush.bf16.msra.mxu0 %v845
    %897 = vmatpush.bf16.msra.mxu0 %v842
    %898 = vmatpush.bf16.msra.mxu0 %v839
    %899 = vmatpush.bf16.msra.mxu0 %v836
    %900 = vmatpush.bf16.msra.mxu0 %v833
    %901 = vmatmul.bf16.gmra.mxu0 %v711
    %v902 = vpop.f32.mrf.mxu0
    %v903 = vadd.f32 %v747, %v902
    %v904 = vpop.f32.mrf.mxu0
    %905 = vdwg.mxu0
    %906 = vmatpush.bf16.msra.mxu0 %v855
    %907 = vmatpush.bf16.msra.mxu0 %v852
    %908 = vmatpush.bf16.msra.mxu0 %v849
    %909 = vmatpush.bf16.msra.mxu0 %v846
    %910 = vmatpush.bf16.msra.mxu0 %v843
    %911 = vmatpush.bf16.msra.mxu0 %v840
    %912 = vmatpush.bf16.msra.mxu0 %v837
    %913 = vmatpush.bf16.msra.mxu0 %v834
    %914 = vmatmul.bf16.gmra.mxu0 %v711
    %v915 = vpop.f32.mrf.mxu0
    %v916 = vadd.f32 %v748, %v915
    %v917 = vpop.f32.mrf.mxu0
    %918 = vdwg.mxu0
    %v919 = vpack.c.bf16 %v710, %v710
    %s920 = scalar_lea.vmem [#allocation9], 192
    %v921 = vld [vmem:[%s920] sm:$0xff]
    %v922 = vld [vmem:[%s920 + $0x8] sm:$0xf]
    %v923 = vld [vmem:[%s920 + $0xc] sm:$0xff]
    %v924 = vld [vmem:[%s920 + $0x14] sm:$0xf]
    %v925 = vld [vmem:[%s920 + $0x18] sm:$0xff]
    %v926 = vld [vmem:[%s920 + $0x20] sm:$0xf]
    %v927 = vld [vmem:[%s920 + $0x24] sm:$0xff]
    %v928 = vld [vmem:[%s920 + $0x2c] sm:$0xf]
    %v929 = vld [vmem:[%s920 + $0x30] sm:$0xff]
    %v930 = vld [vmem:[%s920 + $0x38] sm:$0xf]
    %v931 = vld [vmem:[%s920 + $0x3c] sm:$0xff]
    %v932 = vld [vmem:[%s920 + $0x44] sm:$0xf]
    %v933 = vld [vmem:[%s920 + $0x48] sm:$0xff]
    %v934 = vld [vmem:[%s920 + $0x50] sm:$0xf]
    %v935 = vld [vmem:[%s920 + $0x54] sm:$0xff]
    %v936 = vld [vmem:[%s920 + $0x5c] sm:$0xf]
    %v937 = vld [vmem:[%s920 + $0x60] sm:$0xff]
    %v938 = vld [vmem:[%s920 + $0x68] sm:$0xf]
    %v939 = vld [vmem:[%s920 + $0x6c] sm:$0xff]
    %v940 = vld [vmem:[%s920 + $0x74] sm:$0xf]
    %v941 = vld [vmem:[%s920 + $0x78] sm:$0xff]
    %v942 = vld [vmem:[%s920 + $0x80] sm:$0xf]
    %v943 = vld [vmem:[%s920 + $0x84] sm:$0xff]
    %v944 = vld [vmem:[%s920 + $0x8c] sm:$0xf]
    %v945 = vld [vmem:[%s920 + $0x90] sm:$0xff]
    %v946 = vld [vmem:[%s920 + $0x98] sm:$0xf]
    %v947 = vld [vmem:[%s920 + $0x9c] sm:$0xff]
    %v948 = vld [vmem:[%s920 + $0xa4] sm:$0xf]
    %v949 = vld [vmem:[%s920 + $0xa8] sm:$0xff]
    %v950 = vld [vmem:[%s920 + $0xb0] sm:$0xf]
    %v951 = vld [vmem:[%s920 + $0xb4] sm:$0xff]
    %v952 = vld [vmem:[%s920 + $0xbc] sm:$0xf]
    %v954 = vperm.slane %v178, 0
    %v955 = vperm.slane %v178, 1
    %v956 = vperm.slane %v178, 2
    %v992 = vunpack.c.l.b16 %v921
    %v993 = vunpack.c.h.b16 %v921
    %v994 = vunpack.c.l.b16 %v922
    %v995 = vunpack.c.l.b16 %v923
    %v996 = vunpack.c.h.b16 %v923
    %v997 = vunpack.c.l.b16 %v924
    %v998 = vunpack.c.l.b16 %v925
    %v999 = vunpack.c.h.b16 %v925
    %v1000 = vunpack.c.l.b16 %v926
    %v1001 = vunpack.c.l.b16 %v927
    %v1002 = vunpack.c.h.b16 %v927
    %v1003 = vunpack.c.l.b16 %v928
    %v1004 = vunpack.c.l.b16 %v929
    %v1005 = vunpack.c.h.b16 %v929
    %v1006 = vunpack.c.l.b16 %v930
    %v1007 = vunpack.c.l.b16 %v931
    %v1008 = vunpack.c.h.b16 %v931
    %v1009 = vunpack.c.l.b16 %v932
    %v1010 = vunpack.c.l.b16 %v933
    %v1011 = vunpack.c.h.b16 %v933
    %v1012 = vunpack.c.l.b16 %v934
    %v1013 = vunpack.c.l.b16 %v935
    %v1014 = vunpack.c.h.b16 %v935
    %v1015 = vunpack.c.l.b16 %v936
    %v1016 = vunpack.c.l.b16 %v937
    %v1017 = vunpack.c.h.b16 %v937
    %v1018 = vunpack.c.l.b16 %v938
    %v1019 = vunpack.c.l.b16 %v939
    %v1020 = vunpack.c.h.b16 %v939
    %v1021 = vunpack.c.l.b16 %v940
    %v1022 = vunpack.c.l.b16 %v941
    %v1023 = vunpack.c.h.b16 %v941
    %v1024 = vunpack.c.l.b16 %v942
    %v1025 = vunpack.c.l.b16 %v943
    %v1026 = vunpack.c.h.b16 %v943
    %v1027 = vunpack.c.l.b16 %v944
    %v1028 = vunpack.c.l.b16 %v945
    %v1029 = vunpack.c.h.b16 %v945
    %v1030 = vunpack.c.l.b16 %v946
    %v1031 = vunpack.c.l.b16 %v947
    %v1032 = vunpack.c.h.b16 %v947
    %v1033 = vunpack.c.l.b16 %v948
    %v1034 = vunpack.c.l.b16 %v949
    %v1035 = vunpack.c.h.b16 %v949
    %v1036 = vunpack.c.l.b16 %v950
    %v1037 = vunpack.c.l.b16 %v951
    %v1038 = vunpack.c.h.b16 %v951
    %v1039 = vunpack.c.l.b16 %v952
    %v1040 = vpack.c.b16 %v995, %v992
    %v1041 = vpack.c.b16 %v996, %v993
    %v1042 = vpack.c.b16 %v997, %v994
    %v1043 = vpack.c.b16 %v1001, %v998
    %v1044 = vpack.c.b16 %v1002, %v999
    %v1045 = vpack.c.b16 %v1003, %v1000
    %v1046 = vpack.c.b16 %v1007, %v1004
    %v1047 = vpack.c.b16 %v1008, %v1005
    %v1048 = vpack.c.b16 %v1009, %v1006
    %v1049 = vpack.c.b16 %v1013, %v1010
    %v1050 = vpack.c.b16 %v1014, %v1011
    %v1051 = vpack.c.b16 %v1015, %v1012
    %v1052 = vpack.c.b16 %v1019, %v1016
    %v1053 = vpack.c.b16 %v1020, %v1017
    %v1054 = vpack.c.b16 %v1021, %v1018
    %v1055 = vpack.c.b16 %v1025, %v1022
    %v1056 = vpack.c.b16 %v1026, %v1023
    %v1057 = vpack.c.b16 %v1027, %v1024
    %v1058 = vpack.c.b16 %v1031, %v1028
    %v1059 = vpack.c.b16 %v1032, %v1029
    %v1060 = vpack.c.b16 %v1033, %v1030
    %v1061 = vpack.c.b16 %v1037, %v1034
    %v1062 = vpack.c.b16 %v1038, %v1035
    %v1063 = vpack.c.b16 %v1039, %v1036
    %1088 = vmatpush.bf16.msra.mxu0 %v1061
    %1089 = vmatpush.bf16.msra.mxu0 %v1058
    %1090 = vmatpush.bf16.msra.mxu0 %v1055
    %1091 = vmatpush.bf16.msra.mxu0 %v1052
    %1092 = vmatpush.bf16.msra.mxu0 %v1049
    %1093 = vmatpush.bf16.msra.mxu0 %v1046
    %1094 = vmatpush.bf16.msra.mxu0 %v1043
    %1095 = vmatpush.bf16.msra.mxu0 %v1040
    %1096 = vmatmul.bf16.gmra.mxu0 %v919
    %v1097 = vpop.f32.mrf.mxu0
    %v1098 = vadd.f32 %v954, %v1097
    %v1099 = vpop.f32.mrf.mxu0
    %1100 = vdwg.mxu0
    %1101 = vmatpush.bf16.msra.mxu0 %v1062
    %1102 = vmatpush.bf16.msra.mxu0 %v1059
    %1103 = vmatpush.bf16.msra.mxu0 %v1056
    %1104 = vmatpush.bf16.msra.mxu0 %v1053
    %1105 = vmatpush.bf16.msra.mxu0 %v1050
    %1106 = vmatpush.bf16.msra.mxu0 %v1047
    %1107 = vmatpush.bf16.msra.mxu0 %v1044
    %1108 = vmatpush.bf16.msra.mxu0 %v1041
    %1109 = vmatmul.bf16.gmra.mxu0 %v919
    %v1110 = vpop.f32.mrf.mxu0
    %v1111 = vadd.f32 %v955, %v1110
    %v1112 = vpop.f32.mrf.mxu0
    %1113 = vdwg.mxu0
    %1114 = vmatpush.bf16.msra.mxu0 %v1063
    %1115 = vmatpush.bf16.msra.mxu0 %v1060
    %1116 = vmatpush.bf16.msra.mxu0 %v1057
    %1117 = vmatpush.bf16.msra.mxu0 %v1054
    %1118 = vmatpush.bf16.msra.mxu0 %v1051
    %1119 = vmatpush.bf16.msra.mxu0 %v1048
    %1120 = vmatpush.bf16.msra.mxu0 %v1045
    %1121 = vmatpush.bf16.msra.mxu0 %v1042
    %1122 = vmatmul.bf16.gmra.mxu0 %v919
    %v1123 = vpop.f32.mrf.mxu0
    %v1124 = vadd.f32 %v956, %v1123
    %v1125 = vpop.f32.mrf.mxu0
    %1126 = vdwg.mxu0
    %v1127 = vadd.f32 %v890, %v1098
    %v1128 = vxor.u32 %v1127, 2147483648
    %v1129 = vmul.f32 %v1128, 1.442695
    %v1130 = vpow.pop %v1129
    %v1131 = vadd.f32 %v1130, 1.0
    %v1132 = vrcp.pop %v1131
    %v1133 = vmul.f32 %v1131, %v1132
    %v1134 = vsub.f32 1.0, %v1133
    %v1135 = vmul.f32 %v1132, %v1134
    %v1136 = vadd.f32 %v1132, %v1135
    %vm1137 = vweird.f32 %v1131
    %vm1138 = vweird.f32 %v1132
    %vm1139 = vmor %vm1137, %vm1138
    %v1140 = vsel %vm1139, %v1132, %v1136
    %v1141 = vand.u32 2147483647, %v1131
    %vm1142 = vcmp.eq.f32.partialorder %v1141, 8.507059e+37
    %v1143 = vand.u32 %v1131, 2147483648
    %v1144 = vor.u32 1.1754944e-38, %v1143
    %v1145 = vsel %vm1142, %v1144, %v1140
    %v1146 = vmul.f32 1.0, %v1145
    %v1147 = vadd.f32 %v903, %v1111
    %v1148 = vxor.u32 %v1147, 2147483648
    %v1149 = vmul.f32 %v1148, 1.442695
    %v1150 = vpow.pop %v1149
    %v1151 = vadd.f32 %v1150, 1.0
    %v1152 = vrcp.pop %v1151
    %v1153 = vmul.f32 %v1151, %v1152
    %v1154 = vsub.f32 1.0, %v1153
    %v1155 = vmul.f32 %v1152, %v1154
    %v1156 = vadd.f32 %v1152, %v1155
    %vm1157 = vweird.f32 %v1151
    %vm1158 = vweird.f32 %v1152
    %vm1159 = vmor %vm1157, %vm1158
    %v1160 = vsel %vm1159, %v1152, %v1156
    %v1161 = vand.u32 2147483647, %v1151
    %vm1162 = vcmp.eq.f32.partialorder %v1161, 8.507059e+37
    %v1163 = vand.u32 %v1151, 2147483648
    %v1164 = vor.u32 1.1754944e-38, %v1163
    %v1165 = vsel %vm1162, %v1164, %v1160
    %v1166 = vmul.f32 1.0, %v1165
    %v1167 = vmul.f32 %v1146, %v1124
    %v1168 = vadd.f32 %v916, %v1167
    %v1169 = vtanh.pop %v1168
    %v1170 = vsub.f32 1.0, %v1166
    %v1171 = vmul.f32 %v1170, %v1169
    %v1172 = vmul.f32 %v1166, %v710
    %v1173 = vadd.f32 %v1171, %v1172
    %1174 = vst [vmem:[%s709] sm:$0xff] %v1173
    %s1175 = sld [smem:[#allocation2 + $0x80]]
    %s1176 = scalar_lea.vmem %s3, %s1175
    %v1177 = vld [vmem:[%s1176] sm:$0x1]
    %v1178 = vmax.f32 %v1177, 0.0
    %s1179 = sld [smem:[#allocation2 + $0x81]]
    %s1180 = scalar_lea.vmem %s3, %s1179
    %v1181 = vld [vmem:[%s1180] sm:$0x1]
    %v1182 = vmax.f32 %v1181, 0.0
    %s1183 = sld [smem:[#allocation2 + $0x82]]
    %s1184 = scalar_lea.vmem %s3, %s1183
    %v1185 = vld [vmem:[%s1184] sm:$0x1]
    %v1186 = vmax.f32 %v1185, 0.0
    %s1187 = sld [smem:[#allocation2 + $0x83]]
    %s1188 = scalar_lea.vmem %s3, %s1187
    %v1189 = vld [vmem:[%s1188] sm:$0x1]
    %v1190 = vmax.f32 %v1189, 0.0
    %s1191 = sld [smem:[#allocation2 + $0x84]]
    %s1192 = scalar_lea.vmem %s3, %s1191
    %v1193 = vld [vmem:[%s1192] sm:$0x1]
    %v1194 = vmax.f32 %v1193, 0.0
    %s1195 = sld [smem:[#allocation2 + $0x85]]
    %s1196 = scalar_lea.vmem %s3, %s1195
    %v1197 = vld [vmem:[%s1196] sm:$0x1]
    %v1198 = vmax.f32 %v1197, 0.0
    %s1199 = sld [smem:[#allocation2 + $0x86]]
    %s1200 = scalar_lea.vmem %s3, %s1199
    %v1201 = vld [vmem:[%s1200] sm:$0x1]
    %v1202 = vmax.f32 %v1201, 0.0
    %s1203 = sld [smem:[#allocation2 + $0x87]]
    %s1204 = scalar_lea.vmem %s3, %s1203
    %v1205 = vld [vmem:[%s1204] sm:$0x1]
    %v1206 = vmax.f32 %v1205, 0.0
    %v1208 = vperm.slane %v1182, 0
    %v1211 = vperm.slane %v1186, 0
    %v1214 = vperm.slane %v1190, 0
    %v1217 = vperm.slane %v1194, 0
    %v1220 = vperm.slane %v1198, 0
    %v1223 = vperm.slane %v1202, 0
    %v1226 = vperm.slane %v1206, 0
    %v1228 = vsel %vm232, %v1178, %v1208
    %v1229 = vsel %vm234, %v1228, %v1211
    %v1230 = vsel %vm236, %v1229, %v1214
    %v1231 = vsel %vm238, %v1230, %v1217
    %v1232 = vsel %vm240, %v1231, %v1220
    %v1233 = vsel %vm242, %v1232, %v1223
    %v1234 = vsel %vm244, %v1233, %v1226
    %v1235 = vld [vmem:[#allocation17] sm:$0xff]
    %v1236 = vpack.c.bf16 %v1234, %v1234
    %v1237 = vld [vmem:[#allocation7] sm:$0xff]
    %v1238 = vld [vmem:[#allocation7 + $0x8] sm:$0xf]
    %v1239 = vld [vmem:[#allocation7 + $0xc] sm:$0xff]
    %v1240 = vld [vmem:[#allocation7 + $0x14] sm:$0xf]
    %v1241 = vld [vmem:[#allocation7 + $0x18] sm:$0xff]
    %v1242 = vld [vmem:[#allocation7 + $0x20] sm:$0xf]
    %v1243 = vld [vmem:[#allocation7 + $0x24] sm:$0xff]
    %v1244 = vld [vmem:[#allocation7 + $0x2c] sm:$0xf]
    %v1245 = vld [vmem:[#allocation7 + $0x30] sm:$0xff]
    %v1246 = vld [vmem:[#allocation7 + $0x38] sm:$0xf]
    %v1247 = vld [vmem:[#allocation7 + $0x3c] sm:$0xff]
    %v1248 = vld [vmem:[#allocation7 + $0x44] sm:$0xf]
    %v1249 = vld [vmem:[#allocation7 + $0x48] sm:$0xff]
    %v1250 = vld [vmem:[#allocation7 + $0x50] sm:$0xf]
    %v1251 = vld [vmem:[#allocation7 + $0x54] sm:$0xff]
    %v1252 = vld [vmem:[#allocation7 + $0x5c] sm:$0xf]
    %v1253 = vld [vmem:[#allocation7 + $0x60] sm:$0xff]
    %v1254 = vld [vmem:[#allocation7 + $0x68] sm:$0xf]
    %v1255 = vld [vmem:[#allocation7 + $0x6c] sm:$0xff]
    %v1256 = vld [vmem:[#allocation7 + $0x74] sm:$0xf]
    %v1257 = vld [vmem:[#allocation7 + $0x78] sm:$0xff]
    %v1258 = vld [vmem:[#allocation7 + $0x80] sm:$0xf]
    %v1259 = vld [vmem:[#allocation7 + $0x84] sm:$0xff]
    %v1260 = vld [vmem:[#allocation7 + $0x8c] sm:$0xf]
    %v1261 = vld [vmem:[#allocation7 + $0x90] sm:$0xff]
    %v1262 = vld [vmem:[#allocation7 + $0x98] sm:$0xf]
    %v1263 = vld [vmem:[#allocation7 + $0x9c] sm:$0xff]
    %v1264 = vld [vmem:[#allocation7 + $0xa4] sm:$0xf]
    %v1265 = vld [vmem:[#allocation7 + $0xa8] sm:$0xff]
    %v1266 = vld [vmem:[#allocation7 + $0xb0] sm:$0xf]
    %v1267 = vld [vmem:[#allocation7 + $0xb4] sm:$0xff]
    %v1268 = vld [vmem:[#allocation7 + $0xbc] sm:$0xf]
    %v1301 = vunpack.c.l.b16 %v1237
    %v1302 = vunpack.c.h.b16 %v1237
    %v1303 = vunpack.c.l.b16 %v1238
    %v1304 = vunpack.c.l.b16 %v1239
    %v1305 = vunpack.c.h.b16 %v1239
    %v1306 = vunpack.c.l.b16 %v1240
    %v1307 = vunpack.c.l.b16 %v1241
    %v1308 = vunpack.c.h.b16 %v1241
    %v1309 = vunpack.c.l.b16 %v1242
    %v1310 = vunpack.c.l.b16 %v1243
    %v1311 = vunpack.c.h.b16 %v1243
    %v1312 = vunpack.c.l.b16 %v1244
    %v1313 = vunpack.c.l.b16 %v1245
    %v1314 = vunpack.c.h.b16 %v1245
    %v1315 = vunpack.c.l.b16 %v1246
    %v1316 = vunpack.c.l.b16 %v1247
    %v1317 = vunpack.c.h.b16 %v1247
    %v1318 = vunpack.c.l.b16 %v1248
    %v1319 = vunpack.c.l.b16 %v1249
    %v1320 = vunpack.c.h.b16 %v1249
    %v1321 = vunpack.c.l.b16 %v1250
    %v1322 = vunpack.c.l.b16 %v1251
    %v1323 = vunpack.c.h.b16 %v1251
    %v1324 = vunpack.c.l.b16 %v1252
    %v1325 = vunpack.c.l.b16 %v1253
    %v1326 = vunpack.c.h.b16 %v1253
    %v1327 = vunpack.c.l.b16 %v1254
    %v1328 = vunpack.c.l.b16 %v1255
    %v1329 = vunpack.c.h.b16 %v1255
    %v1330 = vunpack.c.l.b16 %v1256
    %v1331 = vunpack.c.l.b16 %v1257
    %v1332 = vunpack.c.h.b16 %v1257
    %v1333 = vunpack.c.l.b16 %v1258
    %v1334 = vunpack.c.l.b16 %v1259
    %v1335 = vunpack.c.h.b16 %v1259
    %v1336 = vunpack.c.l.b16 %v1260
    %v1337 = vunpack.c.l.b16 %v1261
    %v1338 = vunpack.c.h.b16 %v1261
    %v1339 = vunpack.c.l.b16 %v1262
    %v1340 = vunpack.c.l.b16 %v1263
    %v1341 = vunpack.c.h.b16 %v1263
    %v1342 = vunpack.c.l.b16 %v1264
    %v1343 = vunpack.c.l.b16 %v1265
    %v1344 = vunpack.c.h.b16 %v1265
    %v1345 = vunpack.c.l.b16 %v1266
    %v1346 = vunpack.c.l.b16 %v1267
    %v1347 = vunpack.c.h.b16 %v1267
    %v1348 = vunpack.c.l.b16 %v1268
    %v1349 = vpack.c.b16 %v1304, %v1301
    %v1350 = vpack.c.b16 %v1305, %v1302
    %v1351 = vpack.c.b16 %v1306, %v1303
    %v1352 = vpack.c.b16 %v1310, %v1307
    %v1353 = vpack.c.b16 %v1311, %v1308
    %v1354 = vpack.c.b16 %v1312, %v1309
    %v1355 = vpack.c.b16 %v1316, %v1313
    %v1356 = vpack.c.b16 %v1317, %v1314
    %v1357 = vpack.c.b16 %v1318, %v1315
    %v1358 = vpack.c.b16 %v1322, %v1319
    %v1359 = vpack.c.b16 %v1323, %v1320
    %v1360 = vpack.c.b16 %v1324, %v1321
    %v1361 = vpack.c.b16 %v1328, %v1325
    %v1362 = vpack.c.b16 %v1329, %v1326
    %v1363 = vpack.c.b16 %v1330, %v1327
    %v1364 = vpack.c.b16 %v1334, %v1331
    %v1365 = vpack.c.b16 %v1335, %v1332
    %v1366 = vpack.c.b16 %v1336, %v1333
    %v1367 = vpack.c.b16 %v1340, %v1337
    %v1368 = vpack.c.b16 %v1341, %v1338
    %v1369 = vpack.c.b16 %v1342, %v1339
    %v1370 = vpack.c.b16 %v1346, %v1343
    %v1371 = vpack.c.b16 %v1347, %v1344
    %v1372 = vpack.c.b16 %v1348, %v1345
    %1397 = vmatpush.bf16.msra.mxu0 %v1370
    %1398 = vmatpush.bf16.msra.mxu0 %v1367
    %1399 = vmatpush.bf16.msra.mxu0 %v1364
    %1400 = vmatpush.bf16.msra.mxu0 %v1361
    %1401 = vmatpush.bf16.msra.mxu0 %v1358
    %1402 = vmatpush.bf16.msra.mxu0 %v1355
    %1403 = vmatpush.bf16.msra.mxu0 %v1352
    %1404 = vmatpush.bf16.msra.mxu0 %v1349
    %1405 = vmatmul.bf16.gmra.mxu0 %v1236
    %v1406 = vpop.f32.mrf.mxu0
    %v1407 = vadd.f32 %v281, %v1406
    %v1408 = vpop.f32.mrf.mxu0
    %1409 = vdwg.mxu0
    %1410 = vmatpush.bf16.msra.mxu0 %v1371
    %1411 = vmatpush.bf16.msra.mxu0 %v1368
    %1412 = vmatpush.bf16.msra.mxu0 %v1365
    %1413 = vmatpush.bf16.msra.mxu0 %v1362
    %1414 = vmatpush.bf16.msra.mxu0 %v1359
    %1415 = vmatpush.bf16.msra.mxu0 %v1356
    %1416 = vmatpush.bf16.msra.mxu0 %v1353
    %1417 = vmatpush.bf16.msra.mxu0 %v1350
    %1418 = vmatmul.bf16.gmra.mxu0 %v1236
    %v1419 = vpop.f32.mrf.mxu0
    %v1420 = vadd.f32 %v282, %v1419
    %v1421 = vpop.f32.mrf.mxu0
    %1422 = vdwg.mxu0
    %1423 = vmatpush.bf16.msra.mxu0 %v1372
    %1424 = vmatpush.bf16.msra.mxu0 %v1369
    %1425 = vmatpush.bf16.msra.mxu0 %v1366
    %1426 = vmatpush.bf16.msra.mxu0 %v1363
    %1427 = vmatpush.bf16.msra.mxu0 %v1360
    %1428 = vmatpush.bf16.msra.mxu0 %v1357
    %1429 = vmatpush.bf16.msra.mxu0 %v1354
    %1430 = vmatpush.bf16.msra.mxu0 %v1351
    %1431 = vmatmul.bf16.gmra.mxu0 %v1236
    %v1432 = vpop.f32.mrf.mxu0
    %v1433 = vadd.f32 %v283, %v1432
    %v1434 = vpop.f32.mrf.mxu0
    %1435 = vdwg.mxu0
    %v1436 = vpack.c.bf16 %v1235, %v1235
    %v1437 = vld [vmem:[#allocation9] sm:$0xff]
    %v1438 = vld [vmem:[#allocation9 + $0x8] sm:$0xf]
    %v1439 = vld [vmem:[#allocation9 + $0xc] sm:$0xff]
    %v1440 = vld [vmem:[#allocation9 + $0x14] sm:$0xf]
    %v1441 = vld [vmem:[#allocation9 + $0x18] sm:$0xff]
    %v1442 = vld [vmem:[#allocation9 + $0x20] sm:$0xf]
    %v1443 = vld [vmem:[#allocation9 + $0x24] sm:$0xff]
    %v1444 = vld [vmem:[#allocation9 + $0x2c] sm:$0xf]
    %v1445 = vld [vmem:[#allocation9 + $0x30] sm:$0xff]
    %v1446 = vld [vmem:[#allocation9 + $0x38] sm:$0xf]
    %v1447 = vld [vmem:[#allocation9 + $0x3c] sm:$0xff]
    %v1448 = vld [vmem:[#allocation9 + $0x44] sm:$0xf]
    %v1449 = vld [vmem:[#allocation9 + $0x48] sm:$0xff]
    %v1450 = vld [vmem:[#allocation9 + $0x50] sm:$0xf]
    %v1451 = vld [vmem:[#allocation9 + $0x54] sm:$0xff]
    %v1452 = vld [vmem:[#allocation9 + $0x5c] sm:$0xf]
    %v1453 = vld [vmem:[#allocation9 + $0x60] sm:$0xff]
    %v1454 = vld [vmem:[#allocation9 + $0x68] sm:$0xf]
    %v1455 = vld [vmem:[#allocation9 + $0x6c] sm:$0xff]
    %v1456 = vld [vmem:[#allocation9 + $0x74] sm:$0xf]
    %v1457 = vld [vmem:[#allocation9 + $0x78] sm:$0xff]
    %v1458 = vld [vmem:[#allocation9 + $0x80] sm:$0xf]
    %v1459 = vld [vmem:[#allocation9 + $0x84] sm:$0xff]
    %v1460 = vld [vmem:[#allocation9 + $0x8c] sm:$0xf]
    %v1461 = vld [vmem:[#allocation9 + $0x90] sm:$0xff]
    %v1462 = vld [vmem:[#allocation9 + $0x98] sm:$0xf]
    %v1463 = vld [vmem:[#allocation9 + $0x9c] sm:$0xff]
    %v1464 = vld [vmem:[#allocation9 + $0xa4] sm:$0xf]
    %v1465 = vld [vmem:[#allocation9 + $0xa8] sm:$0xff]
    %v1466 = vld [vmem:[#allocation9 + $0xb0] sm:$0xf]
    %v1467 = vld [vmem:[#allocation9 + $0xb4] sm:$0xff]
    %v1468 = vld [vmem:[#allocation9 + $0xbc] sm:$0xf]
    %v1501 = vunpack.c.l.b16 %v1437
    %v1502 = vunpack.c.h.b16 %v1437
    %v1503 = vunpack.c.l.b16 %v1438
    %v1504 = vunpack.c.l.b16 %v1439
    %v1505 = vunpack.c.h.b16 %v1439
    %v1506 = vunpack.c.l.b16 %v1440
    %v1507 = vunpack.c.l.b16 %v1441
    %v1508 = vunpack.c.h.b16 %v1441
    %v1509 = vunpack.c.l.b16 %v1442
    %v1510 = vunpack.c.l.b16 %v1443
    %v1511 = vunpack.c.h.b16 %v1443
    %v1512 = vunpack.c.l.b16 %v1444
    %v1513 = vunpack.c.l.b16 %v1445
    %v1514 = vunpack.c.h.b16 %v1445
    %v1515 = vunpack.c.l.b16 %v1446
    %v1516 = vunpack.c.l.b16 %v1447
    %v1517 = vunpack.c.h.b16 %v1447
    %v1518 = vunpack.c.l.b16 %v1448
    %v1519 = vunpack.c.l.b16 %v1449
    %v1520 = vunpack.c.h.b16 %v1449
    %v1521 = vunpack.c.l.b16 %v1450
    %v1522 = vunpack.c.l.b16 %v1451
    %v1523 = vunpack.c.h.b16 %v1451
    %v1524 = vunpack.c.l.b16 %v1452
    %v1525 = vunpack.c.l.b16 %v1453
    %v1526 = vunpack.c.h.b16 %v1453
    %v1527 = vunpack.c.l.b16 %v1454
    %v1528 = vunpack.c.l.b16 %v1455
    %v1529 = vunpack.c.h.b16 %v1455
    %v1530 = vunpack.c.l.b16 %v1456
    %v1531 = vunpack.c.l.b16 %v1457
    %v1532 = vunpack.c.h.b16 %v1457
    %v1533 = vunpack.c.l.b16 %v1458
    %v1534 = vunpack.c.l.b16 %v1459
    %v1535 = vunpack.c.h.b16 %v1459
    %v1536 = vunpack.c.l.b16 %v1460
    %v1537 = vunpack.c.l.b16 %v1461
    %v1538 = vunpack.c.h.b16 %v1461
    %v1539 = vunpack.c.l.b16 %v1462
    %v1540 = vunpack.c.l.b16 %v1463
    %v1541 = vunpack.c.h.b16 %v1463
    %v1542 = vunpack.c.l.b16 %v1464
    %v1543 = vunpack.c.l.b16 %v1465
    %v1544 = vunpack.c.h.b16 %v1465
    %v1545 = vunpack.c.l.b16 %v1466
    %v1546 = vunpack.c.l.b16 %v1467
    %v1547 = vunpack.c.h.b16 %v1467
    %v1548 = vunpack.c.l.b16 %v1468
    %v1549 = vpack.c.b16 %v1504, %v1501
    %v1550 = vpack.c.b16 %v1505, %v1502
    %v1551 = vpack.c.b16 %v1506, %v1503
    %v1552 = vpack.c.b16 %v1510, %v1507
    %v1553 = vpack.c.b16 %v1511, %v1508
    %v1554 = vpack.c.b16 %v1512, %v1509
    %v1555 = vpack.c.b16 %v1516, %v1513
    %v1556 = vpack.c.b16 %v1517, %v1514
    %v1557 = vpack.c.b16 %v1518, %v1515
    %v1558 = vpack.c.b16 %v1522, %v1519
    %v1559 = vpack.c.b16 %v1523, %v1520
    %v1560 = vpack.c.b16 %v1524, %v1521
    %v1561 = vpack.c.b16 %v1528, %v1525
    %v1562 = vpack.c.b16 %v1529, %v1526
    %v1563 = vpack.c.b16 %v1530, %v1527
    %v1564 = vpack.c.b16 %v1534, %v1531
    %v1565 = vpack.c.b16 %v1535, %v1532
    %v1566 = vpack.c.b16 %v1536, %v1533
    %v1567 = vpack.c.b16 %v1540, %v1537
    %v1568 = vpack.c.b16 %v1541, %v1538
    %v1569 = vpack.c.b16 %v1542, %v1539
    %v1570 = vpack.c.b16 %v1546, %v1543
    %v1571 = vpack.c.b16 %v1547, %v1544
    %v1572 = vpack.c.b16 %v1548, %v1545
    %1597 = vmatpush.bf16.msra.mxu0 %v1570
    %1598 = vmatpush.bf16.msra.mxu0 %v1567
    %1599 = vmatpush.bf16.msra.mxu0 %v1564
    %1600 = vmatpush.bf16.msra.mxu0 %v1561
    %1601 = vmatpush.bf16.msra.mxu0 %v1558
    %1602 = vmatpush.bf16.msra.mxu0 %v1555
    %1603 = vmatpush.bf16.msra.mxu0 %v1552
    %1604 = vmatpush.bf16.msra.mxu0 %v1549
    %1605 = vmatmul.bf16.gmra.mxu0 %v1436
    %v1606 = vpop.f32.mrf.mxu0
    %v1607 = vadd.f32 %v488, %v1606
    %v1608 = vpop.f32.mrf.mxu0
    %1609 = vdwg.mxu0
    %1610 = vmatpush.bf16.msra.mxu0 %v1571
    %1611 = vmatpush.bf16.msra.mxu0 %v1568
    %1612 = vmatpush.bf16.msra.mxu0 %v1565
    %1613 = vmatpush.bf16.msra.mxu0 %v1562
    %1614 = vmatpush.bf16.msra.mxu0 %v1559
    %1615 = vmatpush.bf16.msra.mxu0 %v1556
    %1616 = vmatpush.bf16.msra.mxu0 %v1553
    %1617 = vmatpush.bf16.msra.mxu0 %v1550
    %1618 = vmatmul.bf16.gmra.mxu0 %v1436
    %v1619 = vpop.f32.mrf.mxu0
    %v1620 = vadd.f32 %v489, %v1619
    %v1621 = vpop.f32.mrf.mxu0
    %1622 = vdwg.mxu0
    %1623 = vmatpush.bf16.msra.mxu0 %v1572
    %1624 = vmatpush.bf16.msra.mxu0 %v1569
    %1625 = vmatpush.bf16.msra.mxu0 %v1566
    %1626 = vmatpush.bf16.msra.mxu0 %v1563
    %1627 = vmatpush.bf16.msra.mxu0 %v1560
    %1628 = vmatpush.bf16.msra.mxu0 %v1557
    %1629 = vmatpush.bf16.msra.mxu0 %v1554
    %1630 = vmatpush.bf16.msra.mxu0 %v1551
    %1631 = vmatmul.bf16.gmra.mxu0 %v1436
    %v1632 = vpop.f32.mrf.mxu0
    %v1633 = vadd.f32 %v490, %v1632
    %v1634 = vpop.f32.mrf.mxu0
    %1635 = vdwg.mxu0
    %v1636 = vadd.f32 %v1407, %v1607
    %v1637 = vxor.u32 %v1636, 2147483648
    %v1638 = vmul.f32 %v1637, 1.442695
    %v1639 = vpow.pop %v1638
    %v1640 = vadd.f32 %v1639, 1.0
    %v1641 = vrcp.pop %v1640
    %v1642 = vmul.f32 %v1640, %v1641
    %v1643 = vsub.f32 1.0, %v1642
    %v1644 = vmul.f32 %v1641, %v1643
    %v1645 = vadd.f32 %v1641, %v1644
    %vm1646 = vweird.f32 %v1640
    %vm1647 = vweird.f32 %v1641
    %vm1648 = vmor %vm1646, %vm1647
    %v1649 = vsel %vm1648, %v1641, %v1645
    %v1650 = vand.u32 2147483647, %v1640
    %vm1651 = vcmp.eq.f32.partialorder %v1650, 8.507059e+37
    %v1652 = vand.u32 %v1640, 2147483648
    %v1653 = vor.u32 1.1754944e-38, %v1652
    %v1654 = vsel %vm1651, %v1653, %v1649
    %v1655 = vmul.f32 1.0, %v1654
    %v1656 = vadd.f32 %v1420, %v1620
    %v1657 = vxor.u32 %v1656, 2147483648
    %v1658 = vmul.f32 %v1657, 1.442695
    %v1659 = vpow.pop %v1658
    %v1660 = vadd.f32 %v1659, 1.0
    %v1661 = vrcp.pop %v1660
    %v1662 = vmul.f32 %v1660, %v1661
    %v1663 = vsub.f32 1.0, %v1662
    %v1664 = vmul.f32 %v1661, %v1663
    %v1665 = vadd.f32 %v1661, %v1664
    %vm1666 = vweird.f32 %v1660
    %vm1667 = vweird.f32 %v1661
    %vm1668 = vmor %vm1666, %vm1667
    %v1669 = vsel %vm1668, %v1661, %v1665
    %v1670 = vand.u32 2147483647, %v1660
    %vm1671 = vcmp.eq.f32.partialorder %v1670, 8.507059e+37
    %v1672 = vand.u32 %v1660, 2147483648
    %v1673 = vor.u32 1.1754944e-38, %v1672
    %v1674 = vsel %vm1671, %v1673, %v1669
    %v1675 = vmul.f32 1.0, %v1674
    %v1676 = vmul.f32 %v1655, %v1633
    %v1677 = vadd.f32 %v1433, %v1676
    %v1678 = vtanh.pop %v1677
    %v1679 = vsub.f32 1.0, %v1675
    %v1680 = vmul.f32 %v1679, %v1678
    %v1681 = vmul.f32 %v1675, %v1235
    %v1682 = vadd.f32 %v1680, %v1681
    %1683 = vst [vmem:[#allocation17] sm:$0xff] %v1682
    %v1684 = vld [vmem:[%s709] sm:$0xff]
    %v1685 = vpack.c.bf16 %v1682, %v1682
    %v1686 = vld [vmem:[%s712] sm:$0xff]
    %v1687 = vld [vmem:[%s712 + $0x8] sm:$0xf]
    %v1688 = vld [vmem:[%s712 + $0xc] sm:$0xff]
    %v1689 = vld [vmem:[%s712 + $0x14] sm:$0xf]
    %v1690 = vld [vmem:[%s712 + $0x18] sm:$0xff]
    %v1691 = vld [vmem:[%s712 + $0x20] sm:$0xf]
    %v1692 = vld [vmem:[%s712 + $0x24] sm:$0xff]
    %v1693 = vld [vmem:[%s712 + $0x2c] sm:$0xf]
    %v1694 = vld [vmem:[%s712 + $0x30] sm:$0xff]
    %v1695 = vld [vmem:[%s712 + $0x38] sm:$0xf]
    %v1696 = vld [vmem:[%s712 + $0x3c] sm:$0xff]
    %v1697 = vld [vmem:[%s712 + $0x44] sm:$0xf]
    %v1698 = vld [vmem:[%s712 + $0x48] sm:$0xff]
    %v1699 = vld [vmem:[%s712 + $0x50] sm:$0xf]
    %v1700 = vld [vmem:[%s712 + $0x54] sm:$0xff]
    %v1701 = vld [vmem:[%s712 + $0x5c] sm:$0xf]
    %v1702 = vld [vmem:[%s712 + $0x60] sm:$0xff]
    %v1703 = vld [vmem:[%s712 + $0x68] sm:$0xf]
    %v1704 = vld [vmem:[%s712 + $0x6c] sm:$0xff]
    %v1705 = vld [vmem:[%s712 + $0x74] sm:$0xf]
    %v1706 = vld [vmem:[%s712 + $0x78] sm:$0xff]
    %v1707 = vld [vmem:[%s712 + $0x80] sm:$0xf]
    %v1708 = vld [vmem:[%s712 + $0x84] sm:$0xff]
    %v1709 = vld [vmem:[%s712 + $0x8c] sm:$0xf]
    %v1710 = vld [vmem:[%s712 + $0x90] sm:$0xff]
    %v1711 = vld [vmem:[%s712 + $0x98] sm:$0xf]
    %v1712 = vld [vmem:[%s712 + $0x9c] sm:$0xff]
    %v1713 = vld [vmem:[%s712 + $0xa4] sm:$0xf]
    %v1714 = vld [vmem:[%s712 + $0xa8] sm:$0xff]
    %v1715 = vld [vmem:[%s712 + $0xb0] sm:$0xf]
    %v1716 = vld [vmem:[%s712 + $0xb4] sm:$0xff]
    %v1717 = vld [vmem:[%s712 + $0xbc] sm:$0xf]
    %v1750 = vunpack.c.l.b16 %v1686
    %v1751 = vunpack.c.h.b16 %v1686
    %v1752 = vunpack.c.l.b16 %v1687
    %v1753 = vunpack.c.l.b16 %v1688
    %v1754 = vunpack.c.h.b16 %v1688
    %v1755 = vunpack.c.l.b16 %v1689
    %v1756 = vunpack.c.l.b16 %v1690
    %v1757 = vunpack.c.h.b16 %v1690
    %v1758 = vunpack.c.l.b16 %v1691
    %v1759 = vunpack.c.l.b16 %v1692
    %v1760 = vunpack.c.h.b16 %v1692
    %v1761 = vunpack.c.l.b16 %v1693
    %v1762 = vunpack.c.l.b16 %v1694
    %v1763 = vunpack.c.h.b16 %v1694
    %v1764 = vunpack.c.l.b16 %v1695
    %v1765 = vunpack.c.l.b16 %v1696
    %v1766 = vunpack.c.h.b16 %v1696
    %v1767 = vunpack.c.l.b16 %v1697
    %v1768 = vunpack.c.l.b16 %v1698
    %v1769 = vunpack.c.h.b16 %v1698
    %v1770 = vunpack.c.l.b16 %v1699
    %v1771 = vunpack.c.l.b16 %v1700
    %v1772 = vunpack.c.h.b16 %v1700
    %v1773 = vunpack.c.l.b16 %v1701
    %v1774 = vunpack.c.l.b16 %v1702
    %v1775 = vunpack.c.h.b16 %v1702
    %v1776 = vunpack.c.l.b16 %v1703
    %v1777 = vunpack.c.l.b16 %v1704
    %v1778 = vunpack.c.h.b16 %v1704
    %v1779 = vunpack.c.l.b16 %v1705
    %v1780 = vunpack.c.l.b16 %v1706
    %v1781 = vunpack.c.h.b16 %v1706
    %v1782 = vunpack.c.l.b16 %v1707
    %v1783 = vunpack.c.l.b16 %v1708
    %v1784 = vunpack.c.h.b16 %v1708
    %v1785 = vunpack.c.l.b16 %v1709
    %v1786 = vunpack.c.l.b16 %v1710
    %v1787 = vunpack.c.h.b16 %v1710
    %v1788 = vunpack.c.l.b16 %v1711
    %v1789 = vunpack.c.l.b16 %v1712
    %v1790 = vunpack.c.h.b16 %v1712
    %v1791 = vunpack.c.l.b16 %v1713
    %v1792 = vunpack.c.l.b16 %v1714
    %v1793 = vunpack.c.h.b16 %v1714
    %v1794 = vunpack.c.l.b16 %v1715
    %v1795 = vunpack.c.l.b16 %v1716
    %v1796 = vunpack.c.h.b16 %v1716
    %v1797 = vunpack.c.l.b16 %v1717
    %v1798 = vpack.c.b16 %v1753, %v1750
    %v1799 = vpack.c.b16 %v1754, %v1751
    %v1800 = vpack.c.b16 %v1755, %v1752
    %v1801 = vpack.c.b16 %v1759, %v1756
    %v1802 = vpack.c.b16 %v1760, %v1757
    %v1803 = vpack.c.b16 %v1761, %v1758
    %v1804 = vpack.c.b16 %v1765, %v1762
    %v1805 = vpack.c.b16 %v1766, %v1763
    %v1806 = vpack.c.b16 %v1767, %v1764
    %v1807 = vpack.c.b16 %v1771, %v1768
    %v1808 = vpack.c.b16 %v1772, %v1769
    %v1809 = vpack.c.b16 %v1773, %v1770
    %v1810 = vpack.c.b16 %v1777, %v1774
    %v1811 = vpack.c.b16 %v1778, %v1775
    %v1812 = vpack.c.b16 %v1779, %v1776
    %v1813 = vpack.c.b16 %v1783, %v1780
    %v1814 = vpack.c.b16 %v1784, %v1781
    %v1815 = vpack.c.b16 %v1785, %v1782
    %v1816 = vpack.c.b16 %v1789, %v1786
    %v1817 = vpack.c.b16 %v1790, %v1787
    %v1818 = vpack.c.b16 %v1791, %v1788
    %v1819 = vpack.c.b16 %v1795, %v1792
    %v1820 = vpack.c.b16 %v1796, %v1793
    %v1821 = vpack.c.b16 %v1797, %v1794
    %1846 = vmatpush.bf16.msra.mxu0 %v1819
    %1847 = vmatpush.bf16.msra.mxu0 %v1816
    %1848 = vmatpush.bf16.msra.mxu0 %v1813
    %1849 = vmatpush.bf16.msra.mxu0 %v1810
    %1850 = vmatpush.bf16.msra.mxu0 %v1807
    %1851 = vmatpush.bf16.msra.mxu0 %v1804
    %1852 = vmatpush.bf16.msra.mxu0 %v1801
    %1853 = vmatpush.bf16.msra.mxu0 %v1798
    %1854 = vmatmul.bf16.gmra.mxu0 %v1685
    %v1855 = vpop.f32.mrf.mxu0
    %v1856 = vadd.f32 %v746, %v1855
    %v1857 = vpop.f32.mrf.mxu0
    %1858 = vdwg.mxu0
    %1859 = vmatpush.bf16.msra.mxu0 %v1820
    %1860 = vmatpush.bf16.msra.mxu0 %v1817
    %1861 = vmatpush.bf16.msra.mxu0 %v1814
    %1862 = vmatpush.bf16.msra.mxu0 %v1811
    %1863 = vmatpush.bf16.msra.mxu0 %v1808
    %1864 = vmatpush.bf16.msra.mxu0 %v1805
    %1865 = vmatpush.bf16.msra.mxu0 %v1802
    %1866 = vmatpush.bf16.msra.mxu0 %v1799
    %1867 = vmatmul.bf16.gmra.mxu0 %v1685
    %v1868 = vpop.f32.mrf.mxu0
    %v1869 = vadd.f32 %v747, %v1868
    %v1870 = vpop.f32.mrf.mxu0
    %1871 = vdwg.mxu0
    %1872 = vmatpush.bf16.msra.mxu0 %v1821
    %1873 = vmatpush.bf16.msra.mxu0 %v1818
    %1874 = vmatpush.bf16.msra.mxu0 %v1815
    %1875 = vmatpush.bf16.msra.mxu0 %v1812
    %1876 = vmatpush.bf16.msra.mxu0 %v1809
    %1877 = vmatpush.bf16.msra.mxu0 %v1806
    %1878 = vmatpush.bf16.msra.mxu0 %v1803
    %1879 = vmatpush.bf16.msra.mxu0 %v1800
    %1880 = vmatmul.bf16.gmra.mxu0 %v1685
    %v1881 = vpop.f32.mrf.mxu0
    %v1882 = vadd.f32 %v748, %v1881
    %v1883 = vpop.f32.mrf.mxu0
    %1884 = vdwg.mxu0
    %v1885 = vpack.c.bf16 %v1684, %v1684
    %v1886 = vld [vmem:[%s920] sm:$0xff]
    %v1887 = vld [vmem:[%s920 + $0x8] sm:$0xf]
    %v1888 = vld [vmem:[%s920 + $0xc] sm:$0xff]
    %v1889 = vld [vmem:[%s920 + $0x14] sm:$0xf]
    %v1890 = vld [vmem:[%s920 + $0x18] sm:$0xff]
    %v1891 = vld [vmem:[%s920 + $0x20] sm:$0xf]
    %v1892 = vld [vmem:[%s920 + $0x24] sm:$0xff]
    %v1893 = vld [vmem:[%s920 + $0x2c] sm:$0xf]
    %v1894 = vld [vmem:[%s920 + $0x30] sm:$0xff]
    %v1895 = vld [vmem:[%s920 + $0x38] sm:$0xf]
    %v1896 = vld [vmem:[%s920 + $0x3c] sm:$0xff]
    %v1897 = vld [vmem:[%s920 + $0x44] sm:$0xf]
    %v1898 = vld [vmem:[%s920 + $0x48] sm:$0xff]
    %v1899 = vld [vmem:[%s920 + $0x50] sm:$0xf]
    %v1900 = vld [vmem:[%s920 + $0x54] sm:$0xff]
    %v1901 = vld [vmem:[%s920 + $0x5c] sm:$0xf]
    %v1902 = vld [vmem:[%s920 + $0x60] sm:$0xff]
    %v1903 = vld [vmem:[%s920 + $0x68] sm:$0xf]
    %v1904 = vld [vmem:[%s920 + $0x6c] sm:$0xff]
    %v1905 = vld [vmem:[%s920 + $0x74] sm:$0xf]
    %v1906 = vld [vmem:[%s920 + $0x78] sm:$0xff]
    %v1907 = vld [vmem:[%s920 + $0x80] sm:$0xf]
    %v1908 = vld [vmem:[%s920 + $0x84] sm:$0xff]
    %v1909 = vld [vmem:[%s920 + $0x8c] sm:$0xf]
    %v1910 = vld [vmem:[%s920 + $0x90] sm:$0xff]
    %v1911 = vld [vmem:[%s920 + $0x98] sm:$0xf]
    %v1912 = vld [vmem:[%s920 + $0x9c] sm:$0xff]
    %v1913 = vld [vmem:[%s920 + $0xa4] sm:$0xf]
    %v1914 = vld [vmem:[%s920 + $0xa8] sm:$0xff]
    %v1915 = vld [vmem:[%s920 + $0xb0] sm:$0xf]
    %v1916 = vld [vmem:[%s920 + $0xb4] sm:$0xff]
    %v1917 = vld [vmem:[%s920 + $0xbc] sm:$0xf]
    %v1950 = vunpack.c.l.b16 %v1886
    %v1951 = vunpack.c.h.b16 %v1886
    %v1952 = vunpack.c.l.b16 %v1887
    %v1953 = vunpack.c.l.b16 %v1888
    %v1954 = vunpack.c.h.b16 %v1888
    %v1955 = vunpack.c.l.b16 %v1889
    %v1956 = vunpack.c.l.b16 %v1890
    %v1957 = vunpack.c.h.b16 %v1890
    %v1958 = vunpack.c.l.b16 %v1891
    %v1959 = vunpack.c.l.b16 %v1892
    %v1960 = vunpack.c.h.b16 %v1892
    %v1961 = vunpack.c.l.b16 %v1893
    %v1962 = vunpack.c.l.b16 %v1894
    %v1963 = vunpack.c.h.b16 %v1894
    %v1964 = vunpack.c.l.b16 %v1895
    %v1965 = vunpack.c.l.b16 %v1896
    %v1966 = vunpack.c.h.b16 %v1896
    %v1967 = vunpack.c.l.b16 %v1897
    %v1968 = vunpack.c.l.b16 %v1898
    %v1969 = vunpack.c.h.b16 %v1898
    %v1970 = vunpack.c.l.b16 %v1899
    %v1971 = vunpack.c.l.b16 %v1900
    %v1972 = vunpack.c.h.b16 %v1900
    %v1973 = vunpack.c.l.b16 %v1901
    %v1974 = vunpack.c.l.b16 %v1902
    %v1975 = vunpack.c.h.b16 %v1902
    %v1976 = vunpack.c.l.b16 %v1903
    %v1977 = vunpack.c.l.b16 %v1904
    %v1978 = vunpack.c.h.b16 %v1904
    %v1979 = vunpack.c.l.b16 %v1905
    %v1980 = vunpack.c.l.b16 %v1906
    %v1981 = vunpack.c.h.b16 %v1906
    %v1982 = vunpack.c.l.b16 %v1907
    %v1983 = vunpack.c.l.b16 %v1908
    %v1984 = vunpack.c.h.b16 %v1908
    %v1985 = vunpack.c.l.b16 %v1909
    %v1986 = vunpack.c.l.b16 %v1910
    %v1987 = vunpack.c.h.b16 %v1910
    %v1988 = vunpack.c.l.b16 %v1911
    %v1989 = vunpack.c.l.b16 %v1912
    %v1990 = vunpack.c.h.b16 %v1912
    %v1991 = vunpack.c.l.b16 %v1913
    %v1992 = vunpack.c.l.b16 %v1914
    %v1993 = vunpack.c.h.b16 %v1914
    %v1994 = vunpack.c.l.b16 %v1915
    %v1995 = vunpack.c.l.b16 %v1916
    %v1996 = vunpack.c.h.b16 %v1916
    %v1997 = vunpack.c.l.b16 %v1917
    %v1998 = vpack.c.b16 %v1953, %v1950
    %v1999 = vpack.c.b16 %v1954, %v1951
    %v2000 = vpack.c.b16 %v1955, %v1952
    %v2001 = vpack.c.b16 %v1959, %v1956
    %v2002 = vpack.c.b16 %v1960, %v1957
    %v2003 = vpack.c.b16 %v1961, %v1958
    %v2004 = vpack.c.b16 %v1965, %v1962
    %v2005 = vpack.c.b16 %v1966, %v1963
    %v2006 = vpack.c.b16 %v1967, %v1964
    %v2007 = vpack.c.b16 %v1971, %v1968
    %v2008 = vpack.c.b16 %v1972, %v1969
    %v2009 = vpack.c.b16 %v1973, %v1970
    %v2010 = vpack.c.b16 %v1977, %v1974
    %v2011 = vpack.c.b16 %v1978, %v1975
    %v2012 = vpack.c.b16 %v1979, %v1976
    %v2013 = vpack.c.b16 %v1983, %v1980
    %v2014 = vpack.c.b16 %v1984, %v1981
    %v2015 = vpack.c.b16 %v1985, %v1982
    %v2016 = vpack.c.b16 %v1989, %v1986
    %v2017 = vpack.c.b16 %v1990, %v1987
    %v2018 = vpack.c.b16 %v1991, %v1988
    %v2019 = vpack.c.b16 %v1995, %v1992
    %v2020 = vpack.c.b16 %v1996, %v1993
    %v2021 = vpack.c.b16 %v1997, %v1994
    %2046 = vmatpush.bf16.msra.mxu0 %v2019
    %2047 = vmatpush.bf16.msra.mxu0 %v2016
    %2048 = vmatpush.bf16.msra.mxu0 %v2013
    %2049 = vmatpush.bf16.msra.mxu0 %v2010
    %2050 = vmatpush.bf16.msra.mxu0 %v2007
    %2051 = vmatpush.bf16.msra.mxu0 %v2004
    %2052 = vmatpush.bf16.msra.mxu0 %v2001
    %2053 = vmatpush.bf16.msra.mxu0 %v1998
    %2054 = vmatmul.bf16.gmra.mxu0 %v1885
    %v2055 = vpop.f32.mrf.mxu0
    %v2056 = vadd.f32 %v954, %v2055
    %v2057 = vpop.f32.mrf.mxu0
    %2058 = vdwg.mxu0
    %2059 = vmatpush.bf16.msra.mxu0 %v2020
    %2060 = vmatpush.bf16.msra.mxu0 %v2017
    %2061 = vmatpush.bf16.msra.mxu0 %v2014
    %2062 = vmatpush.bf16.msra.mxu0 %v2011
    %2063 = vmatpush.bf16.msra.mxu0 %v2008
    %2064 = vmatpush.bf16.msra.mxu0 %v2005
    %2065 = vmatpush.bf16.msra.mxu0 %v2002
    %2066 = vmatpush.bf16.msra.mxu0 %v1999
    %2067 = vmatmul.bf16.gmra.mxu0 %v1885
    %v2068 = vpop.f32.mrf.mxu0
    %v2069 = vadd.f32 %v955, %v2068
    %v2070 = vpop.f32.mrf.mxu0
    %2071 = vdwg.mxu0
    %2072 = vmatpush.bf16.msra.mxu0 %v2021
    %2073 = vmatpush.bf16.msra.mxu0 %v2018
    %2074 = vmatpush.bf16.msra.mxu0 %v2015
    %2075 = vmatpush.bf16.msra.mxu0 %v2012
    %2076 = vmatpush.bf16.msra.mxu0 %v2009
    %2077 = vmatpush.bf16.msra.mxu0 %v2006
    %2078 = vmatpush.bf16.msra.mxu0 %v2003
    %2079 = vmatpush.bf16.msra.mxu0 %v2000
    %2080 = vmatmul.bf16.gmra.mxu0 %v1885
    %v2081 = vpop.f32.mrf.mxu0
    %v2082 = vadd.f32 %v956, %v2081
    %v2083 = vpop.f32.mrf.mxu0
    %2084 = vdwg.mxu0
    %v2085 = vadd.f32 %v1856, %v2056
    %v2086 = vxor.u32 %v2085, 2147483648
    %v2087 = vmul.f32 %v2086, 1.442695
    %v2088 = vpow.pop %v2087
    %v2089 = vadd.f32 %v2088, 1.0
    %v2090 = vrcp.pop %v2089
    %v2091 = vmul.f32 %v2089, %v2090
    %v2092 = vsub.f32 1.0, %v2091
    %v2093 = vmul.f32 %v2090, %v2092
    %v2094 = vadd.f32 %v2090, %v2093
    %vm2095 = vweird.f32 %v2089
    %vm2096 = vweird.f32 %v2090
    %vm2097 = vmor %vm2095, %vm2096
    %v2098 = vsel %vm2097, %v2090, %v2094
    %v2099 = vand.u32 2147483647, %v2089
    %vm2100 = vcmp.eq.f32.partialorder %v2099, 8.507059e+37
    %v2101 = vand.u32 %v2089, 2147483648
    %v2102 = vor.u32 1.1754944e-38, %v2101
    %v2103 = vsel %vm2100, %v2102, %v2098
    %v2104 = vmul.f32 1.0, %v2103
    %v2105 = vadd.f32 %v1869, %v2069
    %v2106 = vxor.u32 %v2105, 2147483648
    %v2107 = vmul.f32 %v2106, 1.442695
    %v2108 = vpow.pop %v2107
    %v2109 = vadd.f32 %v2108, 1.0
    %v2110 = vrcp.pop %v2109
    %v2111 = vmul.f32 %v2109, %v2110
    %v2112 = vsub.f32 1.0, %v2111
    %v2113 = vmul.f32 %v2110, %v2112
    %v2114 = vadd.f32 %v2110, %v2113
    %vm2115 = vweird.f32 %v2109
    %vm2116 = vweird.f32 %v2110
    %vm2117 = vmor %vm2115, %vm2116
    %v2118 = vsel %vm2117, %v2110, %v2114
    %v2119 = vand.u32 2147483647, %v2109
    %vm2120 = vcmp.eq.f32.partialorder %v2119, 8.507059e+37
    %v2121 = vand.u32 %v2109, 2147483648
    %v2122 = vor.u32 1.1754944e-38, %v2121
    %v2123 = vsel %vm2120, %v2122, %v2118
    %v2124 = vmul.f32 1.0, %v2123
    %v2125 = vmul.f32 %v2104, %v2082
    %v2126 = vadd.f32 %v1882, %v2125
    %v2127 = vtanh.pop %v2126
    %v2128 = vsub.f32 1.0, %v2124
    %v2129 = vmul.f32 %v2128, %v2127
    %v2130 = vmul.f32 %v2124, %v1684
    %v2131 = vadd.f32 %v2129, %v2130
    %2132 = vst [vmem:[%s709] sm:$0xff] %v2131
    %s2133 = sld [smem:[#allocation2 + $0x100]]
    %s2134 = scalar_lea.vmem %s3, %s2133
    %v2135 = vld [vmem:[%s2134] sm:$0x1]
    %v2136 = vmax.f32 %v2135, 0.0
    %s2137 = sld [smem:[#allocation2 + $0x101]]
    %s2138 = scalar_lea.vmem %s3, %s2137
    %v2139 = vld [vmem:[%s2138] sm:$0x1]
    %v2140 = vmax.f32 %v2139, 0.0
    %s2141 = sld [smem:[#allocation2 + $0x102]]
    %s2142 = scalar_lea.vmem %s3, %s2141
    %v2143 = vld [vmem:[%s2142] sm:$0x1]
    %v2144 = vmax.f32 %v2143, 0.0
    %s2145 = sld [smem:[#allocation2 + $0x103]]
    %s2146 = scalar_lea.vmem %s3, %s2145
    %v2147 = vld [vmem:[%s2146] sm:$0x1]
    %v2148 = vmax.f32 %v2147, 0.0
    %s2149 = sld [smem:[#allocation2 + $0x104]]
    %s2150 = scalar_lea.vmem %s3, %s2149
    %v2151 = vld [vmem:[%s2150] sm:$0x1]
    %v2152 = vmax.f32 %v2151, 0.0
    %s2153 = sld [smem:[#allocation2 + $0x105]]
    %s2154 = scalar_lea.vmem %s3, %s2153
    %v2155 = vld [vmem:[%s2154] sm:$0x1]
    %v2156 = vmax.f32 %v2155, 0.0
    %s2157 = sld [smem:[#allocation2 + $0x106]]
    %s2158 = scalar_lea.vmem %s3, %s2157
    %v2159 = vld [vmem:[%s2158] sm:$0x1]
    %v2160 = vmax.f32 %v2159, 0.0
    %s2161 = sld [smem:[#allocation2 + $0x107]]
    %s2162 = scalar_lea.vmem %s3, %s2161
    %v2163 = vld [vmem:[%s2162] sm:$0x1]
    %v2164 = vmax.f32 %v2163, 0.0
    %v2166 = vperm.slane %v2140, 0
    %v2169 = vperm.slane %v2144, 0
    %v2172 = vperm.slane %v2148, 0
    %v2175 = vperm.slane %v2152, 0
    %v2178 = vperm.slane %v2156, 0
    %v2181 = vperm.slane %v2160, 0
    %v2184 = vperm.slane %v2164, 0
    %v2186 = vsel %vm232, %v2136, %v2166
    %v2187 = vsel %vm234, %v2186, %v2169
    %v2188 = vsel %vm236, %v2187, %v2172
    %v2189 = vsel %vm238, %v2188, %v2175
    %v2190 = vsel %vm240, %v2189, %v2178
    %v2191 = vsel %vm242, %v2190, %v2181
    %v2192 = vsel %vm244, %v2191, %v2184
    %v2193 = vld [vmem:[#allocation17] sm:$0xff]
    %v2194 = vpack.c.bf16 %v2192, %v2192
    %v2195 = vld [vmem:[#allocation7] sm:$0xff]
    %v2196 = vld [vmem:[#allocation7 + $0x8] sm:$0xf]
    %v2197 = vld [vmem:[#allocation7 + $0xc] sm:$0xff]
    %v2198 = vld [vmem:[#allocation7 + $0x14] sm:$0xf]
    %v2199 = vld [vmem:[#allocation7 + $0x18] sm:$0xff]
    %v2200 = vld [vmem:[#allocation7 + $0x20] sm:$0xf]
    %v2201 = vld [vmem:[#allocation7 + $0x24] sm:$0xff]
    %v2202 = vld [vmem:[#allocation7 + $0x2c] sm:$0xf]
    %v2203 = vld [vmem:[#allocation7 + $0x30] sm:$0xff]
    %v2204 = vld [vmem:[#allocation7 + $0x38] sm:$0xf]
    %v2205 = vld [vmem:[#allocation7 + $0x3c] sm:$0xff]
    %v2206 = vld [vmem:[#allocation7 + $0x44] sm:$0xf]
    %v2207 = vld [vmem:[#allocation7 + $0x48] sm:$0xff]
    %v2208 = vld [vmem:[#allocation7 + $0x50] sm:$0xf]
    %v2209 = vld [vmem:[#allocation7 + $0x54] sm:$0xff]
    %v2210 = vld [vmem:[#allocation7 + $0x5c] sm:$0xf]
    %v2211 = vld [vmem:[#allocation7 + $0x60] sm:$0xff]
    %v2212 = vld [vmem:[#allocation7 + $0x68] sm:$0xf]
    %v2213 = vld [vmem:[#allocation7 + $0x6c] sm:$0xff]
    %v2214 = vld [vmem:[#allocation7 + $0x74] sm:$0xf]
    %v2215 = vld [vmem:[#allocation7 + $0x78] sm:$0xff]
    %v2216 = vld [vmem:[#allocation7 + $0x80] sm:$0xf]
    %v2217 = vld [vmem:[#allocation7 + $0x84] sm:$0xff]
    %v2218 = vld [vmem:[#allocation7 + $0x8c] sm:$0xf]
    %v2219 = vld [vmem:[#allocation7 + $0x90] sm:$0xff]
    %v2220 = vld [vmem:[#allocation7 + $0x98] sm:$0xf]
    %v2221 = vld [vmem:[#allocation7 + $0x9c] sm:$0xff]
    %v2222 = vld [vmem:[#allocation7 + $0xa4] sm:$0xf]
    %v2223 = vld [vmem:[#allocation7 + $0xa8] sm:$0xff]
    %v2224 = vld [vmem:[#allocation7 + $0xb0] sm:$0xf]
    %v2225 = vld [vmem:[#allocation7 + $0xb4] sm:$0xff]
    %v2226 = vld [vmem:[#allocation7 + $0xbc] sm:$0xf]
    %v2259 = vunpack.c.l.b16 %v2195
    %v2260 = vunpack.c.h.b16 %v2195
    %v2261 = vunpack.c.l.b16 %v2196
    %v2262 = vunpack.c.l.b16 %v2197
    %v2263 = vunpack.c.h.b16 %v2197
    %v2264 = vunpack.c.l.b16 %v2198
    %v2265 = vunpack.c.l.b16 %v2199
    %v2266 = vunpack.c.h.b16 %v2199
    %v2267 = vunpack.c.l.b16 %v2200
    %v2268 = vunpack.c.l.b16 %v2201
    %v2269 = vunpack.c.h.b16 %v2201
    %v2270 = vunpack.c.l.b16 %v2202
    %v2271 = vunpack.c.l.b16 %v2203
    %v2272 = vunpack.c.h.b16 %v2203
    %v2273 = vunpack.c.l.b16 %v2204
    %v2274 = vunpack.c.l.b16 %v2205
    %v2275 = vunpack.c.h.b16 %v2205
    %v2276 = vunpack.c.l.b16 %v2206
    %v2277 = vunpack.c.l.b16 %v2207
    %v2278 = vunpack.c.h.b16 %v2207
    %v2279 = vunpack.c.l.b16 %v2208
    %v2280 = vunpack.c.l.b16 %v2209
    %v2281 = vunpack.c.h.b16 %v2209
    %v2282 = vunpack.c.l.b16 %v2210
    %v2283 = vunpack.c.l.b16 %v2211
    %v2284 = vunpack.c.h.b16 %v2211
    %v2285 = vunpack.c.l.b16 %v2212
    %v2286 = vunpack.c.l.b16 %v2213
    %v2287 = vunpack.c.h.b16 %v2213
    %v2288 = vunpack.c.l.b16 %v2214
    %v2289 = vunpack.c.l.b16 %v2215
    %v2290 = vunpack.c.h.b16 %v2215
    %v2291 = vunpack.c.l.b16 %v2216
    %v2292 = vunpack.c.l.b16 %v2217
    %v2293 = vunpack.c.h.b16 %v2217
    %v2294 = vunpack.c.l.b16 %v2218
    %v2295 = vunpack.c.l.b16 %v2219
    %v2296 = vunpack.c.h.b16 %v2219
    %v2297 = vunpack.c.l.b16 %v2220
    %v2298 = vunpack.c.l.b16 %v2221
    %v2299 = vunpack.c.h.b16 %v2221
    %v2300 = vunpack.c.l.b16 %v2222
    %v2301 = vunpack.c.l.b16 %v2223
    %v2302 = vunpack.c.h.b16 %v2223
    %v2303 = vunpack.c.l.b16 %v2224
    %v2304 = vunpack.c.l.b16 %v2225
    %v2305 = vunpack.c.h.b16 %v2225
    %v2306 = vunpack.c.l.b16 %v2226
    %v2307 = vpack.c.b16 %v2262, %v2259
    %v2308 = vpack.c.b16 %v2263, %v2260
    %v2309 = vpack.c.b16 %v2264, %v2261
    %v2310 = vpack.c.b16 %v2268, %v2265
    %v2311 = vpack.c.b16 %v2269, %v2266
    %v2312 = vpack.c.b16 %v2270, %v2267
    %v2313 = vpack.c.b16 %v2274, %v2271
    %v2314 = vpack.c.b16 %v2275, %v2272
    %v2315 = vpack.c.b16 %v2276, %v2273
    %v2316 = vpack.c.b16 %v2280, %v2277
    %v2317 = vpack.c.b16 %v2281, %v2278
    %v2318 = vpack.c.b16 %v2282, %v2279
    %v2319 = vpack.c.b16 %v2286, %v2283
    %v2320 = vpack.c.b16 %v2287, %v2284
    %v2321 = vpack.c.b16 %v2288, %v2285
    %v2322 = vpack.c.b16 %v2292, %v2289
    %v2323 = vpack.c.b16 %v2293, %v2290
    %v2324 = vpack.c.b16 %v2294, %v2291
    %v2325 = vpack.c.b16 %v2298, %v2295
    %v2326 = vpack.c.b16 %v2299, %v2296
    %v2327 = vpack.c.b16 %v2300, %v2297
    %v2328 = vpack.c.b16 %v2304, %v2301
    %v2329 = vpack.c.b16 %v2305, %v2302
    %v2330 = vpack.c.b16 %v2306, %v2303
    %2355 = vmatpush.bf16.msra.mxu0 %v2328
    %2356 = vmatpush.bf16.msra.mxu0 %v2325
    %2357 = vmatpush.bf16.msra.mxu0 %v2322
    %2358 = vmatpush.bf16.msra.mxu0 %v2319
    %2359 = vmatpush.bf16.msra.mxu0 %v2316
    %2360 = vmatpush.bf16.msra.mxu0 %v2313
    %2361 = vmatpush.bf16.msra.mxu0 %v2310
    %2362 = vmatpush.bf16.msra.mxu0 %v2307
    %2363 = vmatmul.bf16.gmra.mxu0 %v2194
    %v2364 = vpop.f32.mrf.mxu0
    %v2365 = vadd.f32 %v281, %v2364
    %v2366 = vpop.f32.mrf.mxu0
    %2367 = vdwg.mxu0
    %2368 = vmatpush.bf16.msra.mxu0 %v2329
    %2369 = vmatpush.bf16.msra.mxu0 %v2326
    %2370 = vmatpush.bf16.msra.mxu0 %v2323
    %2371 = vmatpush.bf16.msra.mxu0 %v2320
    %2372 = vmatpush.bf16.msra.mxu0 %v2317
    %2373 = vmatpush.bf16.msra.mxu0 %v2314
    %2374 = vmatpush.bf16.msra.mxu0 %v2311
    %2375 = vmatpush.bf16.msra.mxu0 %v2308
    %2376 = vmatmul.bf16.gmra.mxu0 %v2194
    %v2377 = vpop.f32.mrf.mxu0
    %v2378 = vadd.f32 %v282, %v2377
    %v2379 = vpop.f32.mrf.mxu0
    %2380 = vdwg.mxu0
    %2381 = vmatpush.bf16.msra.mxu0 %v2330
    %2382 = vmatpush.bf16.msra.mxu0 %v2327
    %2383 = vmatpush.bf16.msra.mxu0 %v2324
    %2384 = vmatpush.bf16.msra.mxu0 %v2321
    %2385 = vmatpush.bf16.msra.mxu0 %v2318
    %2386 = vmatpush.bf16.msra.mxu0 %v2315
    %2387 = vmatpush.bf16.msra.mxu0 %v2312
    %2388 = vmatpush.bf16.msra.mxu0 %v2309
    %2389 = vmatmul.bf16.gmra.mxu0 %v2194
    %v2390 = vpop.f32.mrf.mxu0
    %v2391 = vadd.f32 %v283, %v2390
    %v2392 = vpop.f32.mrf.mxu0
    %2393 = vdwg.mxu0
    %v2394 = vpack.c.bf16 %v2193, %v2193
    %v2395 = vld [vmem:[#allocation9] sm:$0xff]
    %v2396 = vld [vmem:[#allocation9 + $0x8] sm:$0xf]
    %v2397 = vld [vmem:[#allocation9 + $0xc] sm:$0xff]
    %v2398 = vld [vmem:[#allocation9 + $0x14] sm:$0xf]
    %v2399 = vld [vmem:[#allocation9 + $0x18] sm:$0xff]
    %v2400 = vld [vmem:[#allocation9 + $0x20] sm:$0xf]
    %v2401 = vld [vmem:[#allocation9 + $0x24] sm:$0xff]
    %v2402 = vld [vmem:[#allocation9 + $0x2c] sm:$0xf]
    %v2403 = vld [vmem:[#allocation9 + $0x30] sm:$0xff]
    %v2404 = vld [vmem:[#allocation9 + $0x38] sm:$0xf]
    %v2405 = vld [vmem:[#allocation9 + $0x3c] sm:$0xff]
    %v2406 = vld [vmem:[#allocation9 + $0x44] sm:$0xf]
    %v2407 = vld [vmem:[#allocation9 + $0x48] sm:$0xff]
    %v2408 = vld [vmem:[#allocation9 + $0x50] sm:$0xf]
    %v2409 = vld [vmem:[#allocation9 + $0x54] sm:$0xff]
    %v2410 = vld [vmem:[#allocation9 + $0x5c] sm:$0xf]
    %v2411 = vld [vmem:[#allocation9 + $0x60] sm:$0xff]
    %v2412 = vld [vmem:[#allocation9 + $0x68] sm:$0xf]
    %v2413 = vld [vmem:[#allocation9 + $0x6c] sm:$0xff]
    %v2414 = vld [vmem:[#allocation9 + $0x74] sm:$0xf]
    %v2415 = vld [vmem:[#allocation9 + $0x78] sm:$0xff]
    %v2416 = vld [vmem:[#allocation9 + $0x80] sm:$0xf]
    %v2417 = vld [vmem:[#allocation9 + $0x84] sm:$0xff]
    %v2418 = vld [vmem:[#allocation9 + $0x8c] sm:$0xf]
    %v2419 = vld [vmem:[#allocation9 + $0x90] sm:$0xff]
    %v2420 = vld [vmem:[#allocation9 + $0x98] sm:$0xf]
    %v2421 = vld [vmem:[#allocation9 + $0x9c] sm:$0xff]
    %v2422 = vld [vmem:[#allocation9 + $0xa4] sm:$0xf]
    %v2423 = vld [vmem:[#allocation9 + $0xa8] sm:$0xff]
    %v2424 = vld [vmem:[#allocation9 + $0xb0] sm:$0xf]
    %v2425 = vld [vmem:[#allocation9 + $0xb4] sm:$0xff]
    %v2426 = vld [vmem:[#allocation9 + $0xbc] sm:$0xf]
    %v2459 = vunpack.c.l.b16 %v2395
    %v2460 = vunpack.c.h.b16 %v2395
    %v2461 = vunpack.c.l.b16 %v2396
    %v2462 = vunpack.c.l.b16 %v2397
    %v2463 = vunpack.c.h.b16 %v2397
    %v2464 = vunpack.c.l.b16 %v2398
    %v2465 = vunpack.c.l.b16 %v2399
    %v2466 = vunpack.c.h.b16 %v2399
    %v2467 = vunpack.c.l.b16 %v2400
    %v2468 = vunpack.c.l.b16 %v2401
    %v2469 = vunpack.c.h.b16 %v2401
    %v2470 = vunpack.c.l.b16 %v2402
    %v2471 = vunpack.c.l.b16 %v2403
    %v2472 = vunpack.c.h.b16 %v2403
    %v2473 = vunpack.c.l.b16 %v2404
    %v2474 = vunpack.c.l.b16 %v2405
    %v2475 = vunpack.c.h.b16 %v2405
    %v2476 = vunpack.c.l.b16 %v2406
    %v2477 = vunpack.c.l.b16 %v2407
    %v2478 = vunpack.c.h.b16 %v2407
    %v2479 = vunpack.c.l.b16 %v2408
    %v2480 = vunpack.c.l.b16 %v2409
    %v2481 = vunpack.c.h.b16 %v2409
    %v2482 = vunpack.c.l.b16 %v2410
    %v2483 = vunpack.c.l.b16 %v2411
    %v2484 = vunpack.c.h.b16 %v2411
    %v2485 = vunpack.c.l.b16 %v2412
    %v2486 = vunpack.c.l.b16 %v2413
    %v2487 = vunpack.c.h.b16 %v2413
    %v2488 = vunpack.c.l.b16 %v2414
    %v2489 = vunpack.c.l.b16 %v2415
    %v2490 = vunpack.c.h.b16 %v2415
    %v2491 = vunpack.c.l.b16 %v2416
    %v2492 = vunpack.c.l.b16 %v2417
    %v2493 = vunpack.c.h.b16 %v2417
    %v2494 = vunpack.c.l.b16 %v2418
    %v2495 = vunpack.c.l.b16 %v2419
    %v2496 = vunpack.c.h.b16 %v2419
    %v2497 = vunpack.c.l.b16 %v2420
    %v2498 = vunpack.c.l.b16 %v2421
    %v2499 = vunpack.c.h.b16 %v2421
    %v2500 = vunpack.c.l.b16 %v2422
    %v2501 = vunpack.c.l.b16 %v2423
    %v2502 = vunpack.c.h.b16 %v2423
    %v2503 = vunpack.c.l.b16 %v2424
    %v2504 = vunpack.c.l.b16 %v2425
    %v2505 = vunpack.c.h.b16 %v2425
    %v2506 = vunpack.c.l.b16 %v2426
    %v2507 = vpack.c.b16 %v2462, %v2459
    %v2508 = vpack.c.b16 %v2463, %v2460
    %v2509 = vpack.c.b16 %v2464, %v2461
    %v2510 = vpack.c.b16 %v2468, %v2465
    %v2511 = vpack.c.b16 %v2469, %v2466
    %v2512 = vpack.c.b16 %v2470, %v2467
    %v2513 = vpack.c.b16 %v2474, %v2471
    %v2514 = vpack.c.b16 %v2475, %v2472
    %v2515 = vpack.c.b16 %v2476, %v2473
    %v2516 = vpack.c.b16 %v2480, %v2477
    %v2517 = vpack.c.b16 %v2481, %v2478
    %v2518 = vpack.c.b16 %v2482, %v2479
    %v2519 = vpack.c.b16 %v2486, %v2483
    %v2520 = vpack.c.b16 %v2487, %v2484
    %v2521 = vpack.c.b16 %v2488, %v2485
    %v2522 = vpack.c.b16 %v2492, %v2489
    %v2523 = vpack.c.b16 %v2493, %v2490
    %v2524 = vpack.c.b16 %v2494, %v2491
    %v2525 = vpack.c.b16 %v2498, %v2495
    %v2526 = vpack.c.b16 %v2499, %v2496
    %v2527 = vpack.c.b16 %v2500, %v2497
    %v2528 = vpack.c.b16 %v2504, %v2501
    %v2529 = vpack.c.b16 %v2505, %v2502
    %v2530 = vpack.c.b16 %v2506, %v2503
    %2555 = vmatpush.bf16.msra.mxu0 %v2528
    %2556 = vmatpush.bf16.msra.mxu0 %v2525
    %2557 = vmatpush.bf16.msra.mxu0 %v2522
    %2558 = vmatpush.bf16.msra.mxu0 %v2519
    %2559 = vmatpush.bf16.msra.mxu0 %v2516
    %2560 = vmatpush.bf16.msra.mxu0 %v2513
    %2561 = vmatpush.bf16.msra.mxu0 %v2510
    %2562 = vmatpush.bf16.msra.mxu0 %v2507
    %2563 = vmatmul.bf16.gmra.mxu0 %v2394
    %v2564 = vpop.f32.mrf.mxu0
    %v2565 = vadd.f32 %v488, %v2564
    %v2566 = vpop.f32.mrf.mxu0
    %2567 = vdwg.mxu0
    %2568 = vmatpush.bf16.msra.mxu0 %v2529
    %2569 = vmatpush.bf16.msra.mxu0 %v2526
    %2570 = vmatpush.bf16.msra.mxu0 %v2523
    %2571 = vmatpush.bf16.msra.mxu0 %v2520
    %2572 = vmatpush.bf16.msra.mxu0 %v2517
    %2573 = vmatpush.bf16.msra.mxu0 %v2514
    %2574 = vmatpush.bf16.msra.mxu0 %v2511
    %2575 = vmatpush.bf16.msra.mxu0 %v2508
    %2576 = vmatmul.bf16.gmra.mxu0 %v2394
    %v2577 = vpop.f32.mrf.mxu0
    %v2578 = vadd.f32 %v489, %v2577
    %v2579 = vpop.f32.mrf.mxu0
    %2580 = vdwg.mxu0
    %2581 = vmatpush.bf16.msra.mxu0 %v2530
    %2582 = vmatpush.bf16.msra.mxu0 %v2527
    %2583 = vmatpush.bf16.msra.mxu0 %v2524
    %2584 = vmatpush.bf16.msra.mxu0 %v2521
    %2585 = vmatpush.bf16.msra.mxu0 %v2518
    %2586 = vmatpush.bf16.msra.mxu0 %v2515
    %2587 = vmatpush.bf16.msra.mxu0 %v2512
    %2588 = vmatpush.bf16.msra.mxu0 %v2509
    %2589 = vmatmul.bf16.gmra.mxu0 %v2394
    %v2590 = vpop.f32.mrf.mxu0
    %v2591 = vadd.f32 %v490, %v2590
    %v2592 = vpop.f32.mrf.mxu0
    %2593 = vdwg.mxu0
    %v2594 = vadd.f32 %v2365, %v2565
    %v2595 = vxor.u32 %v2594, 2147483648
    %v2596 = vmul.f32 %v2595, 1.442695
    %v2597 = vpow.pop %v2596
    %v2598 = vadd.f32 %v2597, 1.0
    %v2599 = vrcp.pop %v2598
    %v2600 = vmul.f32 %v2598, %v2599
    %v2601 = vsub.f32 1.0, %v2600
    %v2602 = vmul.f32 %v2599, %v2601
    %v2603 = vadd.f32 %v2599, %v2602
    %vm2604 = vweird.f32 %v2598
    %vm2605 = vweird.f32 %v2599
    %vm2606 = vmor %vm2604, %vm2605
    %v2607 = vsel %vm2606, %v2599, %v2603
    %v2608 = vand.u32 2147483647, %v2598
    %vm2609 = vcmp.eq.f32.partialorder %v2608, 8.507059e+37
    %v2610 = vand.u32 %v2598, 2147483648
    %v2611 = vor.u32 1.1754944e-38, %v2610
    %v2612 = vsel %vm2609, %v2611, %v2607
    %v2613 = vmul.f32 1.0, %v2612
    %v2614 = vadd.f32 %v2378, %v2578
    %v2615 = vxor.u32 %v2614, 2147483648
    %v2616 = vmul.f32 %v2615, 1.442695
    %v2617 = vpow.pop %v2616
    %v2618 = vadd.f32 %v2617, 1.0
    %v2619 = vrcp.pop %v2618
    %v2620 = vmul.f32 %v2618, %v2619
    %v2621 = vsub.f32 1.0, %v2620
    %v2622 = vmul.f32 %v2619, %v2621
    %v2623 = vadd.f32 %v2619, %v2622
    %vm2624 = vweird.f32 %v2618
    %vm2625 = vweird.f32 %v2619
    %vm2626 = vmor %vm2624, %vm2625
    %v2627 = vsel %vm2626, %v2619, %v2623
    %v2628 = vand.u32 2147483647, %v2618
    %vm2629 = vcmp.eq.f32.partialorder %v2628, 8.507059e+37
    %v2630 = vand.u32 %v2618, 2147483648
    %v2631 = vor.u32 1.1754944e-38, %v2630
    %v2632 = vsel %vm2629, %v2631, %v2627
    %v2633 = vmul.f32 1.0, %v2632
    %v2634 = vmul.f32 %v2613, %v2591
    %v2635 = vadd.f32 %v2391, %v2634
    %v2636 = vtanh.pop %v2635
    %v2637 = vsub.f32 1.0, %v2633
    %v2638 = vmul.f32 %v2637, %v2636
    %v2639 = vmul.f32 %v2633, %v2193
    %v2640 = vadd.f32 %v2638, %v2639
    %2641 = vst [vmem:[#allocation17] sm:$0xff] %v2640
    %v2642 = vld [vmem:[%s709] sm:$0xff]
    %v2643 = vpack.c.bf16 %v2640, %v2640
    %v2644 = vld [vmem:[%s712] sm:$0xff]
    %v2645 = vld [vmem:[%s712 + $0x8] sm:$0xf]
    %v2646 = vld [vmem:[%s712 + $0xc] sm:$0xff]
    %v2647 = vld [vmem:[%s712 + $0x14] sm:$0xf]
    %v2648 = vld [vmem:[%s712 + $0x18] sm:$0xff]
    %v2649 = vld [vmem:[%s712 + $0x20] sm:$0xf]
    %v2650 = vld [vmem:[%s712 + $0x24] sm:$0xff]
    %v2651 = vld [vmem:[%s712 + $0x2c] sm:$0xf]
    %v2652 = vld [vmem:[%s712 + $0x30] sm:$0xff]
    %v2653 = vld [vmem:[%s712 + $0x38] sm:$0xf]
    %v2654 = vld [vmem:[%s712 + $0x3c] sm:$0xff]
    %v2655 = vld [vmem:[%s712 + $0x44] sm:$0xf]
    %v2656 = vld [vmem:[%s712 + $0x48] sm:$0xff]
    %v2657 = vld [vmem:[%s712 + $0x50] sm:$0xf]
    %v2658 = vld [vmem:[%s712 + $0x54] sm:$0xff]
    %v2659 = vld [vmem:[%s712 + $0x5c] sm:$0xf]
    %v2660 = vld [vmem:[%s712 + $0x60] sm:$0xff]
    %v2661 = vld [vmem:[%s712 + $0x68] sm:$0xf]
    %v2662 = vld [vmem:[%s712 + $0x6c] sm:$0xff]
    %v2663 = vld [vmem:[%s712 + $0x74] sm:$0xf]
    %v2664 = vld [vmem:[%s712 + $0x78] sm:$0xff]
    %v2665 = vld [vmem:[%s712 + $0x80] sm:$0xf]
    %v2666 = vld [vmem:[%s712 + $0x84] sm:$0xff]
    %v2667 = vld [vmem:[%s712 + $0x8c] sm:$0xf]
    %v2668 = vld [vmem:[%s712 + $0x90] sm:$0xff]
    %v2669 = vld [vmem:[%s712 + $0x98] sm:$0xf]
    %v2670 = vld [vmem:[%s712 + $0x9c] sm:$0xff]
    %v2671 = vld [vmem:[%s712 + $0xa4] sm:$0xf]
    %v2672 = vld [vmem:[%s712 + $0xa8] sm:$0xff]
    %v2673 = vld [vmem:[%s712 + $0xb0] sm:$0xf]
    %v2674 = vld [vmem:[%s712 + $0xb4] sm:$0xff]
    %v2675 = vld [vmem:[%s712 + $0xbc] sm:$0xf]
    %v2708 = vunpack.c.l.b16 %v2644
    %v2709 = vunpack.c.h.b16 %v2644
    %v2710 = vunpack.c.l.b16 %v2645
    %v2711 = vunpack.c.l.b16 %v2646
    %v2712 = vunpack.c.h.b16 %v2646
    %v2713 = vunpack.c.l.b16 %v2647
    %v2714 = vunpack.c.l.b16 %v2648
    %v2715 = vunpack.c.h.b16 %v2648
    %v2716 = vunpack.c.l.b16 %v2649
    %v2717 = vunpack.c.l.b16 %v2650
    %v2718 = vunpack.c.h.b16 %v2650
    %v2719 = vunpack.c.l.b16 %v2651
    %v2720 = vunpack.c.l.b16 %v2652
    %v2721 = vunpack.c.h.b16 %v2652
    %v2722 = vunpack.c.l.b16 %v2653
    %v2723 = vunpack.c.l.b16 %v2654
    %v2724 = vunpack.c.h.b16 %v2654
    %v2725 = vunpack.c.l.b16 %v2655
    %v2726 = vunpack.c.l.b16 %v2656
    %v2727 = vunpack.c.h.b16 %v2656
    %v2728 = vunpack.c.l.b16 %v2657
    %v2729 = vunpack.c.l.b16 %v2658
    %v2730 = vunpack.c.h.b16 %v2658
    %v2731 = vunpack.c.l.b16 %v2659
    %v2732 = vunpack.c.l.b16 %v2660
    %v2733 = vunpack.c.h.b16 %v2660
    %v2734 = vunpack.c.l.b16 %v2661
    %v2735 = vunpack.c.l.b16 %v2662
    %v2736 = vunpack.c.h.b16 %v2662
    %v2737 = vunpack.c.l.b16 %v2663
    %v2738 = vunpack.c.l.b16 %v2664
    %v2739 = vunpack.c.h.b16 %v2664
    %v2740 = vunpack.c.l.b16 %v2665
    %v2741 = vunpack.c.l.b16 %v2666
    %v2742 = vunpack.c.h.b16 %v2666
    %v2743 = vunpack.c.l.b16 %v2667
    %v2744 = vunpack.c.l.b16 %v2668
    %v2745 = vunpack.c.h.b16 %v2668
    %v2746 = vunpack.c.l.b16 %v2669
    %v2747 = vunpack.c.l.b16 %v2670
    %v2748 = vunpack.c.h.b16 %v2670
    %v2749 = vunpack.c.l.b16 %v2671
    %v2750 = vunpack.c.l.b16 %v2672
    %v2751 = vunpack.c.h.b16 %v2672
    %v2752 = vunpack.c.l.b16 %v2673
    %v2753 = vunpack.c.l.b16 %v2674
    %v2754 = vunpack.c.h.b16 %v2674
    %v2755 = vunpack.c.l.b16 %v2675
    %v2756 = vpack.c.b16 %v2711, %v2708
    %v2757 = vpack.c.b16 %v2712, %v2709
    %v2758 = vpack.c.b16 %v2713, %v2710
    %v2759 = vpack.c.b16 %v2717, %v2714
    %v2760 = vpack.c.b16 %v2718, %v2715
    %v2761 = vpack.c.b16 %v2719, %v2716
    %v2762 = vpack.c.b16 %v2723, %v2720
    %v2763 = vpack.c.b16 %v2724, %v2721
    %v2764 = vpack.c.b16 %v2725, %v2722
    %v2765 = vpack.c.b16 %v2729, %v2726
    %v2766 = vpack.c.b16 %v2730, %v2727
    %v2767 = vpack.c.b16 %v2731, %v2728
    %v2768 = vpack.c.b16 %v2735, %v2732
    %v2769 = vpack.c.b16 %v2736, %v2733
    %v2770 = vpack.c.b16 %v2737, %v2734
    %v2771 = vpack.c.b16 %v2741, %v2738
    %v2772 = vpack.c.b16 %v2742, %v2739
    %v2773 = vpack.c.b16 %v2743, %v2740
    %v2774 = vpack.c.b16 %v2747, %v2744
    %v2775 = vpack.c.b16 %v2748, %v2745
    %v2776 = vpack.c.b16 %v2749, %v2746
    %v2777 = vpack.c.b16 %v2753, %v2750
    %v2778 = vpack.c.b16 %v2754, %v2751
    %v2779 = vpack.c.b16 %v2755, %v2752
    %2804 = vmatpush.bf16.msra.mxu0 %v2777
    %2805 = vmatpush.bf16.msra.mxu0 %v2774
    %2806 = vmatpush.bf16.msra.mxu0 %v2771
    %2807 = vmatpush.bf16.msra.mxu0 %v2768
    %2808 = vmatpush.bf16.msra.mxu0 %v2765
    %2809 = vmatpush.bf16.msra.mxu0 %v2762
    %2810 = vmatpush.bf16.msra.mxu0 %v2759
    %2811 = vmatpush.bf16.msra.mxu0 %v2756
    %2812 = vmatmul.bf16.gmra.mxu0 %v2643
    %v2813 = vpop.f32.mrf.mxu0
    %v2814 = vadd.f32 %v746, %v2813
    %v2815 = vpop.f32.mrf.mxu0
    %2816 = vdwg.mxu0
    %2817 = vmatpush.bf16.msra.mxu0 %v2778
    %2818 = vmatpush.bf16.msra.mxu0 %v2775
    %2819 = vmatpush.bf16.msra.mxu0 %v2772
    %2820 = vmatpush.bf16.msra.mxu0 %v2769
    %2821 = vmatpush.bf16.msra.mxu0 %v2766
    %2822 = vmatpush.bf16.msra.mxu0 %v2763
    %2823 = vmatpush.bf16.msra.mxu0 %v2760
    %2824 = vmatpush.bf16.msra.mxu0 %v2757
    %2825 = vmatmul.bf16.gmra.mxu0 %v2643
    %v2826 = vpop.f32.mrf.mxu0
    %v2827 = vadd.f32 %v747, %v2826
    %v2828 = vpop.f32.mrf.mxu0
    %2829 = vdwg.mxu0
    %2830 = vmatpush.bf16.msra.mxu0 %v2779
    %2831 = vmatpush.bf16.msra.mxu0 %v2776
    %2832 = vmatpush.bf16.msra.mxu0 %v2773
    %2833 = vmatpush.bf16.msra.mxu0 %v2770
    %2834 = vmatpush.bf16.msra.mxu0 %v2767
    %2835 = vmatpush.bf16.msra.mxu0 %v2764
    %2836 = vmatpush.bf16.msra.mxu0 %v2761
    %2837 = vmatpush.bf16.msra.mxu0 %v2758
    %2838 = vmatmul.bf16.gmra.mxu0 %v2643
    %v2839 = vpop.f32.mrf.mxu0
    %v2840 = vadd.f32 %v748, %v2839
    %v2841 = vpop.f32.mrf.mxu0
    %2842 = vdwg.mxu0
    %v2843 = vpack.c.bf16 %v2642, %v2642
    %v2844 = vld [vmem:[%s920] sm:$0xff]
    %v2845 = vld [vmem:[%s920 + $0x8] sm:$0xf]
    %v2846 = vld [vmem:[%s920 + $0xc] sm:$0xff]
    %v2847 = vld [vmem:[%s920 + $0x14] sm:$0xf]
    %v2848 = vld [vmem:[%s920 + $0x18] sm:$0xff]
    %v2849 = vld [vmem:[%s920 + $0x20] sm:$0xf]
    %v2850 = vld [vmem:[%s920 + $0x24] sm:$0xff]
    %v2851 = vld [vmem:[%s920 + $0x2c] sm:$0xf]
    %v2852 = vld [vmem:[%s920 + $0x30] sm:$0xff]
    %v2853 = vld [vmem:[%s920 + $0x38] sm:$0xf]
    %v2854 = vld [vmem:[%s920 + $0x3c] sm:$0xff]
    %v2855 = vld [vmem:[%s920 + $0x44] sm:$0xf]
    %v2856 = vld [vmem:[%s920 + $0x48] sm:$0xff]
    %v2857 = vld [vmem:[%s920 + $0x50] sm:$0xf]
    %v2858 = vld [vmem:[%s920 + $0x54] sm:$0xff]
    %v2859 = vld [vmem:[%s920 + $0x5c] sm:$0xf]
    %v2860 = vld [vmem:[%s920 + $0x60] sm:$0xff]
    %v2861 = vld [vmem:[%s920 + $0x68] sm:$0xf]
    %v2862 = vld [vmem:[%s920 + $0x6c] sm:$0xff]
    %v2863 = vld [vmem:[%s920 + $0x74] sm:$0xf]
    %v2864 = vld [vmem:[%s920 + $0x78] sm:$0xff]
    %v2865 = vld [vmem:[%s920 + $0x80] sm:$0xf]
    %v2866 = vld [vmem:[%s920 + $0x84] sm:$0xff]
    %v2867 = vld [vmem:[%s920 + $0x8c] sm:$0xf]
    %v2868 = vld [vmem:[%s920 + $0x90] sm:$0xff]
    %v2869 = vld [vmem:[%s920 + $0x98] sm:$0xf]
    %v2870 = vld [vmem:[%s920 + $0x9c] sm:$0xff]
    %v2871 = vld [vmem:[%s920 + $0xa4] sm:$0xf]
    %v2872 = vld [vmem:[%s920 + $0xa8] sm:$0xff]
    %v2873 = vld [vmem:[%s920 + $0xb0] sm:$0xf]
    %v2874 = vld [vmem:[%s920 + $0xb4] sm:$0xff]
    %v2875 = vld [vmem:[%s920 + $0xbc] sm:$0xf]
    %v2908 = vunpack.c.l.b16 %v2844
    %v2909 = vunpack.c.h.b16 %v2844
    %v2910 = vunpack.c.l.b16 %v2845
    %v2911 = vunpack.c.l.b16 %v2846
    %v2912 = vunpack.c.h.b16 %v2846
    %v2913 = vunpack.c.l.b16 %v2847
    %v2914 = vunpack.c.l.b16 %v2848
    %v2915 = vunpack.c.h.b16 %v2848
    %v2916 = vunpack.c.l.b16 %v2849
    %v2917 = vunpack.c.l.b16 %v2850
    %v2918 = vunpack.c.h.b16 %v2850
    %v2919 = vunpack.c.l.b16 %v2851
    %v2920 = vunpack.c.l.b16 %v2852
    %v2921 = vunpack.c.h.b16 %v2852
    %v2922 = vunpack.c.l.b16 %v2853
    %v2923 = vunpack.c.l.b16 %v2854
    %v2924 = vunpack.c.h.b16 %v2854
    %v2925 = vunpack.c.l.b16 %v2855
    %v2926 = vunpack.c.l.b16 %v2856
    %v2927 = vunpack.c.h.b16 %v2856
    %v2928 = vunpack.c.l.b16 %v2857
    %v2929 = vunpack.c.l.b16 %v2858
    %v2930 = vunpack.c.h.b16 %v2858
    %v2931 = vunpack.c.l.b16 %v2859
    %v2932 = vunpack.c.l.b16 %v2860
    %v2933 = vunpack.c.h.b16 %v2860
    %v2934 = vunpack.c.l.b16 %v2861
    %v2935 = vunpack.c.l.b16 %v2862
    %v2936 = vunpack.c.h.b16 %v2862
    %v2937 = vunpack.c.l.b16 %v2863
    %v2938 = vunpack.c.l.b16 %v2864
    %v2939 = vunpack.c.h.b16 %v2864
    %v2940 = vunpack.c.l.b16 %v2865
    %v2941 = vunpack.c.l.b16 %v2866
    %v2942 = vunpack.c.h.b16 %v2866
    %v2943 = vunpack.c.l.b16 %v2867
    %v2944 = vunpack.c.l.b16 %v2868
    %v2945 = vunpack.c.h.b16 %v2868
    %v2946 = vunpack.c.l.b16 %v2869
    %v2947 = vunpack.c.l.b16 %v2870
    %v2948 = vunpack.c.h.b16 %v2870
    %v2949 = vunpack.c.l.b16 %v2871
    %v2950 = vunpack.c.l.b16 %v2872
    %v2951 = vunpack.c.h.b16 %v2872
    %v2952 = vunpack.c.l.b16 %v2873
    %v2953 = vunpack.c.l.b16 %v2874
    %v2954 = vunpack.c.h.b16 %v2874
    %v2955 = vunpack.c.l.b16 %v2875
    %v2956 = vpack.c.b16 %v2911, %v2908
    %v2957 = vpack.c.b16 %v2912, %v2909
    %v2958 = vpack.c.b16 %v2913, %v2910
    %v2959 = vpack.c.b16 %v2917, %v2914
    %v2960 = vpack.c.b16 %v2918, %v2915
    %v2961 = vpack.c.b16 %v2919, %v2916
    %v2962 = vpack.c.b16 %v2923, %v2920
    %v2963 = vpack.c.b16 %v2924, %v2921
    %v2964 = vpack.c.b16 %v2925, %v2922
    %v2965 = vpack.c.b16 %v2929, %v2926
    %v2966 = vpack.c.b16 %v2930, %v2927
    %v2967 = vpack.c.b16 %v2931, %v2928
    %v2968 = vpack.c.b16 %v2935, %v2932
    %v2969 = vpack.c.b16 %v2936, %v2933
    %v2970 = vpack.c.b16 %v2937, %v2934
    %v2971 = vpack.c.b16 %v2941, %v2938
    %v2972 = vpack.c.b16 %v2942, %v2939
    %v2973 = vpack.c.b16 %v2943, %v2940
    %v2974 = vpack.c.b16 %v2947, %v2944
    %v2975 = vpack.c.b16 %v2948, %v2945
    %v2976 = vpack.c.b16 %v2949, %v2946
    %v2977 = vpack.c.b16 %v2953, %v2950
    %v2978 = vpack.c.b16 %v2954, %v2951
    %v2979 = vpack.c.b16 %v2955, %v2952
    %3004 = vmatpush.bf16.msra.mxu0 %v2977
    %3005 = vmatpush.bf16.msra.mxu0 %v2974
    %3006 = vmatpush.bf16.msra.mxu0 %v2971
    %3007 = vmatpush.bf16.msra.mxu0 %v2968
    %3008 = vmatpush.bf16.msra.mxu0 %v2965
    %3009 = vmatpush.bf16.msra.mxu0 %v2962
    %3010 = vmatpush.bf16.msra.mxu0 %v2959
    %3011 = vmatpush.bf16.msra.mxu0 %v2956
    %3012 = vmatmul.bf16.gmra.mxu0 %v2843
    %v3013 = vpop.f32.mrf.mxu0
    %v3014 = vadd.f32 %v954, %v3013
    %v3015 = vpop.f32.mrf.mxu0
    %3016 = vdwg.mxu0
    %3017 = vmatpush.bf16.msra.mxu0 %v2978
    %3018 = vmatpush.bf16.msra.mxu0 %v2975
    %3019 = vmatpush.bf16.msra.mxu0 %v2972
    %3020 = vmatpush.bf16.msra.mxu0 %v2969
    %3021 = vmatpush.bf16.msra.mxu0 %v2966
    %3022 = vmatpush.bf16.msra.mxu0 %v2963
    %3023 = vmatpush.bf16.msra.mxu0 %v2960
    %3024 = vmatpush.bf16.msra.mxu0 %v2957
    %3025 = vmatmul.bf16.gmra.mxu0 %v2843
    %v3026 = vpop.f32.mrf.mxu0
    %v3027 = vadd.f32 %v955, %v3026
    %v3028 = vpop.f32.mrf.mxu0
    %3029 = vdwg.mxu0
    %3030 = vmatpush.bf16.msra.mxu0 %v2979
    %3031 = vmatpush.bf16.msra.mxu0 %v2976
    %3032 = vmatpush.bf16.msra.mxu0 %v2973
    %3033 = vmatpush.bf16.msra.mxu0 %v2970
    %3034 = vmatpush.bf16.msra.mxu0 %v2967
    %3035 = vmatpush.bf16.msra.mxu0 %v2964
    %3036 = vmatpush.bf16.msra.mxu0 %v2961
    %3037 = vmatpush.bf16.msra.mxu0 %v2958
    %3038 = vmatmul.bf16.gmra.mxu0 %v2843
    %v3039 = vpop.f32.mrf.mxu0
    %v3040 = vadd.f32 %v956, %v3039
    %v3041 = vpop.f32.mrf.mxu0
    %3042 = vdwg.mxu0
    %v3043 = vadd.f32 %v2814, %v3014
    %v3044 = vxor.u32 %v3043, 2147483648
    %v3045 = vmul.f32 %v3044, 1.442695
    %v3046 = vpow.pop %v3045
    %v3047 = vadd.f32 %v3046, 1.0
    %v3048 = vrcp.pop %v3047
    %v3049 = vmul.f32 %v3047, %v3048
    %v3050 = vsub.f32 1.0, %v3049
    %v3051 = vmul.f32 %v3048, %v3050
    %v3052 = vadd.f32 %v3048, %v3051
    %vm3053 = vweird.f32 %v3047
    %vm3054 = vweird.f32 %v3048
    %vm3055 = vmor %vm3053, %vm3054
    %v3056 = vsel %vm3055, %v3048, %v3052
    %v3057 = vand.u32 2147483647, %v3047
    %vm3058 = vcmp.eq.f32.partialorder %v3057, 8.507059e+37
    %v3059 = vand.u32 %v3047, 2147483648
    %v3060 = vor.u32 1.1754944e-38, %v3059
    %v3061 = vsel %vm3058, %v3060, %v3056
    %v3062 = vmul.f32 1.0, %v3061
    %v3063 = vadd.f32 %v2827, %v3027
    %v3064 = vxor.u32 %v3063, 2147483648
    %v3065 = vmul.f32 %v3064, 1.442695
    %v3066 = vpow.pop %v3065
    %v3067 = vadd.f32 %v3066, 1.0
    %v3068 = vrcp.pop %v3067
    %v3069 = vmul.f32 %v3067, %v3068
    %v3070 = vsub.f32 1.0, %v3069
    %v3071 = vmul.f32 %v3068, %v3070
    %v3072 = vadd.f32 %v3068, %v3071
    %vm3073 = vweird.f32 %v3067
    %vm3074 = vweird.f32 %v3068
    %vm3075 = vmor %vm3073, %vm3074
    %v3076 = vsel %vm3075, %v3068, %v3072
    %v3077 = vand.u32 2147483647, %v3067
    %vm3078 = vcmp.eq.f32.partialorder %v3077, 8.507059e+37
    %v3079 = vand.u32 %v3067, 2147483648
    %v3080 = vor.u32 1.1754944e-38, %v3079
    %v3081 = vsel %vm3078, %v3080, %v3076
    %v3082 = vmul.f32 1.0, %v3081
    %v3083 = vmul.f32 %v3062, %v3040
    %v3084 = vadd.f32 %v2840, %v3083
    %v3085 = vtanh.pop %v3084
    %v3086 = vsub.f32 1.0, %v3082
    %v3087 = vmul.f32 %v3086, %v3085
    %v3088 = vmul.f32 %v3082, %v2642
    %v3089 = vadd.f32 %v3087, %v3088
    %3090 = vst [vmem:[%s709] sm:$0xff] %v3089
    %s3091 = sld [smem:[#allocation2 + $0x180]]
    %s3092 = scalar_lea.vmem %s3, %s3091
    %v3093 = vld [vmem:[%s3092] sm:$0x1]
    %v3094 = vmax.f32 %v3093, 0.0
    %s3095 = sld [smem:[#allocation2 + $0x181]]
    %s3096 = scalar_lea.vmem %s3, %s3095
    %v3097 = vld [vmem:[%s3096] sm:$0x1]
    %v3098 = vmax.f32 %v3097, 0.0
    %s3099 = sld [smem:[#allocation2 + $0x182]]
    %s3100 = scalar_lea.vmem %s3, %s3099
    %v3101 = vld [vmem:[%s3100] sm:$0x1]
    %v3102 = vmax.f32 %v3101, 0.0
    %s3103 = sld [smem:[#allocation2 + $0x183]]
    %s3104 = scalar_lea.vmem %s3, %s3103
    %v3105 = vld [vmem:[%s3104] sm:$0x1]
    %v3106 = vmax.f32 %v3105, 0.0
    %s3107 = sld [smem:[#allocation2 + $0x184]]
    %s3108 = scalar_lea.vmem %s3, %s3107
    %v3109 = vld [vmem:[%s3108] sm:$0x1]
    %v3110 = vmax.f32 %v3109, 0.0
    %s3111 = sld [smem:[#allocation2 + $0x185]]
    %s3112 = scalar_lea.vmem %s3, %s3111
    %v3113 = vld [vmem:[%s3112] sm:$0x1]
    %v3114 = vmax.f32 %v3113, 0.0
    %s3115 = sld [smem:[#allocation2 + $0x186]]
    %s3116 = scalar_lea.vmem %s3, %s3115
    %v3117 = vld [vmem:[%s3116] sm:$0x1]
    %v3118 = vmax.f32 %v3117, 0.0
    %s3119 = sld [smem:[#allocation2 + $0x187]]
    %s3120 = scalar_lea.vmem %s3, %s3119
    %v3121 = vld [vmem:[%s3120] sm:$0x1]
    %v3122 = vmax.f32 %v3121, 0.0
    %v3124 = vperm.slane %v3098, 0
    %v3127 = vperm.slane %v3102, 0
    %v3130 = vperm.slane %v3106, 0
    %v3133 = vperm.slane %v3110, 0
    %v3136 = vperm.slane %v3114, 0
    %v3139 = vperm.slane %v3118, 0
    %v3142 = vperm.slane %v3122, 0
    %v3144 = vsel %vm232, %v3094, %v3124
    %v3145 = vsel %vm234, %v3144, %v3127
    %v3146 = vsel %vm236, %v3145, %v3130
    %v3147 = vsel %vm238, %v3146, %v3133
    %v3148 = vsel %vm240, %v3147, %v3136
    %v3149 = vsel %vm242, %v3148, %v3139
    %v3150 = vsel %vm244, %v3149, %v3142
    %v3151 = vld [vmem:[#allocation17] sm:$0xff]
    %v3152 = vpack.c.bf16 %v3150, %v3150
    %v3153 = vld [vmem:[#allocation7] sm:$0xff]
    %v3154 = vld [vmem:[#allocation7 + $0x8] sm:$0xf]
    %v3155 = vld [vmem:[#allocation7 + $0xc] sm:$0xff]
    %v3156 = vld [vmem:[#allocation7 + $0x14] sm:$0xf]
    %v3157 = vld [vmem:[#allocation7 + $0x18] sm:$0xff]
    %v3158 = vld [vmem:[#allocation7 + $0x20] sm:$0xf]
    %v3159 = vld [vmem:[#allocation7 + $0x24] sm:$0xff]
    %v3160 = vld [vmem:[#allocation7 + $0x2c] sm:$0xf]
    %v3161 = vld [vmem:[#allocation7 + $0x30] sm:$0xff]
    %v3162 = vld [vmem:[#allocation7 + $0x38] sm:$0xf]
    %v3163 = vld [vmem:[#allocation7 + $0x3c] sm:$0xff]
    %v3164 = vld [vmem:[#allocation7 + $0x44] sm:$0xf]
    %v3165 = vld [vmem:[#allocation7 + $0x48] sm:$0xff]
    %v3166 = vld [vmem:[#allocation7 + $0x50] sm:$0xf]
    %v3167 = vld [vmem:[#allocation7 + $0x54] sm:$0xff]
    %v3168 = vld [vmem:[#allocation7 + $0x5c] sm:$0xf]
    %v3169 = vld [vmem:[#allocation7 + $0x60] sm:$0xff]
    %v3170 = vld [vmem:[#allocation7 + $0x68] sm:$0xf]
    %v3171 = vld [vmem:[#allocation7 + $0x6c] sm:$0xff]
    %v3172 = vld [vmem:[#allocation7 + $0x74] sm:$0xf]
    %v3173 = vld [vmem:[#allocation7 + $0x78] sm:$0xff]
    %v3174 = vld [vmem:[#allocation7 + $0x80] sm:$0xf]
    %v3175 = vld [vmem:[#allocation7 + $0x84] sm:$0xff]
    %v3176 = vld [vmem:[#allocation7 + $0x8c] sm:$0xf]
    %v3177 = vld [vmem:[#allocation7 + $0x90] sm:$0xff]
    %v3178 = vld [vmem:[#allocation7 + $0x98] sm:$0xf]
    %v3179 = vld [vmem:[#allocation7 + $0x9c] sm:$0xff]
    %v3180 = vld [vmem:[#allocation7 + $0xa4] sm:$0xf]
    %v3181 = vld [vmem:[#allocation7 + $0xa8] sm:$0xff]
    %v3182 = vld [vmem:[#allocation7 + $0xb0] sm:$0xf]
    %v3183 = vld [vmem:[#allocation7 + $0xb4] sm:$0xff]
    %v3184 = vld [vmem:[#allocation7 + $0xbc] sm:$0xf]
    %v3217 = vunpack.c.l.b16 %v3153
    %v3218 = vunpack.c.h.b16 %v3153
    %v3219 = vunpack.c.l.b16 %v3154
    %v3220 = vunpack.c.l.b16 %v3155
    %v3221 = vunpack.c.h.b16 %v3155
    %v3222 = vunpack.c.l.b16 %v3156
    %v3223 = vunpack.c.l.b16 %v3157
    %v3224 = vunpack.c.h.b16 %v3157
    %v3225 = vunpack.c.l.b16 %v3158
    %v3226 = vunpack.c.l.b16 %v3159
    %v3227 = vunpack.c.h.b16 %v3159
    %v3228 = vunpack.c.l.b16 %v3160
    %v3229 = vunpack.c.l.b16 %v3161
    %v3230 = vunpack.c.h.b16 %v3161
    %v3231 = vunpack.c.l.b16 %v3162
    %v3232 = vunpack.c.l.b16 %v3163
    %v3233 = vunpack.c.h.b16 %v3163
    %v3234 = vunpack.c.l.b16 %v3164
    %v3235 = vunpack.c.l.b16 %v3165
    %v3236 = vunpack.c.h.b16 %v3165
    %v3237 = vunpack.c.l.b16 %v3166
    %v3238 = vunpack.c.l.b16 %v3167
    %v3239 = vunpack.c.h.b16 %v3167
    %v3240 = vunpack.c.l.b16 %v3168
    %v3241 = vunpack.c.l.b16 %v3169
    %v3242 = vunpack.c.h.b16 %v3169
    %v3243 = vunpack.c.l.b16 %v3170
    %v3244 = vunpack.c.l.b16 %v3171
    %v3245 = vunpack.c.h.b16 %v3171
    %v3246 = vunpack.c.l.b16 %v3172
    %v3247 = vunpack.c.l.b16 %v3173
    %v3248 = vunpack.c.h.b16 %v3173
    %v3249 = vunpack.c.l.b16 %v3174
    %v3250 = vunpack.c.l.b16 %v3175
    %v3251 = vunpack.c.h.b16 %v3175
    %v3252 = vunpack.c.l.b16 %v3176
    %v3253 = vunpack.c.l.b16 %v3177
    %v3254 = vunpack.c.h.b16 %v3177
    %v3255 = vunpack.c.l.b16 %v3178
    %v3256 = vunpack.c.l.b16 %v3179
    %v3257 = vunpack.c.h.b16 %v3179
    %v3258 = vunpack.c.l.b16 %v3180
    %v3259 = vunpack.c.l.b16 %v3181
    %v3260 = vunpack.c.h.b16 %v3181
    %v3261 = vunpack.c.l.b16 %v3182
    %v3262 = vunpack.c.l.b16 %v3183
    %v3263 = vunpack.c.h.b16 %v3183
    %v3264 = vunpack.c.l.b16 %v3184
    %v3265 = vpack.c.b16 %v3220, %v3217
    %v3266 = vpack.c.b16 %v3221, %v3218
    %v3267 = vpack.c.b16 %v3222, %v3219
    %v3268 = vpack.c.b16 %v3226, %v3223
    %v3269 = vpack.c.b16 %v3227, %v3224
    %v3270 = vpack.c.b16 %v3228, %v3225
    %v3271 = vpack.c.b16 %v3232, %v3229
    %v3272 = vpack.c.b16 %v3233, %v3230
    %v3273 = vpack.c.b16 %v3234, %v3231
    %v3274 = vpack.c.b16 %v3238, %v3235
    %v3275 = vpack.c.b16 %v3239, %v3236
    %v3276 = vpack.c.b16 %v3240, %v3237
    %v3277 = vpack.c.b16 %v3244, %v3241
    %v3278 = vpack.c.b16 %v3245, %v3242
    %v3279 = vpack.c.b16 %v3246, %v3243
    %v3280 = vpack.c.b16 %v3250, %v3247
    %v3281 = vpack.c.b16 %v3251, %v3248
    %v3282 = vpack.c.b16 %v3252, %v3249
    %v3283 = vpack.c.b16 %v3256, %v3253
    %v3284 = vpack.c.b16 %v3257, %v3254
    %v3285 = vpack.c.b16 %v3258, %v3255
    %v3286 = vpack.c.b16 %v3262, %v3259
    %v3287 = vpack.c.b16 %v3263, %v3260
    %v3288 = vpack.c.b16 %v3264, %v3261
    %3313 = vmatpush.bf16.msra.mxu0 %v3286
    %3314 = vmatpush.bf16.msra.mxu0 %v3283
    %3315 = vmatpush.bf16.msra.mxu0 %v3280
    %3316 = vmatpush.bf16.msra.mxu0 %v3277
    %3317 = vmatpush.bf16.msra.mxu0 %v3274
    %3318 = vmatpush.bf16.msra.mxu0 %v3271
    %3319 = vmatpush.bf16.msra.mxu0 %v3268
    %3320 = vmatpush.bf16.msra.mxu0 %v3265
    %3321 = vmatmul.bf16.gmra.mxu0 %v3152
    %v3322 = vpop.f32.mrf.mxu0
    %v3323 = vadd.f32 %v281, %v3322
    %v3324 = vpop.f32.mrf.mxu0
    %3325 = vdwg.mxu0
    %3326 = vmatpush.bf16.msra.mxu0 %v3287
    %3327 = vmatpush.bf16.msra.mxu0 %v3284
    %3328 = vmatpush.bf16.msra.mxu0 %v3281
    %3329 = vmatpush.bf16.msra.mxu0 %v3278
    %3330 = vmatpush.bf16.msra.mxu0 %v3275
    %3331 = vmatpush.bf16.msra.mxu0 %v3272
    %3332 = vmatpush.bf16.msra.mxu0 %v3269
    %3333 = vmatpush.bf16.msra.mxu0 %v3266
    %3334 = vmatmul.bf16.gmra.mxu0 %v3152
    %v3335 = vpop.f32.mrf.mxu0
    %v3336 = vadd.f32 %v282, %v3335
    %v3337 = vpop.f32.mrf.mxu0
    %3338 = vdwg.mxu0
    %3339 = vmatpush.bf16.msra.mxu0 %v3288
    %3340 = vmatpush.bf16.msra.mxu0 %v3285
    %3341 = vmatpush.bf16.msra.mxu0 %v3282
    %3342 = vmatpush.bf16.msra.mxu0 %v3279
    %3343 = vmatpush.bf16.msra.mxu0 %v3276
    %3344 = vmatpush.bf16.msra.mxu0 %v3273
    %3345 = vmatpush.bf16.msra.mxu0 %v3270
    %3346 = vmatpush.bf16.msra.mxu0 %v3267
    %3347 = vmatmul.bf16.gmra.mxu0 %v3152
    %v3348 = vpop.f32.mrf.mxu0
    %v3349 = vadd.f32 %v283, %v3348
    %v3350 = vpop.f32.mrf.mxu0
    %3351 = vdwg.mxu0
    %v3352 = vpack.c.bf16 %v3151, %v3151
    %v3353 = vld [vmem:[#allocation9] sm:$0xff]
    %v3354 = vld [vmem:[#allocation9 + $0x8] sm:$0xf]
    %v3355 = vld [vmem:[#allocation9 + $0xc] sm:$0xff]
    %v3356 = vld [vmem:[#allocation9 + $0x14] sm:$0xf]
    %v3357 = vld [vmem:[#allocation9 + $0x18] sm:$0xff]
    %v3358 = vld [vmem:[#allocation9 + $0x20] sm:$0xf]
    %v3359 = vld [vmem:[#allocation9 + $0x24] sm:$0xff]
    %v3360 = vld [vmem:[#allocation9 + $0x2c] sm:$0xf]
    %v3361 = vld [vmem:[#allocation9 + $0x30] sm:$0xff]
    %v3362 = vld [vmem:[#allocation9 + $0x38] sm:$0xf]
    %v3363 = vld [vmem:[#allocation9 + $0x3c] sm:$0xff]
    %v3364 = vld [vmem:[#allocation9 + $0x44] sm:$0xf]
    %v3365 = vld [vmem:[#allocation9 + $0x48] sm:$0xff]
    %v3366 = vld [vmem:[#allocation9 + $0x50] sm:$0xf]
    %v3367 = vld [vmem:[#allocation9 + $0x54] sm:$0xff]
    %v3368 = vld [vmem:[#allocation9 + $0x5c] sm:$0xf]
    %v3369 = vld [vmem:[#allocation9 + $0x60] sm:$0xff]
    %v3370 = vld [vmem:[#allocation9 + $0x68] sm:$0xf]
    %v3371 = vld [vmem:[#allocation9 + $0x6c] sm:$0xff]
    %v3372 = vld [vmem:[#allocation9 + $0x74] sm:$0xf]
    %v3373 = vld [vmem:[#allocation9 + $0x78] sm:$0xff]
    %v3374 = vld [vmem:[#allocation9 + $0x80] sm:$0xf]
    %v3375 = vld [vmem:[#allocation9 + $0x84] sm:$0xff]
    %v3376 = vld [vmem:[#allocation9 + $0x8c] sm:$0xf]
    %v3377 = vld [vmem:[#allocation9 + $0x90] sm:$0xff]
    %v3378 = vld [vmem:[#allocation9 + $0x98] sm:$0xf]
    %v3379 = vld [vmem:[#allocation9 + $0x9c] sm:$0xff]
    %v3380 = vld [vmem:[#allocation9 + $0xa4] sm:$0xf]
    %v3381 = vld [vmem:[#allocation9 + $0xa8] sm:$0xff]
    %v3382 = vld [vmem:[#allocation9 + $0xb0] sm:$0xf]
    %v3383 = vld [vmem:[#allocation9 + $0xb4] sm:$0xff]
    %v3384 = vld [vmem:[#allocation9 + $0xbc] sm:$0xf]
    %v3417 = vunpack.c.l.b16 %v3353
    %v3418 = vunpack.c.h.b16 %v3353
    %v3419 = vunpack.c.l.b16 %v3354
    %v3420 = vunpack.c.l.b16 %v3355
    %v3421 = vunpack.c.h.b16 %v3355
    %v3422 = vunpack.c.l.b16 %v3356
    %v3423 = vunpack.c.l.b16 %v3357
    %v3424 = vunpack.c.h.b16 %v3357
    %v3425 = vunpack.c.l.b16 %v3358
    %v3426 = vunpack.c.l.b16 %v3359
    %v3427 = vunpack.c.h.b16 %v3359
    %v3428 = vunpack.c.l.b16 %v3360
    %v3429 = vunpack.c.l.b16 %v3361
    %v3430 = vunpack.c.h.b16 %v3361
    %v3431 = vunpack.c.l.b16 %v3362
    %v3432 = vunpack.c.l.b16 %v3363
    %v3433 = vunpack.c.h.b16 %v3363
    %v3434 = vunpack.c.l.b16 %v3364
    %v3435 = vunpack.c.l.b16 %v3365
    %v3436 = vunpack.c.h.b16 %v3365
    %v3437 = vunpack.c.l.b16 %v3366
    %v3438 = vunpack.c.l.b16 %v3367
    %v3439 = vunpack.c.h.b16 %v3367
    %v3440 = vunpack.c.l.b16 %v3368
    %v3441 = vunpack.c.l.b16 %v3369
    %v3442 = vunpack.c.h.b16 %v3369
    %v3443 = vunpack.c.l.b16 %v3370
    %v3444 = vunpack.c.l.b16 %v3371
    %v3445 = vunpack.c.h.b16 %v3371
    %v3446 = vunpack.c.l.b16 %v3372
    %v3447 = vunpack.c.l.b16 %v3373
    %v3448 = vunpack.c.h.b16 %v3373
    %v3449 = vunpack.c.l.b16 %v3374
    %v3450 = vunpack.c.l.b16 %v3375
    %v3451 = vunpack.c.h.b16 %v3375
    %v3452 = vunpack.c.l.b16 %v3376
    %v3453 = vunpack.c.l.b16 %v3377
    %v3454 = vunpack.c.h.b16 %v3377
    %v3455 = vunpack.c.l.b16 %v3378
    %v3456 = vunpack.c.l.b16 %v3379
    %v3457 = vunpack.c.h.b16 %v3379
    %v3458 = vunpack.c.l.b16 %v3380
    %v3459 = vunpack.c.l.b16 %v3381
    %v3460 = vunpack.c.h.b16 %v3381
    %v3461 = vunpack.c.l.b16 %v3382
    %v3462 = vunpack.c.l.b16 %v3383
    %v3463 = vunpack.c.h.b16 %v3383
    %v3464 = vunpack.c.l.b16 %v3384
    %v3465 = vpack.c.b16 %v3420, %v3417
    %v3466 = vpack.c.b16 %v3421, %v3418
    %v3467 = vpack.c.b16 %v3422, %v3419
    %v3468 = vpack.c.b16 %v3426, %v3423
    %v3469 = vpack.c.b16 %v3427, %v3424
    %v3470 = vpack.c.b16 %v3428, %v3425
    %v3471 = vpack.c.b16 %v3432, %v3429
    %v3472 = vpack.c.b16 %v3433, %v3430
    %v3473 = vpack.c.b16 %v3434, %v3431
    %v3474 = vpack.c.b16 %v3438, %v3435
    %v3475 = vpack.c.b16 %v3439, %v3436
    %v3476 = vpack.c.b16 %v3440, %v3437
    %v3477 = vpack.c.b16 %v3444, %v3441
    %v3478 = vpack.c.b16 %v3445, %v3442
    %v3479 = vpack.c.b16 %v3446, %v3443
    %v3480 = vpack.c.b16 %v3450, %v3447
    %v3481 = vpack.c.b16 %v3451, %v3448
    %v3482 = vpack.c.b16 %v3452, %v3449
    %v3483 = vpack.c.b16 %v3456, %v3453
    %v3484 = vpack.c.b16 %v3457, %v3454
    %v3485 = vpack.c.b16 %v3458, %v3455
    %v3486 = vpack.c.b16 %v3462, %v3459
    %v3487 = vpack.c.b16 %v3463, %v3460
    %v3488 = vpack.c.b16 %v3464, %v3461
    %3513 = vmatpush.bf16.msra.mxu0 %v3486
    %3514 = vmatpush.bf16.msra.mxu0 %v3483
    %3515 = vmatpush.bf16.msra.mxu0 %v3480
    %3516 = vmatpush.bf16.msra.mxu0 %v3477
    %3517 = vmatpush.bf16.msra.mxu0 %v3474
    %3518 = vmatpush.bf16.msra.mxu0 %v3471
    %3519 = vmatpush.bf16.msra.mxu0 %v3468
    %3520 = vmatpush.bf16.msra.mxu0 %v3465
    %3521 = vmatmul.bf16.gmra.mxu0 %v3352
    %v3522 = vpop.f32.mrf.mxu0
    %v3523 = vadd.f32 %v488, %v3522
    %v3524 = vpop.f32.mrf.mxu0
    %3525 = vdwg.mxu0
    %3526 = vmatpush.bf16.msra.mxu0 %v3487
    %3527 = vmatpush.bf16.msra.mxu0 %v3484
    %3528 = vmatpush.bf16.msra.mxu0 %v3481
    %3529 = vmatpush.bf16.msra.mxu0 %v3478
    %3530 = vmatpush.bf16.msra.mxu0 %v3475
    %3531 = vmatpush.bf16.msra.mxu0 %v3472
    %3532 = vmatpush.bf16.msra.mxu0 %v3469
    %3533 = vmatpush.bf16.msra.mxu0 %v3466
    %3534 = vmatmul.bf16.gmra.mxu0 %v3352
    %v3535 = vpop.f32.mrf.mxu0
    %v3536 = vadd.f32 %v489, %v3535
    %v3537 = vpop.f32.mrf.mxu0
    %3538 = vdwg.mxu0
    %3539 = vmatpush.bf16.msra.mxu0 %v3488
    %3540 = vmatpush.bf16.msra.mxu0 %v3485
    %3541 = vmatpush.bf16.msra.mxu0 %v3482
    %3542 = vmatpush.bf16.msra.mxu0 %v3479
    %3543 = vmatpush.bf16.msra.mxu0 %v3476
    %3544 = vmatpush.bf16.msra.mxu0 %v3473
    %3545 = vmatpush.bf16.msra.mxu0 %v3470
    %3546 = vmatpush.bf16.msra.mxu0 %v3467
    %3547 = vmatmul.bf16.gmra.mxu0 %v3352
    %v3548 = vpop.f32.mrf.mxu0
    %v3549 = vadd.f32 %v490, %v3548
    %v3550 = vpop.f32.mrf.mxu0
    %3551 = vdwg.mxu0
    %v3552 = vadd.f32 %v3323, %v3523
    %v3553 = vxor.u32 %v3552, 2147483648
    %v3554 = vmul.f32 %v3553, 1.442695
    %v3555 = vpow.pop %v3554
    %v3556 = vadd.f32 %v3555, 1.0
    %v3557 = vrcp.pop %v3556
    %v3558 = vmul.f32 %v3556, %v3557
    %v3559 = vsub.f32 1.0, %v3558
    %v3560 = vmul.f32 %v3557, %v3559
    %v3561 = vadd.f32 %v3557, %v3560
    %vm3562 = vweird.f32 %v3556
    %vm3563 = vweird.f32 %v3557
    %vm3564 = vmor %vm3562, %vm3563
    %v3565 = vsel %vm3564, %v3557, %v3561
    %v3566 = vand.u32 2147483647, %v3556
    %vm3567 = vcmp.eq.f32.partialorder %v3566, 8.507059e+37
    %v3568 = vand.u32 %v3556, 2147483648
    %v3569 = vor.u32 1.1754944e-38, %v3568
    %v3570 = vsel %vm3567, %v3569, %v3565
    %v3571 = vmul.f32 1.0, %v3570
    %v3572 = vadd.f32 %v3336, %v3536
    %v3573 = vxor.u32 %v3572, 2147483648
    %v3574 = vmul.f32 %v3573, 1.442695
    %v3575 = vpow.pop %v3574
    %v3576 = vadd.f32 %v3575, 1.0
    %v3577 = vrcp.pop %v3576
    %v3578 = vmul.f32 %v3576, %v3577
    %v3579 = vsub.f32 1.0, %v3578
    %v3580 = vmul.f32 %v3577, %v3579
    %v3581 = vadd.f32 %v3577, %v3580
    %vm3582 = vweird.f32 %v3576
    %vm3583 = vweird.f32 %v3577
    %vm3584 = vmor %vm3582, %vm3583
    %v3585 = vsel %vm3584, %v3577, %v3581
    %v3586 = vand.u32 2147483647, %v3576
    %vm3587 = vcmp.eq.f32.partialorder %v3586, 8.507059e+37
    %v3588 = vand.u32 %v3576, 2147483648
    %v3589 = vor.u32 1.1754944e-38, %v3588
    %v3590 = vsel %vm3587, %v3589, %v3585
    %v3591 = vmul.f32 1.0, %v3590
    %v3592 = vmul.f32 %v3571, %v3549
    %v3593 = vadd.f32 %v3349, %v3592
    %v3594 = vtanh.pop %v3593
    %v3595 = vsub.f32 1.0, %v3591
    %v3596 = vmul.f32 %v3595, %v3594
    %v3597 = vmul.f32 %v3591, %v3151
    %v3598 = vadd.f32 %v3596, %v3597
    %3599 = vst [vmem:[#allocation17] sm:$0xff] %v3598
    %v3600 = vld [vmem:[%s709] sm:$0xff]
    %v3601 = vpack.c.bf16 %v3598, %v3598
    %v3602 = vld [vmem:[%s712] sm:$0xff]
    %v3603 = vld [vmem:[%s712 + $0x8] sm:$0xf]
    %v3604 = vld [vmem:[%s712 + $0xc] sm:$0xff]
    %v3605 = vld [vmem:[%s712 + $0x14] sm:$0xf]
    %v3606 = vld [vmem:[%s712 + $0x18] sm:$0xff]
    %v3607 = vld [vmem:[%s712 + $0x20] sm:$0xf]
    %v3608 = vld [vmem:[%s712 + $0x24] sm:$0xff]
    %v3609 = vld [vmem:[%s712 + $0x2c] sm:$0xf]
    %v3610 = vld [vmem:[%s712 + $0x30] sm:$0xff]
    %v3611 = vld [vmem:[%s712 + $0x38] sm:$0xf]
    %v3612 = vld [vmem:[%s712 + $0x3c] sm:$0xff]
    %v3613 = vld [vmem:[%s712 + $0x44] sm:$0xf]
    %v3614 = vld [vmem:[%s712 + $0x48] sm:$0xff]
    %v3615 = vld [vmem:[%s712 + $0x50] sm:$0xf]
    %v3616 = vld [vmem:[%s712 + $0x54] sm:$0xff]
    %v3617 = vld [vmem:[%s712 + $0x5c] sm:$0xf]
    %v3618 = vld [vmem:[%s712 + $0x60] sm:$0xff]
    %v3619 = vld [vmem:[%s712 + $0x68] sm:$0xf]
    %v3620 = vld [vmem:[%s712 + $0x6c] sm:$0xff]
    %v3621 = vld [vmem:[%s712 + $0x74] sm:$0xf]
    %v3622 = vld [vmem:[%s712 + $0x78] sm:$0xff]
    %v3623 = vld [vmem:[%s712 + $0x80] sm:$0xf]
    %v3624 = vld [vmem:[%s712 + $0x84] sm:$0xff]
    %v3625 = vld [vmem:[%s712 + $0x8c] sm:$0xf]
    %v3626 = vld [vmem:[%s712 + $0x90] sm:$0xff]
    %v3627 = vld [vmem:[%s712 + $0x98] sm:$0xf]
    %v3628 = vld [vmem:[%s712 + $0x9c] sm:$0xff]
    %v3629 = vld [vmem:[%s712 + $0xa4] sm:$0xf]
    %v3630 = vld [vmem:[%s712 + $0xa8] sm:$0xff]
    %v3631 = vld [vmem:[%s712 + $0xb0] sm:$0xf]
    %v3632 = vld [vmem:[%s712 + $0xb4] sm:$0xff]
    %v3633 = vld [vmem:[%s712 + $0xbc] sm:$0xf]
    %v3666 = vunpack.c.l.b16 %v3602
    %v3667 = vunpack.c.h.b16 %v3602
    %v3668 = vunpack.c.l.b16 %v3603
    %v3669 = vunpack.c.l.b16 %v3604
    %v3670 = vunpack.c.h.b16 %v3604
    %v3671 = vunpack.c.l.b16 %v3605
    %v3672 = vunpack.c.l.b16 %v3606
    %v3673 = vunpack.c.h.b16 %v3606
    %v3674 = vunpack.c.l.b16 %v3607
    %v3675 = vunpack.c.l.b16 %v3608
    %v3676 = vunpack.c.h.b16 %v3608
    %v3677 = vunpack.c.l.b16 %v3609
    %v3678 = vunpack.c.l.b16 %v3610
    %v3679 = vunpack.c.h.b16 %v3610
    %v3680 = vunpack.c.l.b16 %v3611
    %v3681 = vunpack.c.l.b16 %v3612
    %v3682 = vunpack.c.h.b16 %v3612
    %v3683 = vunpack.c.l.b16 %v3613
    %v3684 = vunpack.c.l.b16 %v3614
    %v3685 = vunpack.c.h.b16 %v3614
    %v3686 = vunpack.c.l.b16 %v3615
    %v3687 = vunpack.c.l.b16 %v3616
    %v3688 = vunpack.c.h.b16 %v3616
    %v3689 = vunpack.c.l.b16 %v3617
    %v3690 = vunpack.c.l.b16 %v3618
    %v3691 = vunpack.c.h.b16 %v3618
    %v3692 = vunpack.c.l.b16 %v3619
    %v3693 = vunpack.c.l.b16 %v3620
    %v3694 = vunpack.c.h.b16 %v3620
    %v3695 = vunpack.c.l.b16 %v3621
    %v3696 = vunpack.c.l.b16 %v3622
    %v3697 = vunpack.c.h.b16 %v3622
    %v3698 = vunpack.c.l.b16 %v3623
    %v3699 = vunpack.c.l.b16 %v3624
    %v3700 = vunpack.c.h.b16 %v3624
    %v3701 = vunpack.c.l.b16 %v3625
    %v3702 = vunpack.c.l.b16 %v3626
    %v3703 = vunpack.c.h.b16 %v3626
    %v3704 = vunpack.c.l.b16 %v3627
    %v3705 = vunpack.c.l.b16 %v3628
    %v3706 = vunpack.c.h.b16 %v3628
    %v3707 = vunpack.c.l.b16 %v3629
    %v3708 = vunpack.c.l.b16 %v3630
    %v3709 = vunpack.c.h.b16 %v3630
    %v3710 = vunpack.c.l.b16 %v3631
    %v3711 = vunpack.c.l.b16 %v3632
    %v3712 = vunpack.c.h.b16 %v3632
    %v3713 = vunpack.c.l.b16 %v3633
    %v3714 = vpack.c.b16 %v3669, %v3666
    %v3715 = vpack.c.b16 %v3670, %v3667
    %v3716 = vpack.c.b16 %v3671, %v3668
    %v3717 = vpack.c.b16 %v3675, %v3672
    %v3718 = vpack.c.b16 %v3676, %v3673
    %v3719 = vpack.c.b16 %v3677, %v3674
    %v3720 = vpack.c.b16 %v3681, %v3678
    %v3721 = vpack.c.b16 %v3682, %v3679
    %v3722 = vpack.c.b16 %v3683, %v3680
    %v3723 = vpack.c.b16 %v3687, %v3684
    %v3724 = vpack.c.b16 %v3688, %v3685
    %v3725 = vpack.c.b16 %v3689, %v3686
    %v3726 = vpack.c.b16 %v3693, %v3690
    %v3727 = vpack.c.b16 %v3694, %v3691
    %v3728 = vpack.c.b16 %v3695, %v3692
    %v3729 = vpack.c.b16 %v3699, %v3696
    %v3730 = vpack.c.b16 %v3700, %v3697
    %v3731 = vpack.c.b16 %v3701, %v3698
    %v3732 = vpack.c.b16 %v3705, %v3702
    %v3733 = vpack.c.b16 %v3706, %v3703
    %v3734 = vpack.c.b16 %v3707, %v3704
    %v3735 = vpack.c.b16 %v3711, %v3708
    %v3736 = vpack.c.b16 %v3712, %v3709
    %v3737 = vpack.c.b16 %v3713, %v3710
    %3762 = vmatpush.bf16.msra.mxu0 %v3735
    %3763 = vmatpush.bf16.msra.mxu0 %v3732
    %3764 = vmatpush.bf16.msra.mxu0 %v3729
    %3765 = vmatpush.bf16.msra.mxu0 %v3726
    %3766 = vmatpush.bf16.msra.mxu0 %v3723
    %3767 = vmatpush.bf16.msra.mxu0 %v3720
    %3768 = vmatpush.bf16.msra.mxu0 %v3717
    %3769 = vmatpush.bf16.msra.mxu0 %v3714
    %3770 = vmatmul.bf16.gmra.mxu0 %v3601
    %v3771 = vpop.f32.mrf.mxu0
    %v3772 = vadd.f32 %v746, %v3771
    %v3773 = vpop.f32.mrf.mxu0
    %3774 = vdwg.mxu0
    %3775 = vmatpush.bf16.msra.mxu0 %v3736
    %3776 = vmatpush.bf16.msra.mxu0 %v3733
    %3777 = vmatpush.bf16.msra.mxu0 %v3730
    %3778 = vmatpush.bf16.msra.mxu0 %v3727
    %3779 = vmatpush.bf16.msra.mxu0 %v3724
    %3780 = vmatpush.bf16.msra.mxu0 %v3721
    %3781 = vmatpush.bf16.msra.mxu0 %v3718
    %3782 = vmatpush.bf16.msra.mxu0 %v3715
    %3783 = vmatmul.bf16.gmra.mxu0 %v3601
    %v3784 = vpop.f32.mrf.mxu0
    %v3785 = vadd.f32 %v747, %v3784
    %v3786 = vpop.f32.mrf.mxu0
    %3787 = vdwg.mxu0
    %3788 = vmatpush.bf16.msra.mxu0 %v3737
    %3789 = vmatpush.bf16.msra.mxu0 %v3734
    %3790 = vmatpush.bf16.msra.mxu0 %v3731
    %3791 = vmatpush.bf16.msra.mxu0 %v3728
    %3792 = vmatpush.bf16.msra.mxu0 %v3725
    %3793 = vmatpush.bf16.msra.mxu0 %v3722
    %3794 = vmatpush.bf16.msra.mxu0 %v3719
    %3795 = vmatpush.bf16.msra.mxu0 %v3716
    %3796 = vmatmul.bf16.gmra.mxu0 %v3601
    %v3797 = vpop.f32.mrf.mxu0
    %v3798 = vadd.f32 %v748, %v3797
    %v3799 = vpop.f32.mrf.mxu0
    %3800 = vdwg.mxu0
    %v3801 = vpack.c.bf16 %v3600, %v3600
    %v3802 = vld [vmem:[%s920] sm:$0xff]
    %v3803 = vld [vmem:[%s920 + $0x8] sm:$0xf]
    %v3804 = vld [vmem:[%s920 + $0xc] sm:$0xff]
    %v3805 = vld [vmem:[%s920 + $0x14] sm:$0xf]
    %v3806 = vld [vmem:[%s920 + $0x18] sm:$0xff]
    %v3807 = vld [vmem:[%s920 + $0x20] sm:$0xf]
    %v3808 = vld [vmem:[%s920 + $0x24] sm:$0xff]
    %v3809 = vld [vmem:[%s920 + $0x2c] sm:$0xf]
    %v3810 = vld [vmem:[%s920 + $0x30] sm:$0xff]
    %v3811 = vld [vmem:[%s920 + $0x38] sm:$0xf]
    %v3812 = vld [vmem:[%s920 + $0x3c] sm:$0xff]
    %v3813 = vld [vmem:[%s920 + $0x44] sm:$0xf]
    %v3814 = vld [vmem:[%s920 + $0x48] sm:$0xff]
    %v3815 = vld [vmem:[%s920 + $0x50] sm:$0xf]
    %v3816 = vld [vmem:[%s920 + $0x54] sm:$0xff]
    %v3817 = vld [vmem:[%s920 + $0x5c] sm:$0xf]
    %v3818 = vld [vmem:[%s920 + $0x60] sm:$0xff]
    %v3819 = vld [vmem:[%s920 + $0x68] sm:$0xf]
    %v3820 = vld [vmem:[%s920 + $0x6c] sm:$0xff]
    %v3821 = vld [vmem:[%s920 + $0x74] sm:$0xf]
    %v3822 = vld [vmem:[%s920 + $0x78] sm:$0xff]
    %v3823 = vld [vmem:[%s920 + $0x80] sm:$0xf]
    %v3824 = vld [vmem:[%s920 + $0x84] sm:$0xff]
    %v3825 = vld [vmem:[%s920 + $0x8c] sm:$0xf]
    %v3826 = vld [vmem:[%s920 + $0x90] sm:$0xff]
    %v3827 = vld [vmem:[%s920 + $0x98] sm:$0xf]
    %v3828 = vld [vmem:[%s920 + $0x9c] sm:$0xff]
    %v3829 = vld [vmem:[%s920 + $0xa4] sm:$0xf]
    %v3830 = vld [vmem:[%s920 + $0xa8] sm:$0xff]
    %v3831 = vld [vmem:[%s920 + $0xb0] sm:$0xf]
    %v3832 = vld [vmem:[%s920 + $0xb4] sm:$0xff]
    %v3833 = vld [vmem:[%s920 + $0xbc] sm:$0xf]
    %v3866 = vunpack.c.l.b16 %v3802
    %v3867 = vunpack.c.h.b16 %v3802
    %v3868 = vunpack.c.l.b16 %v3803
    %v3869 = vunpack.c.l.b16 %v3804
    %v3870 = vunpack.c.h.b16 %v3804
    %v3871 = vunpack.c.l.b16 %v3805
    %v3872 = vunpack.c.l.b16 %v3806
    %v3873 = vunpack.c.h.b16 %v3806
    %v3874 = vunpack.c.l.b16 %v3807
    %v3875 = vunpack.c.l.b16 %v3808
    %v3876 = vunpack.c.h.b16 %v3808
    %v3877 = vunpack.c.l.b16 %v3809
    %v3878 = vunpack.c.l.b16 %v3810
    %v3879 = vunpack.c.h.b16 %v3810
    %v3880 = vunpack.c.l.b16 %v3811
    %v3881 = vunpack.c.l.b16 %v3812
    %v3882 = vunpack.c.h.b16 %v3812
    %v3883 = vunpack.c.l.b16 %v3813
    %v3884 = vunpack.c.l.b16 %v3814
    %v3885 = vunpack.c.h.b16 %v3814
    %v3886 = vunpack.c.l.b16 %v3815
    %v3887 = vunpack.c.l.b16 %v3816
    %v3888 = vunpack.c.h.b16 %v3816
    %v3889 = vunpack.c.l.b16 %v3817
    %v3890 = vunpack.c.l.b16 %v3818
    %v3891 = vunpack.c.h.b16 %v3818
    %v3892 = vunpack.c.l.b16 %v3819
    %v3893 = vunpack.c.l.b16 %v3820
    %v3894 = vunpack.c.h.b16 %v3820
    %v3895 = vunpack.c.l.b16 %v3821
    %v3896 = vunpack.c.l.b16 %v3822
    %v3897 = vunpack.c.h.b16 %v3822
    %v3898 = vunpack.c.l.b16 %v3823
    %v3899 = vunpack.c.l.b16 %v3824
    %v3900 = vunpack.c.h.b16 %v3824
    %v3901 = vunpack.c.l.b16 %v3825
    %v3902 = vunpack.c.l.b16 %v3826
    %v3903 = vunpack.c.h.b16 %v3826
    %v3904 = vunpack.c.l.b16 %v3827
    %v3905 = vunpack.c.l.b16 %v3828
    %v3906 = vunpack.c.h.b16 %v3828
    %v3907 = vunpack.c.l.b16 %v3829
    %v3908 = vunpack.c.l.b16 %v3830
    %v3909 = vunpack.c.h.b16 %v3830
    %v3910 = vunpack.c.l.b16 %v3831
    %v3911 = vunpack.c.l.b16 %v3832
    %v3912 = vunpack.c.h.b16 %v3832
    %v3913 = vunpack.c.l.b16 %v3833
    %v3914 = vpack.c.b16 %v3869, %v3866
    %v3915 = vpack.c.b16 %v3870, %v3867
    %v3916 = vpack.c.b16 %v3871, %v3868
    %v3917 = vpack.c.b16 %v3875, %v3872
    %v3918 = vpack.c.b16 %v3876, %v3873
    %v3919 = vpack.c.b16 %v3877, %v3874
    %v3920 = vpack.c.b16 %v3881, %v3878
    %v3921 = vpack.c.b16 %v3882, %v3879
    %v3922 = vpack.c.b16 %v3883, %v3880
    %v3923 = vpack.c.b16 %v3887, %v3884
    %v3924 = vpack.c.b16 %v3888, %v3885
    %v3925 = vpack.c.b16 %v3889, %v3886
    %v3926 = vpack.c.b16 %v3893, %v3890
    %v3927 = vpack.c.b16 %v3894, %v3891
    %v3928 = vpack.c.b16 %v3895, %v3892
    %v3929 = vpack.c.b16 %v3899, %v3896
    %v3930 = vpack.c.b16 %v3900, %v3897
    %v3931 = vpack.c.b16 %v3901, %v3898
    %v3932 = vpack.c.b16 %v3905, %v3902
    %v3933 = vpack.c.b16 %v3906, %v3903
    %v3934 = vpack.c.b16 %v3907, %v3904
    %v3935 = vpack.c.b16 %v3911, %v3908
    %v3936 = vpack.c.b16 %v3912, %v3909
    %v3937 = vpack.c.b16 %v3913, %v3910
    %3962 = vmatpush.bf16.msra.mxu0 %v3935
    %3963 = vmatpush.bf16.msra.mxu0 %v3932
    %3964 = vmatpush.bf16.msra.mxu0 %v3929
    %3965 = vmatpush.bf16.msra.mxu0 %v3926
    %3966 = vmatpush.bf16.msra.mxu0 %v3923
    %3967 = vmatpush.bf16.msra.mxu0 %v3920
    %3968 = vmatpush.bf16.msra.mxu0 %v3917
    %3969 = vmatpush.bf16.msra.mxu0 %v3914
    %3970 = vmatmul.bf16.gmra.mxu0 %v3801
    %v3971 = vpop.f32.mrf.mxu0
    %v3972 = vadd.f32 %v954, %v3971
    %v3973 = vpop.f32.mrf.mxu0
    %3974 = vdwg.mxu0
    %3975 = vmatpush.bf16.msra.mxu0 %v3936
    %3976 = vmatpush.bf16.msra.mxu0 %v3933
    %3977 = vmatpush.bf16.msra.mxu0 %v3930
    %3978 = vmatpush.bf16.msra.mxu0 %v3927
    %3979 = vmatpush.bf16.msra.mxu0 %v3924
    %3980 = vmatpush.bf16.msra.mxu0 %v3921
    %3981 = vmatpush.bf16.msra.mxu0 %v3918
    %3982 = vmatpush.bf16.msra.mxu0 %v3915
    %3983 = vmatmul.bf16.gmra.mxu0 %v3801
    %v3984 = vpop.f32.mrf.mxu0
    %v3985 = vadd.f32 %v955, %v3984
    %v3986 = vpop.f32.mrf.mxu0
    %3987 = vdwg.mxu0
    %3988 = vmatpush.bf16.msra.mxu0 %v3937
    %3989 = vmatpush.bf16.msra.mxu0 %v3934
    %3990 = vmatpush.bf16.msra.mxu0 %v3931
    %3991 = vmatpush.bf16.msra.mxu0 %v3928
    %3992 = vmatpush.bf16.msra.mxu0 %v3925
    %3993 = vmatpush.bf16.msra.mxu0 %v3922
    %3994 = vmatpush.bf16.msra.mxu0 %v3919
    %3995 = vmatpush.bf16.msra.mxu0 %v3916
    %3996 = vmatmul.bf16.gmra.mxu0 %v3801
    %v3997 = vpop.f32.mrf.mxu0
    %v3998 = vadd.f32 %v956, %v3997
    %v3999 = vpop.f32.mrf.mxu0
    %4000 = vdwg.mxu0
    %v4001 = vadd.f32 %v3772, %v3972
    %v4002 = vxor.u32 %v4001, 2147483648
    %v4003 = vmul.f32 %v4002, 1.442695
    %v4004 = vpow.pop %v4003
    %v4005 = vadd.f32 %v4004, 1.0
    %v4006 = vrcp.pop %v4005
    %v4007 = vmul.f32 %v4005, %v4006
    %v4008 = vsub.f32 1.0, %v4007
    %v4009 = vmul.f32 %v4006, %v4008
    %v4010 = vadd.f32 %v4006, %v4009
    %vm4011 = vweird.f32 %v4005
    %vm4012 = vweird.f32 %v4006
    %vm4013 = vmor %vm4011, %vm4012
    %v4014 = vsel %vm4013, %v4006, %v4010
    %v4015 = vand.u32 2147483647, %v4005
    %vm4016 = vcmp.eq.f32.partialorder %v4015, 8.507059e+37
    %v4017 = vand.u32 %v4005, 2147483648
    %v4018 = vor.u32 1.1754944e-38, %v4017
    %v4019 = vsel %vm4016, %v4018, %v4014
    %v4020 = vmul.f32 1.0, %v4019
    %v4021 = vadd.f32 %v3785, %v3985
    %v4022 = vxor.u32 %v4021, 2147483648
    %v4023 = vmul.f32 %v4022, 1.442695
    %v4024 = vpow.pop %v4023
    %v4025 = vadd.f32 %v4024, 1.0
    %v4026 = vrcp.pop %v4025
    %v4027 = vmul.f32 %v4025, %v4026
    %v4028 = vsub.f32 1.0, %v4027
    %v4029 = vmul.f32 %v4026, %v4028
    %v4030 = vadd.f32 %v4026, %v4029
    %vm4031 = vweird.f32 %v4025
    %vm4032 = vweird.f32 %v4026
    %vm4033 = vmor %vm4031, %vm4032
    %v4034 = vsel %vm4033, %v4026, %v4030
    %v4035 = vand.u32 2147483647, %v4025
    %vm4036 = vcmp.eq.f32.partialorder %v4035, 8.507059e+37
    %v4037 = vand.u32 %v4025, 2147483648
    %v4038 = vor.u32 1.1754944e-38, %v4037
    %v4039 = vsel %vm4036, %v4038, %v4034
    %v4040 = vmul.f32 1.0, %v4039
    %v4041 = vmul.f32 %v4020, %v3998
    %v4042 = vadd.f32 %v3798, %v4041
    %v4043 = vtanh.pop %v4042
    %v4044 = vsub.f32 1.0, %v4040
    %v4045 = vmul.f32 %v4044, %v4043
    %v4046 = vmul.f32 %v4040, %v3600
    %v4047 = vadd.f32 %v4045, %v4046
    %4048 = vst [vmem:[%s709] sm:$0xff] %v4047
    %v4049 = vld [vmem:[%s2] sm:$0xff]
    %v4050 = vpack.c.bf16 %v4049, %v4049
    %v4051 = vld [vmem:[#allocation6] sm:$0xf]
    %v4052 = vld [vmem:[#allocation6 + $0x4] sm:$0xf]
    %v4053 = vld [vmem:[#allocation6 + $0x8] sm:$0xf]
    %v4054 = vld [vmem:[#allocation6 + $0xc] sm:$0xf]
    %v4055 = vld [vmem:[#allocation6 + $0x10] sm:$0xf]
    %v4056 = vld [vmem:[#allocation6 + $0x14] sm:$0xf]
    %v4057 = vld [vmem:[#allocation6 + $0x18] sm:$0xf]
    %v4058 = vld [vmem:[#allocation6 + $0x1c] sm:$0xf]
    %v4059 = vld [vmem:[%s5] sm:$0x1]
    %v4061 = vperm.slane %v4059, 0
    %v4071 = vunpack.c.l.b16 %v4051
    %v4072 = vunpack.c.l.b16 %v4052
    %v4073 = vunpack.c.l.b16 %v4053
    %v4074 = vunpack.c.l.b16 %v4054
    %v4075 = vunpack.c.l.b16 %v4055
    %v4076 = vunpack.c.l.b16 %v4056
    %v4077 = vunpack.c.l.b16 %v4057
    %v4078 = vunpack.c.l.b16 %v4058
    %v4079 = vpack.c.b16 %v4072, %v4071
    %v4080 = vpack.c.b16 %v4074, %v4073
    %v4081 = vpack.c.b16 %v4076, %v4075
    %v4082 = vpack.c.b16 %v4078, %v4077
    %vm4087 = vcmask 523264
    %v4089 = vsel %vm4087, %v4050, 0
    %4091 = vmatpush.bf16.msra.mxu0 0
    %4092 = vmatpush.bf16.msra.mxu0 0
    %4093 = vmatpush.bf16.msra.mxu0 0
    %4094 = vmatpush.bf16.msra.mxu0 0
    %4095 = vmatpush.bf16.msra.mxu0 %v4082
    %4096 = vmatpush.bf16.msra.mxu0 %v4081
    %4097 = vmatpush.bf16.msra.mxu0 %v4080
    %4098 = vmatpush.bf16.msra.mxu0 %v4079
    %4099 = vmatmul.bf16.gmra.mxu0 %v4089
    %v4100 = vpop.f32.mrf.mxu0
    %v4101 = vadd.f32 %v4061, %v4100
    %v4102 = vpop.f32.mrf.mxu0
    %4103 = vdwg.mxu0
    %v4104 = vpack.c.bf16 %v4101, %v4101
    %v4105 = vld [vmem:[#allocation12] sm:$0xf]
    %v4106 = vld [vmem:[#allocation12 + $0x4] sm:$0xf]
    %v4107 = vld [vmem:[#allocation12 + $0x8] sm:$0xf]
    %v4108 = vld [vmem:[#allocation12 + $0xc] sm:$0xf]
    %v4109 = vld [vmem:[#allocation12 + $0x10] sm:$0xf]
    %v4110 = vld [vmem:[#allocation12 + $0x14] sm:$0xf]
    %v4111 = vld [vmem:[#allocation12 + $0x18] sm:$0xf]
    %v4112 = vld [vmem:[#allocation12 + $0x1c] sm:$0xf]
    %v4113 = vld [vmem:[#allocation12 + $0x20] sm:$0xf]
    %v4114 = vld [vmem:[#allocation12 + $0x24] sm:$0xf]
    %v4115 = vld [vmem:[#allocation12 + $0x28] sm:$0xf]
    %v4116 = vld [vmem:[#allocation12 + $0x2c] sm:$0xf]
    %v4117 = vld [vmem:[#allocation12 + $0x30] sm:$0xf]
    %v4118 = vld [vmem:[#allocation12 + $0x34] sm:$0xf]
    %v4119 = vld [vmem:[#allocation12 + $0x38] sm:$0xf]
    %v4120 = vld [vmem:[#allocation12 + $0x3c] sm:$0xf]
    %v4121 = vpack.c.bf16 %v1173, %v1173
    %v4122 = vld [vmem:[#allocation13] sm:$0xf]
    %v4123 = vld [vmem:[#allocation13 + $0x4] sm:$0xf]
    %v4124 = vld [vmem:[#allocation13 + $0x8] sm:$0xf]
    %v4125 = vld [vmem:[#allocation13 + $0xc] sm:$0xf]
    %v4126 = vld [vmem:[#allocation13 + $0x10] sm:$0xf]
    %v4127 = vld [vmem:[#allocation13 + $0x14] sm:$0xf]
    %v4128 = vld [vmem:[#allocation13 + $0x18] sm:$0xf]
    %v4129 = vld [vmem:[#allocation13 + $0x1c] sm:$0xf]
    %v4130 = vld [vmem:[#allocation13 + $0x20] sm:$0xf]
    %v4131 = vld [vmem:[#allocation13 + $0x24] sm:$0xf]
    %v4132 = vld [vmem:[#allocation13 + $0x28] sm:$0xf]
    %v4133 = vld [vmem:[#allocation13 + $0x2c] sm:$0xf]
    %v4134 = vld [vmem:[#allocation13 + $0x30] sm:$0xf]
    %v4135 = vld [vmem:[#allocation13 + $0x34] sm:$0xf]
    %v4136 = vld [vmem:[#allocation13 + $0x38] sm:$0xf]
    %v4137 = vld [vmem:[#allocation13 + $0x3c] sm:$0xf]
    %v4154 = vunpack.c.l.b16 %v4122
    %v4155 = vunpack.c.l.b16 %v4123
    %v4156 = vunpack.c.l.b16 %v4124
    %v4157 = vunpack.c.l.b16 %v4125
    %v4158 = vunpack.c.l.b16 %v4126
    %v4159 = vunpack.c.l.b16 %v4127
    %v4160 = vunpack.c.l.b16 %v4128
    %v4161 = vunpack.c.l.b16 %v4129
    %v4162 = vunpack.c.l.b16 %v4130
    %v4163 = vunpack.c.l.b16 %v4131
    %v4164 = vunpack.c.l.b16 %v4132
    %v4165 = vunpack.c.l.b16 %v4133
    %v4166 = vunpack.c.l.b16 %v4134
    %v4167 = vunpack.c.l.b16 %v4135
    %v4168 = vunpack.c.l.b16 %v4136
    %v4169 = vunpack.c.l.b16 %v4137
    %v4170 = vpack.c.b16 %v4155, %v4154
    %v4171 = vpack.c.b16 %v4157, %v4156
    %v4172 = vpack.c.b16 %v4159, %v4158
    %v4173 = vpack.c.b16 %v4161, %v4160
    %v4174 = vpack.c.b16 %v4163, %v4162
    %v4175 = vpack.c.b16 %v4165, %v4164
    %v4176 = vpack.c.b16 %v4167, %v4166
    %v4177 = vpack.c.b16 %v4169, %v4168
    %4186 = vmatpush.bf16.msra.mxu0 %v4177
    %4187 = vmatpush.bf16.msra.mxu0 %v4176
    %4188 = vmatpush.bf16.msra.mxu0 %v4175
    %4189 = vmatpush.bf16.msra.mxu0 %v4174
    %4190 = vmatpush.bf16.msra.mxu0 %v4173
    %4191 = vmatpush.bf16.msra.mxu0 %v4172
    %4192 = vmatpush.bf16.msra.mxu0 %v4171
    %4193 = vmatpush.bf16.msra.mxu0 %v4170
    %4194 = vmatmul.bf16.gmra.mxu0 %v4121
    %v4195 = vpop.f32.mrf.mxu0
    %v4196 = vadd.f32 0.0, %v4195
    %v4197 = vpop.f32.mrf.mxu0
    %4198 = vdwg.mxu0
    %v4215 = vunpack.c.l.b16 %v4105
    %v4216 = vunpack.c.l.b16 %v4106
    %v4217 = vunpack.c.l.b16 %v4107
    %v4218 = vunpack.c.l.b16 %v4108
    %v4219 = vunpack.c.l.b16 %v4109
    %v4220 = vunpack.c.l.b16 %v4110
    %v4221 = vunpack.c.l.b16 %v4111
    %v4222 = vunpack.c.l.b16 %v4112
    %v4223 = vunpack.c.l.b16 %v4113
    %v4224 = vunpack.c.l.b16 %v4114
    %v4225 = vunpack.c.l.b16 %v4115
    %v4226 = vunpack.c.l.b16 %v4116
    %v4227 = vunpack.c.l.b16 %v4117
    %v4228 = vunpack.c.l.b16 %v4118
    %v4229 = vunpack.c.l.b16 %v4119
    %v4230 = vunpack.c.l.b16 %v4120
    %v4231 = vpack.c.b16 %v4216, %v4215
    %v4232 = vpack.c.b16 %v4218, %v4217
    %v4233 = vpack.c.b16 %v4220, %v4219
    %v4234 = vpack.c.b16 %v4222, %v4221
    %v4235 = vpack.c.b16 %v4224, %v4223
    %v4236 = vpack.c.b16 %v4226, %v4225
    %v4237 = vpack.c.b16 %v4228, %v4227
    %v4238 = vpack.c.b16 %v4230, %v4229
    %4247 = vmatpush.bf16.msra.mxu0 %v4238
    %4248 = vmatpush.bf16.msra.mxu0 %v4237
    %4249 = vmatpush.bf16.msra.mxu0 %v4236
    %4250 = vmatpush.bf16.msra.mxu0 %v4235
    %4251 = vmatpush.bf16.msra.mxu0 %v4234
    %4252 = vmatpush.bf16.msra.mxu0 %v4233
    %4253 = vmatpush.bf16.msra.mxu0 %v4232
    %4254 = vmatpush.bf16.msra.mxu0 %v4231
    %4255 = vmatmul.bf16.gmra.mxu0 %v4104
    %v4256 = vpop.f32.mrf.mxu0
    %v4257 = vadd.f32 %v4196, %v4256
    %v4258 = vpop.f32.mrf.mxu0
    %4259 = vdwg.mxu0
    %v4260 = vld [vmem:[#allocation15] sm:$0x1]
    %v4262 = vperm.slane %v4260, 0
    %v4264 = vadd.f32 %v4257, %v4262
    %4265 = vmax.xlane.f32.xlu0 %v4264
    %v4266 = vpop.xlane.xlu0 %4265
    %v4267 = vsub.f32 %v4264, %v4266
    %v4268 = vmul.f32 %v4267, 1.442695
    %v4269 = vpow.pop %v4268
    %4270 = vadd.xlane.f32.xlu0 %v4269
    %v4271 = vpop.xlane.xlu0 %4270
    %v4272 = vlog2.pop %v4271
    %v4273 = vmul.f32 %v4272, 0.6931472
    %v4274 = vsub.f32 %v4267, %v4273
    %4275 = vst [vmem:[#allocation16] sm:$0xff] %v4274
    // Predicated region
    $region86: #{decoder_forward.1} parent=1 // pred_check
      _
    $region87: #{decoder_forward.1} parent=1 // pred_check_branch
      %4277 = sbr.rel (0) target = $region89
    $region88: #{decoder_forward.1} parent=1 // pred_region
      %4279 = vsyncadd [#allocation4], 0
      %s4281 = sshll.u32 [#allocation16], 4
      %s4282 = int_to_ptr.vmem [resolvable:$true] %s4281
      %s4283 = sshll.u32 %s13, 4
      %s4284 = int_to_ptr.hbm [resolvable:$true] %s4283
      %4286 = dma.vmem_to_hbm [thread:$0]  %s4282, 128, %s4284, [#allocation4]
    $region89: #{decoder_forward.1} parent=1 // pred_fallthru
      _
    // Predicated region
    $region90: #{decoder_forward.1} parent=1 // pred_check
      _
    $region91: #{decoder_forward.1} parent=1 // pred_check_branch
      %4288 = sbr.rel (0) target = $region93
    $region92: #{decoder_forward.1} parent=1 // pred_region
      %4290 = vsyncadd [#allocation18], 0
      %s4291 = sshll.u32 [#allocation17], 4
      %s4292 = int_to_ptr.vmem [resolvable:$true] %s4291
      %s4293 = sshll.u32 %s14, 4
      %s4294 = int_to_ptr.hbm [resolvable:$true] %s4293
      %4299 = dma.vmem_to_hbm [thread:$0]  %s4292, 256, %s4294, [#allocation18], 128, 128, 8
    $region93: #{decoder_forward.1} parent=1 // pred_fallthru
      _
    // Predicated region
    $region94: #{decoder_forward.1} parent=1 // pred_check
      _
    $region95: #{decoder_forward.1} parent=1 // pred_check_branch
      %4301 = sbr.rel (0) target = $region97
    $region96: #{decoder_forward.1} parent=1 // pred_region
      %4303 = dma.done [#allocation4], 128
    $region97: #{decoder_forward.1} parent=1 // pred_fallthru
      _
    // Predicated region
    $region98: #{decoder_forward.1} parent=1 // pred_check
      _
    $region99: #{decoder_forward.1} parent=1 // pred_check_branch
      %4305 = sbr.rel (0) target = $region101
    $region100: #{decoder_forward.1} parent=1 // pred_region
      %4307 = dma.done [#allocation18], 256
    $region101: #{decoder_forward.1} parent=1 // pred_fallthru
      _
    %4308 = vsyncpa [#allocation3], 1
    %4309 = vsyncpa [#allocation8], 1
    %4310 = vsyncpa [#allocation11], 1
    %4311 = vsyncpa [#allocation14], 1
    %4312 = vsyncpa [#allocation4], 1
    %4313 = vsyncpa [#allocation18], 1
    %4314 = vsyncpa [#allocation5], 1

</llo_original>
